<compile_context>
chip_gen: v6e
topology: v6e:2x2x1
jax: 0.10.0
libtpu: 0.0.40
codegen_flags: <defaults>
</compile_context>

<pallas_src>
import functools

import jax
import jax.numpy as jnp
from jax.experimental import pallas as pl
from jax.experimental.pallas import tpu as pltpu

# ----------------------------- configuration --------------------------------
BATCH = 2
NUM_NODES = 8            # num_nodes
INPUT_NODE_SIZE = 4      # input_node_size
LATENT_NODE_SIZE = 16    # latent_node_size
NODE_HIDDEN = 32         # node_sizes  = [[32], [32]]
EDGE_HIDDEN = 32         # edge_sizes  = [[32], [32]]
NUM_MPS = 2              # num_mps
ALPHAS = (0.1, 0.1)      # leaky-relu alphas per message-passing step
# latent_map = 'mix'  ->  out = mix_layer(graphnet(x).view(bs, -1)).unsqueeze(0)


def _leaky_relu(v, alpha):
    return jnp.where(v >= 0, v, alpha * v)


# ------------------------------ Pallas kernel --------------------------------
def encoder_kernel(*refs, num_mps, alphas, bs, num_nodes):
    """Single invocation: whole batch forward, fully fused."""
    x_ref, w_in_ref, b_in_ref = refs[0], refs[1], refs[2]
    mp_refs = refs[3:3 + 7 * num_mps]
    w_comb_ref, b_comb_ref, out_ref = refs[3 + 7 * num_mps:]

    N = num_nodes

    # identity mask used to read the Gram-matrix diagonal (hoisted, constant)
    row_i = jax.lax.broadcasted_iota(jnp.int32, (N, N), 0)
    col_i = jax.lax.broadcasted_iota(jnp.int32, (N, N), 1)
    eye = jnp.where(row_i == col_i, 1.0, 0.0)

    # input embedding for the whole batch at once: (bs*N, F_in) @ (F_in, D) + b
    h_all = jnp.dot(x_ref[...], w_in_ref[...],
                    preferred_element_type=jnp.float32) + b_in_ref[...]
    h_all = _leaky_relu(h_all, alphas[0])

    outs = []
    for b in range(bs):                       # bs=2, statically unrolled
        h = h_all[b * N:(b + 1) * N, :]       # (N, D), tile-aligned slice

        for i in range(num_mps):              # statically unrolled
            w_src = mp_refs[7 * i + 0][...]   # (D, E)
            w_dst = mp_refs[7 * i + 1][...]   # (D, E)
            w_dist = mp_refs[7 * i + 2][...]  # (1, E)
            b_e = mp_refs[7 * i + 3][...]     # (1, E)
            w_na = mp_refs[7 * i + 4][...]    # (E, D)
            w_nh = mp_refs[7 * i + 5][...]    # (D, D)
            b_n = mp_refs[7 * i + 6][...]     # (1, D)
            alpha = alphas[i]

            # 'cartesian' squared distance via Gram matrix (one MXU matmul)
            gram = jax.lax.dot_general(
                h, h, (((1,), (1,)), ((), ())),
                preferred_element_type=jnp.float32)          # (N, N) = h @ h.T
            gd = gram * eye
            sq_col = jnp.sum(gd, axis=1, keepdims=True)      # (N, 1) = |h_j|^2
            sq_row = jnp.sum(gd, axis=0, keepdims=True)      # (1, N) = |h_k|^2
            dist = sq_col + sq_row - 2.0 * gram              # (N, N)

            # edge net: decomposed concat-matmul (no (N*N, 2D+1) tensor)
            src_p = jnp.dot(h, w_src, preferred_element_type=jnp.float32)
            dst_p = jnp.dot(h, w_dst, preferred_element_type=jnp.float32)
            e = (src_p[:, None, :] + dst_p[None, :, :]
                 + dist[:, :, None] * w_dist[None, :, :]
                 + b_e[None, :, :])                          # (N, N, E)
            e = _leaky_relu(e, alpha)

            # aggregate messages over neighbours (sum over receiver axis)
            agg = jnp.sum(e, axis=1)                         # (N, E)

            # node net: decomposed concat-matmul
            h = _leaky_relu(
                jnp.dot(agg, w_na, preferred_element_type=jnp.float32)
                + jnp.dot(h, w_nh, preferred_element_type=jnp.float32)
                + b_n, alpha)                                # (N, D)

        # GraphNet-output linear fused into the mix layer:
        #   z = sum_{n,d} h[n,d] * W_comb[n,d,:] + b_comb   (VPU mul+reduce)
        prod = h[:, :, None] * w_comb_ref[...]               # (N, D, L)
        z = jnp.sum(prod, axis=0)                            # (D, L)
        z = jnp.sum(z, axis=0, keepdims=True) + b_comb_ref[...]  # (1, L)
        outs.append(z)

    out_ref[...] = jnp.concatenate(outs, axis=0).astype(out_ref.dtype)


# --------------------- host-side parameter restructuring ---------------------
def prepare_kernel_params(params):
    """Split/fuse the PyTorch-layout weights into kernel-friendly pieces."""
    D, E = NODE_HIDDEN, EDGE_HIDDEN
    kp = {"w_in": params["w_in"], "b_in": params["b_in"]}
    for i in range(NUM_MPS):
        w_e = params[f"w_e{i}"]                 # (2D+1, E)
        kp[f"w_e_src{i}"] = w_e[:D]             # (D, E)
        kp[f"w_e_dst{i}"] = w_e[D:2 * D]        # (D, E)
        kp[f"w_e_dist{i}"] = w_e[2 * D:2 * D + 1]  # (1, E)
        kp[f"b_e{i}"] = params[f"b_e{i}"]
        w_n = params[f"w_n{i}"]                 # (E+D, D)
        kp[f"w_n_agg{i}"] = w_n[:E]             # (E, D)
        kp[f"w_n_h{i}"] = w_n[E:]               # (D, D)
        kp[f"b_n{i}"] = params[f"b_n{i}"]
    # fold w_out / b_out into the mix weights:
    #   W_comb[n] = w_out @ w_mix_t[n]  (N, D, L);  b_comb = sum_n b_out @ w_mix_t[n]
    kp["w_comb"] = jnp.einsum("dl,nlo->ndo", params["w_out"], params["w_mix_t"])
    kp["b_comb"] = jnp.einsum("kl,nlo->ko", params["b_out"], params["w_mix_t"])
    return kp


# ------------------------------ wrapper --------------------------------------
def encoder_forward(x, params):
    bs, n_nodes, f_in = x.shape
    latent = LATENT_NODE_SIZE
    kp = prepare_kernel_params(params)

    x_flat = x.reshape(bs * n_nodes, f_in)      # host-side reshape (free)

    inputs = [x_flat, kp["w_in"], kp["b_in"]]
    for i in range(NUM_MPS):
        inputs += [kp[f"w_e_src{i}"], kp[f"w_e_dst{i}"], kp[f"w_e_dist{i}"],
                   kp[f"b_e{i}"], kp[f"w_n_agg{i}"], kp[f"w_n_h{i}"], kp[f"b_n{i}"]]
    inputs += [kp["w_comb"], kp["b_comb"]]

    # single grid step; every array is a full-extent block (DMA'd once).
    in_specs = [pl.BlockSpec(a.shape, (lambda i, _nd=a.ndim: (0,) * _nd))
                for a in inputs]

    out = pl.pallas_call(
        functools.partial(encoder_kernel, num_mps=NUM_MPS, alphas=ALPHAS,
                          bs=bs, num_nodes=n_nodes),
        out_shape=jax.ShapeDtypeStruct((bs, latent), jnp.float32),
        grid=(1,),
        in_specs=in_specs,
        out_specs=pl.BlockSpec((bs, latent), lambda i: (0, 0)),
        compiler_params=pltpu.CompilerParams(dimension_semantics=("arbitrary",)),
    )(*inputs)

    # PyTorch: mix_layer(x.view(bs, -1)).unsqueeze(dim=0)  -> (1, bs, latent)
    return out[None]


# ------------------------- pure-JAX reference --------------------------------
def encoder_reference(x, params):
    def single(xb):
        h = _leaky_relu(xb @ params["w_in"] + params["b_in"], ALPHAS[0])
        N = xb.shape[0]
        for i in range(NUM_MPS):
            D = h.shape[-1]
            src = jnp.broadcast_to(h[:, None, :], (N, N, D))
            dst = jnp.broadcast_to(h[None, :, :], (N, N, D))
            dist = jnp.sum((src - dst) ** 2, axis=-1, keepdims=True)
            e_in = jnp.concatenate([src, dst, dist], axis=-1).reshape(N * N, 2 * D + 1)
            e = _leaky_relu(e_in @ params[f"w_e{i}"] + params[f"b_e{i}"], ALPHAS[i])
            agg = e.reshape(N, N, -1).sum(axis=1)
            h = _leaky_relu(
                jnp.concatenate([agg, h], axis=-1) @ params[f"w_n{i}"] + params[f"b_n{i}"],
                ALPHAS[i])
        h_out = h @ params["w_out"] + params["b_out"]
        return jnp.einsum("nf,nfo->o", h_out, params["w_mix_t"])
    return jax.vmap(single)(x)[None]


# --------------------------- deterministic params ----------------------------
def init_params(key):
    ks = jax.random.split(key, 32)
    k = iter(ks)
    p = {}
    scale = 0.1
    p["w_in"] = scale * jax.random.normal(next(k), (INPUT_NODE_SIZE, NODE_HIDDEN), jnp.float32)
    p["b_in"] = scale * jax.random.normal(next(k), (1, NODE_HIDDEN), jnp.float32)
    d = NODE_HIDDEN
    for i in range(NUM_MPS):
        p[f"w_e{i}"] = scale * jax.random.normal(next(k), (2 * d + 1, EDGE_HIDDEN), jnp.float32)
        p[f"b_e{i}"] = scale * jax.random.normal(next(k), (1, EDGE_HIDDEN), jnp.float32)
        p[f"w_n{i}"] = scale * jax.random.normal(next(k), (EDGE_HIDDEN + d, NODE_HIDDEN), jnp.float32)
        p[f"b_n{i}"] = scale * jax.random.normal(next(k), (1, NODE_HIDDEN), jnp.float32)
        d = NODE_HIDDEN
    p["w_out"] = scale * jax.random.normal(next(k), (d, LATENT_NODE_SIZE), jnp.float32)
    p["b_out"] = scale * jax.random.normal(next(k), (1, LATENT_NODE_SIZE), jnp.float32)
    # nn.Linear(latent*num_nodes, latent, bias=False): weight (L_out, N*L_in)
    w_mix = scale * jax.random.normal(next(k), (LATENT_NODE_SIZE, NUM_NODES * LATENT_NODE_SIZE),
                                      jnp.float32)
    # pre-reshape to (N, L_in, L_out) matching PyTorch x.view(bs, -1) flatten order
    p["w_mix_t"] = jnp.transpose(
        w_mix.reshape(LATENT_NODE_SIZE, NUM_NODES, LATENT_NODE_SIZE), (1, 2, 0))
    return p


# ---------------------------------- main --------------------------------------
if __name__ == "__main__":
    key = jax.random.PRNGKey(0)
    k_params, k_x = jax.random.split(key)
    params = init_params(k_params)
    x = jax.random.normal(k_x, (BATCH, NUM_NODES, INPUT_NODE_SIZE), jnp.float32)

    out = encoder_forward(x, params)
    out = jax.block_until_ready(out)

    assert out.shape == (1, BATCH, LATENT_NODE_SIZE), out.shape

    ref = jax.block_until_ready(encoder_reference(x, params))
    assert jnp.allclose(out, ref, atol=1e-4, rtol=1e-4), (
        f"max abs err = {jnp.max(jnp.abs(out - ref))}")

    print("KERNEL_OK")
</pallas_src>

<mosaic_0001>
module attributes {stable_mosaic.version = 11 : i64} {
  func.func @encoder_kernel(%arg0: i32, %arg1: memref<16x4xf32, #tpu.memory_space<vmem>>, %arg2: memref<4x32xf32, #tpu.memory_space<vmem>>, %arg3: memref<1x32xf32, #tpu.memory_space<vmem>>, %arg4: memref<32x32xf32, #tpu.memory_space<vmem>>, %arg5: memref<32x32xf32, #tpu.memory_space<vmem>>, %arg6: memref<1x32xf32, #tpu.memory_space<vmem>>, %arg7: memref<1x32xf32, #tpu.memory_space<vmem>>, %arg8: memref<32x32xf32, #tpu.memory_space<vmem>>, %arg9: memref<32x32xf32, #tpu.memory_space<vmem>>, %arg10: memref<1x32xf32, #tpu.memory_space<vmem>>, %arg11: memref<32x32xf32, #tpu.memory_space<vmem>>, %arg12: memref<32x32xf32, #tpu.memory_space<vmem>>, %arg13: memref<1x32xf32, #tpu.memory_space<vmem>>, %arg14: memref<1x32xf32, #tpu.memory_space<vmem>>, %arg15: memref<32x32xf32, #tpu.memory_space<vmem>>, %arg16: memref<32x32xf32, #tpu.memory_space<vmem>>, %arg17: memref<1x32xf32, #tpu.memory_space<vmem>>, %arg18: memref<8x32x16xf32, #tpu.memory_space<vmem>>, %arg19: memref<1x16xf32, #tpu.memory_space<vmem>>, %arg20: memref<2x16xf32, #tpu.memory_space<vmem>>) attributes {dimension_semantics = [#tpu.dimension_semantics<arbitrary>], iteration_bounds = array<i64: 1>, scalar_prefetch = 0 : i64, scratch_operands = 0 : i64, tpu.core_type = #tpu.core_type<tc>, window_params = [{pipeline_mode = #tpu.pipeline_mode<synchronous>, transform_indices = @transform_0, window_bounds = array<i64: 16, 4>}, {pipeline_mode = #tpu.pipeline_mode<synchronous>, transform_indices = @transform_1, window_bounds = array<i64: 4, 32>}, {pipeline_mode = #tpu.pipeline_mode<synchronous>, transform_indices = @transform_2, window_bounds = array<i64: 1, 32>}, {pipeline_mode = #tpu.pipeline_mode<synchronous>, transform_indices = @transform_3, window_bounds = array<i64: 32, 32>}, {pipeline_mode = #tpu.pipeline_mode<synchronous>, transform_indices = @transform_4, window_bounds = array<i64: 32, 32>}, {pipeline_mode = #tpu.pipeline_mode<synchronous>, transform_indices = @transform_5, window_bounds = array<i64: 1, 32>}, {pipeline_mode = #tpu.pipeline_mode<synchronous>, transform_indices = @transform_6, window_bounds = array<i64: 1, 32>}, {pipeline_mode = #tpu.pipeline_mode<synchronous>, transform_indices = @transform_7, window_bounds = array<i64: 32, 32>}, {pipeline_mode = #tpu.pipeline_mode<synchronous>, transform_indices = @transform_8, window_bounds = array<i64: 32, 32>}, {pipeline_mode = #tpu.pipeline_mode<synchronous>, transform_indices = @transform_9, window_bounds = array<i64: 1, 32>}, {pipeline_mode = #tpu.pipeline_mode<synchronous>, transform_indices = @transform_10, window_bounds = array<i64: 32, 32>}, {pipeline_mode = #tpu.pipeline_mode<synchronous>, transform_indices = @transform_11, window_bounds = array<i64: 32, 32>}, {pipeline_mode = #tpu.pipeline_mode<synchronous>, transform_indices = @transform_12, window_bounds = array<i64: 1, 32>}, {pipeline_mode = #tpu.pipeline_mode<synchronous>, transform_indices = @transform_13, window_bounds = array<i64: 1, 32>}, {pipeline_mode = #tpu.pipeline_mode<synchronous>, transform_indices = @transform_14, window_bounds = array<i64: 32, 32>}, {pipeline_mode = #tpu.pipeline_mode<synchronous>, transform_indices = @transform_15, window_bounds = array<i64: 32, 32>}, {pipeline_mode = #tpu.pipeline_mode<synchronous>, transform_indices = @transform_16, window_bounds = array<i64: 1, 32>}, {pipeline_mode = #tpu.pipeline_mode<synchronous>, transform_indices = @transform_17, window_bounds = array<i64: 8, 32, 16>}, {pipeline_mode = #tpu.pipeline_mode<synchronous>, transform_indices = @transform_18, window_bounds = array<i64: 1, 16>}, {pipeline_mode = #tpu.pipeline_mode<synchronous>, transform_indices = @transform_19, window_bounds = array<i64: 2, 16>}]} {
    %0 = tpu.iota {dimensions = array<i32: 0>} : vector<8x8xi32>
    %1 = tpu.iota {dimensions = array<i32: 1>} : vector<8x8xi32>
    %2 = arith.cmpi eq, %0, %1 : vector<8x8xi32>
    %cst = arith.constant 1.000000e+00 : f32
    %cst_0 = arith.constant 0.000000e+00 : f32
    %3 = vector.broadcast %cst : f32 to vector<8x8xf32>
    %4 = vector.broadcast %cst_0 : f32 to vector<8x8xf32>
    %5 = arith.select %2, %3, %4 : vector<8x8xi1>, vector<8x8xf32>
    %c0 = arith.constant 0 : index
    %c0_1 = arith.constant 0 : index
    %6 = vector.load %arg1[%c0, %c0_1] : memref<16x4xf32, #tpu.memory_space<vmem>>, vector<16x4xf32>
    %c0_2 = arith.constant 0 : index
    %c0_3 = arith.constant 0 : index
    %7 = vector.load %arg2[%c0_2, %c0_3] : memref<4x32xf32, #tpu.memory_space<vmem>>, vector<4x32xf32>
    %cst_4 = arith.constant dense<0.000000e+00> : vector<16x32xf32>
    %8 = tpu.matmul %6, %7, %cst_4 {dimension_numbers = #tpu.dot_dimension_numbers<[1], [0], [0], [1], [0, 0, 1, 1], [], []>} : vector<16x4xf32>, vector<4x32xf32>, vector<16x32xf32> -> vector<16x32xf32>
    %c0_5 = arith.constant 0 : index
    %c0_6 = arith.constant 0 : index
    %9 = vector.load %arg3[%c0_5, %c0_6] : memref<1x32xf32, #tpu.memory_space<vmem>>, vector<1x32xf32>
    %10 = vector.broadcast %9 : vector<1x32xf32> to vector<16x32xf32>
    %11 = arith.addf %8, %10 : vector<16x32xf32>
    %cst_7 = arith.constant 0.000000e+00 : f32
    %12 = vector.broadcast %cst_7 : f32 to vector<16x32xf32>
    %13 = arith.cmpf oge, %11, %12 : vector<16x32xf32>
    %cst_8 = arith.constant 1.000000e-01 : f32
    %14 = vector.broadcast %cst_8 : f32 to vector<16x32xf32>
    %15 = arith.mulf %14, %11 : vector<16x32xf32>
    %16 = arith.select %13, %11, %15 : vector<16x32xi1>, vector<16x32xf32>
    %17 = vector.extract_strided_slice %16 {offsets = [0, 0], sizes = [8, 32], strides = [1, 1]} : vector<16x32xf32> to vector<8x32xf32>
    %c0_9 = arith.constant 0 : index
    %c0_10 = arith.constant 0 : index
    %18 = vector.load %arg4[%c0_9, %c0_10] : memref<32x32xf32, #tpu.memory_space<vmem>>, vector<32x32xf32>
    %c0_11 = arith.constant 0 : index
    %c0_12 = arith.constant 0 : index
    %19 = vector.load %arg5[%c0_11, %c0_12] : memref<32x32xf32, #tpu.memory_space<vmem>>, vector<32x32xf32>
    %c0_13 = arith.constant 0 : index
    %c0_14 = arith.constant 0 : index
    %20 = vector.load %arg6[%c0_13, %c0_14] : memref<1x32xf32, #tpu.memory_space<vmem>>, vector<1x32xf32>
    %c0_15 = arith.constant 0 : index
    %c0_16 = arith.constant 0 : index
    %21 = vector.load %arg7[%c0_15, %c0_16] : memref<1x32xf32, #tpu.memory_space<vmem>>, vector<1x32xf32>
    %c0_17 = arith.constant 0 : index
    %c0_18 = arith.constant 0 : index
    %22 = vector.load %arg8[%c0_17, %c0_18] : memref<32x32xf32, #tpu.memory_space<vmem>>, vector<32x32xf32>
    %c0_19 = arith.constant 0 : index
    %c0_20 = arith.constant 0 : index
    %23 = vector.load %arg9[%c0_19, %c0_20] : memref<32x32xf32, #tpu.memory_space<vmem>>, vector<32x32xf32>
    %c0_21 = arith.constant 0 : index
    %c0_22 = arith.constant 0 : index
    %24 = vector.load %arg10[%c0_21, %c0_22] : memref<1x32xf32, #tpu.memory_space<vmem>>, vector<1x32xf32>
    %cst_23 = arith.constant dense<0.000000e+00> : vector<8x8xf32>
    %25 = tpu.matmul %17, %17, %cst_23 {dimension_numbers = #tpu.dot_dimension_numbers<[1], [1], [0], [0], [0, 0, 1, 0], [], []>} : vector<8x32xf32>, vector<8x32xf32>, vector<8x8xf32> -> vector<8x8xf32>
    %26 = arith.mulf %25, %5 : vector<8x8xf32>
    %cst_24 = arith.constant dense<0.000000e+00> : vector<8xf32>
    %27 = vector.multi_reduction <add>, %26, %cst_24 [1] : vector<8x8xf32> to vector<8xf32>
    %28 = vector.shape_cast %27 : vector<8xf32> to vector<8x1xf32>
    %cst_25 = arith.constant dense<0.000000e+00> : vector<8xf32>
    %29 = vector.multi_reduction <add>, %26, %cst_25 [0] : vector<8x8xf32> to vector<8xf32>
    %30 = vector.shape_cast %29 : vector<8xf32> to vector<1x8xf32>
    %31 = vector.broadcast %28 : vector<8x1xf32> to vector<8x8xf32>
    %32 = vector.broadcast %30 : vector<1x8xf32> to vector<8x8xf32>
    %33 = arith.addf %31, %32 : vector<8x8xf32>
    %cst_26 = arith.constant 2.000000e+00 : f32
    %34 = vector.broadcast %cst_26 : f32 to vector<8x8xf32>
    %35 = arith.mulf %34, %25 : vector<8x8xf32>
    %36 = arith.subf %33, %35 : vector<8x8xf32>
    %cst_27 = arith.constant dense<0.000000e+00> : vector<8x32xf32>
    %37 = tpu.matmul %17, %18, %cst_27 {dimension_numbers = #tpu.dot_dimension_numbers<[1], [0], [0], [1], [0, 0, 1, 1], [], []>} : vector<8x32xf32>, vector<32x32xf32>, vector<8x32xf32> -> vector<8x32xf32>
    %cst_28 = arith.constant dense<0.000000e+00> : vector<8x32xf32>
    %38 = tpu.matmul %17, %19, %cst_28 {dimension_numbers = #tpu.dot_dimension_numbers<[1], [0], [0], [1], [0, 0, 1, 1], [], []>} : vector<8x32xf32>, vector<32x32xf32>, vector<8x32xf32> -> vector<8x32xf32>
    %39 = vector.shape_cast %37 : vector<8x32xf32> to vector<8x1x32xf32>
    %40 = vector.shape_cast %38 : vector<8x32xf32> to vector<1x8x32xf32>
    %41 = vector.broadcast %39 : vector<8x1x32xf32> to vector<8x8x32xf32>
    %42 = vector.broadcast %40 : vector<1x8x32xf32> to vector<8x8x32xf32>
    %43 = arith.addf %41, %42 : vector<8x8x32xf32>
    %44 = vector.shape_cast %36 : vector<8x8xf32> to vector<8x8x1xf32>
    %45 = vector.shape_cast %20 : vector<1x32xf32> to vector<1x1x32xf32>
    %46 = vector.broadcast %44 : vector<8x8x1xf32> to vector<8x8x32xf32>
    %47 = vector.broadcast %45 : vector<1x1x32xf32> to vector<8x8x32xf32>
    %48 = arith.mulf %46, %47 : vector<8x8x32xf32>
    %49 = arith.addf %43, %48 : vector<8x8x32xf32>
    %50 = vector.shape_cast %21 : vector<1x32xf32> to vector<1x1x32xf32>
    %51 = vector.broadcast %50 : vector<1x1x32xf32> to vector<8x8x32xf32>
    %52 = arith.addf %49, %51 : vector<8x8x32xf32>
    %cst_29 = arith.constant 0.000000e+00 : f32
    %53 = vector.broadcast %cst_29 : f32 to vector<8x8x32xf32>
    %54 = arith.cmpf oge, %52, %53 : vector<8x8x32xf32>
    %cst_30 = arith.constant 1.000000e-01 : f32
    %55 = vector.broadcast %cst_30 : f32 to vector<8x8x32xf32>
    %56 = arith.mulf %55, %52 : vector<8x8x32xf32>
    %57 = arith.select %54, %52, %56 : vector<8x8x32xi1>, vector<8x8x32xf32>
    %cst_31 = arith.constant dense<0.000000e+00> : vector<8x32xf32>
    %58 = vector.multi_reduction <add>, %57, %cst_31 [1] : vector<8x8x32xf32> to vector<8x32xf32>
    %cst_32 = arith.constant dense<0.000000e+00> : vector<8x32xf32>
    %59 = tpu.matmul %58, %22, %cst_32 {dimension_numbers = #tpu.dot_dimension_numbers<[1], [0], [0], [1], [0, 0, 1, 1], [], []>} : vector<8x32xf32>, vector<32x32xf32>, vector<8x32xf32> -> vector<8x32xf32>
    %cst_33 = arith.constant dense<0.000000e+00> : vector<8x32xf32>
    %60 = tpu.matmul %17, %23, %cst_33 {dimension_numbers = #tpu.dot_dimension_numbers<[1], [0], [0], [1], [0, 0, 1, 1], [], []>} : vector<8x32xf32>, vector<32x32xf32>, vector<8x32xf32> -> vector<8x32xf32>
    %61 = arith.addf %59, %60 : vector<8x32xf32>
    %62 = vector.broadcast %24 : vector<1x32xf32> to vector<8x32xf32>
    %63 = arith.addf %61, %62 : vector<8x32xf32>
    %cst_34 = arith.constant 0.000000e+00 : f32
    %64 = vector.broadcast %cst_34 : f32 to vector<8x32xf32>
    %65 = arith.cmpf oge, %63, %64 : vector<8x32xf32>
    %cst_35 = arith.constant 1.000000e-01 : f32
    %66 = vector.broadcast %cst_35 : f32 to vector<8x32xf32>
    %67 = arith.mulf %66, %63 : vector<8x32xf32>
    %68 = arith.select %65, %63, %67 : vector<8x32xi1>, vector<8x32xf32>
    %c0_36 = arith.constant 0 : index
    %c0_37 = arith.constant 0 : index
    %69 = vector.load %arg11[%c0_36, %c0_37] : memref<32x32xf32, #tpu.memory_space<vmem>>, vector<32x32xf32>
    %c0_38 = arith.constant 0 : index
    %c0_39 = arith.constant 0 : index
    %70 = vector.load %arg12[%c0_38, %c0_39] : memref<32x32xf32, #tpu.memory_space<vmem>>, vector<32x32xf32>
    %c0_40 = arith.constant 0 : index
    %c0_41 = arith.constant 0 : index
    %71 = vector.load %arg13[%c0_40, %c0_41] : memref<1x32xf32, #tpu.memory_space<vmem>>, vector<1x32xf32>
    %c0_42 = arith.constant 0 : index
    %c0_43 = arith.constant 0 : index
    %72 = vector.load %arg14[%c0_42, %c0_43] : memref<1x32xf32, #tpu.memory_space<vmem>>, vector<1x32xf32>
    %c0_44 = arith.constant 0 : index
    %c0_45 = arith.constant 0 : index
    %73 = vector.load %arg15[%c0_44, %c0_45] : memref<32x32xf32, #tpu.memory_space<vmem>>, vector<32x32xf32>
    %c0_46 = arith.constant 0 : index
    %c0_47 = arith.constant 0 : index
    %74 = vector.load %arg16[%c0_46, %c0_47] : memref<32x32xf32, #tpu.memory_space<vmem>>, vector<32x32xf32>
    %c0_48 = arith.constant 0 : index
    %c0_49 = arith.constant 0 : index
    %75 = vector.load %arg17[%c0_48, %c0_49] : memref<1x32xf32, #tpu.memory_space<vmem>>, vector<1x32xf32>
    %cst_50 = arith.constant dense<0.000000e+00> : vector<8x8xf32>
    %76 = tpu.matmul %68, %68, %cst_50 {dimension_numbers = #tpu.dot_dimension_numbers<[1], [1], [0], [0], [0, 0, 1, 0], [], []>} : vector<8x32xf32>, vector<8x32xf32>, vector<8x8xf32> -> vector<8x8xf32>
    %77 = arith.mulf %76, %5 : vector<8x8xf32>
    %cst_51 = arith.constant dense<0.000000e+00> : vector<8xf32>
    %78 = vector.multi_reduction <add>, %77, %cst_51 [1] : vector<8x8xf32> to vector<8xf32>
    %79 = vector.shape_cast %78 : vector<8xf32> to vector<8x1xf32>
    %cst_52 = arith.constant dense<0.000000e+00> : vector<8xf32>
    %80 = vector.multi_reduction <add>, %77, %cst_52 [0] : vector<8x8xf32> to vector<8xf32>
    %81 = vector.shape_cast %80 : vector<8xf32> to vector<1x8xf32>
    %82 = vector.broadcast %79 : vector<8x1xf32> to vector<8x8xf32>
    %83 = vector.broadcast %81 : vector<1x8xf32> to vector<8x8xf32>
    %84 = arith.addf %82, %83 : vector<8x8xf32>
    %cst_53 = arith.constant 2.000000e+00 : f32
    %85 = vector.broadcast %cst_53 : f32 to vector<8x8xf32>
    %86 = arith.mulf %85, %76 : vector<8x8xf32>
    %87 = arith.subf %84, %86 : vector<8x8xf32>
    %cst_54 = arith.constant dense<0.000000e+00> : vector<8x32xf32>
    %88 = tpu.matmul %68, %69, %cst_54 {dimension_numbers = #tpu.dot_dimension_numbers<[1], [0], [0], [1], [0, 0, 1, 1], [], []>} : vector<8x32xf32>, vector<32x32xf32>, vector<8x32xf32> -> vector<8x32xf32>
    %cst_55 = arith.constant dense<0.000000e+00> : vector<8x32xf32>
    %89 = tpu.matmul %68, %70, %cst_55 {dimension_numbers = #tpu.dot_dimension_numbers<[1], [0], [0], [1], [0, 0, 1, 1], [], []>} : vector<8x32xf32>, vector<32x32xf32>, vector<8x32xf32> -> vector<8x32xf32>
    %90 = vector.shape_cast %88 : vector<8x32xf32> to vector<8x1x32xf32>
    %91 = vector.shape_cast %89 : vector<8x32xf32> to vector<1x8x32xf32>
    %92 = vector.broadcast %90 : vector<8x1x32xf32> to vector<8x8x32xf32>
    %93 = vector.broadcast %91 : vector<1x8x32xf32> to vector<8x8x32xf32>
    %94 = arith.addf %92, %93 : vector<8x8x32xf32>
    %95 = vector.shape_cast %87 : vector<8x8xf32> to vector<8x8x1xf32>
    %96 = vector.shape_cast %71 : vector<1x32xf32> to vector<1x1x32xf32>
    %97 = vector.broadcast %95 : vector<8x8x1xf32> to vector<8x8x32xf32>
    %98 = vector.broadcast %96 : vector<1x1x32xf32> to vector<8x8x32xf32>
    %99 = arith.mulf %97, %98 : vector<8x8x32xf32>
    %100 = arith.addf %94, %99 : vector<8x8x32xf32>
    %101 = vector.shape_cast %72 : vector<1x32xf32> to vector<1x1x32xf32>
    %102 = vector.broadcast %101 : vector<1x1x32xf32> to vector<8x8x32xf32>
    %103 = arith.addf %100, %102 : vector<8x8x32xf32>
    %cst_56 = arith.constant 0.000000e+00 : f32
    %104 = vector.broadcast %cst_56 : f32 to vector<8x8x32xf32>
    %105 = arith.cmpf oge, %103, %104 : vector<8x8x32xf32>
    %cst_57 = arith.constant 1.000000e-01 : f32
    %106 = vector.broadcast %cst_57 : f32 to vector<8x8x32xf32>
    %107 = arith.mulf %106, %103 : vector<8x8x32xf32>
    %108 = arith.select %105, %103, %107 : vector<8x8x32xi1>, vector<8x8x32xf32>
    %cst_58 = arith.constant dense<0.000000e+00> : vector<8x32xf32>
    %109 = vector.multi_reduction <add>, %108, %cst_58 [1] : vector<8x8x32xf32> to vector<8x32xf32>
    %cst_59 = arith.constant dense<0.000000e+00> : vector<8x32xf32>
    %110 = tpu.matmul %109, %73, %cst_59 {dimension_numbers = #tpu.dot_dimension_numbers<[1], [0], [0], [1], [0, 0, 1, 1], [], []>} : vector<8x32xf32>, vector<32x32xf32>, vector<8x32xf32> -> vector<8x32xf32>
    %cst_60 = arith.constant dense<0.000000e+00> : vector<8x32xf32>
    %111 = tpu.matmul %68, %74, %cst_60 {dimension_numbers = #tpu.dot_dimension_numbers<[1], [0], [0], [1], [0, 0, 1, 1], [], []>} : vector<8x32xf32>, vector<32x32xf32>, vector<8x32xf32> -> vector<8x32xf32>
    %112 = arith.addf %110, %111 : vector<8x32xf32>
    %113 = vector.broadcast %75 : vector<1x32xf32> to vector<8x32xf32>
    %114 = arith.addf %112, %113 : vector<8x32xf32>
    %cst_61 = arith.constant 0.000000e+00 : f32
    %115 = vector.broadcast %cst_61 : f32 to vector<8x32xf32>
    %116 = arith.cmpf oge, %114, %115 : vector<8x32xf32>
    %cst_62 = arith.constant 1.000000e-01 : f32
    %117 = vector.broadcast %cst_62 : f32 to vector<8x32xf32>
    %118 = arith.mulf %117, %114 : vector<8x32xf32>
    %119 = arith.select %116, %114, %118 : vector<8x32xi1>, vector<8x32xf32>
    %120 = vector.shape_cast %119 : vector<8x32xf32> to vector<8x32x1xf32>
    %c0_63 = arith.constant 0 : index
    %c0_64 = arith.constant 0 : index
    %c0_65 = arith.constant 0 : index
    %121 = vector.load %arg18[%c0_63, %c0_64, %c0_65] : memref<8x32x16xf32, #tpu.memory_space<vmem>>, vector<8x32x16xf32>
    %122 = vector.broadcast %120 : vector<8x32x1xf32> to vector<8x32x16xf32>
    %123 = arith.mulf %122, %121 : vector<8x32x16xf32>
    %cst_66 = arith.constant dense<0.000000e+00> : vector<32x16xf32>
    %124 = vector.multi_reduction <add>, %123, %cst_66 [0] : vector<8x32x16xf32> to vector<32x16xf32>
    %cst_67 = arith.constant dense<0.000000e+00> : vector<16xf32>
    %125 = vector.multi_reduction <add>, %124, %cst_67 [0] : vector<32x16xf32> to vector<16xf32>
    %126 = vector.shape_cast %125 : vector<16xf32> to vector<1x16xf32>
    %c0_68 = arith.constant 0 : index
    %c0_69 = arith.constant 0 : index
    %127 = vector.load %arg19[%c0_68, %c0_69] : memref<1x16xf32, #tpu.memory_space<vmem>>, vector<1x16xf32>
    %128 = arith.addf %126, %127 : vector<1x16xf32>
    %129 = vector.extract_strided_slice %16 {offsets = [8, 0], sizes = [8, 32], strides = [1, 1]} : vector<16x32xf32> to vector<8x32xf32>
    %c0_70 = arith.constant 0 : index
    %c0_71 = arith.constant 0 : index
    %130 = vector.load %arg4[%c0_70, %c0_71] : memref<32x32xf32, #tpu.memory_space<vmem>>, vector<32x32xf32>
    %c0_72 = arith.constant 0 : index
    %c0_73 = arith.constant 0 : index
    %131 = vector.load %arg5[%c0_72, %c0_73] : memref<32x32xf32, #tpu.memory_space<vmem>>, vector<32x32xf32>
    %c0_74 = arith.constant 0 : index
    %c0_75 = arith.constant 0 : index
    %132 = vector.load %arg6[%c0_74, %c0_75] : memref<1x32xf32, #tpu.memory_space<vmem>>, vector<1x32xf32>
    %c0_76 = arith.constant 0 : index
    %c0_77 = arith.constant 0 : index
    %133 = vector.load %arg7[%c0_76, %c0_77] : memref<1x32xf32, #tpu.memory_space<vmem>>, vector<1x32xf32>
    %c0_78 = arith.constant 0 : index
    %c0_79 = arith.constant 0 : index
    %134 = vector.load %arg8[%c0_78, %c0_79] : memref<32x32xf32, #tpu.memory_space<vmem>>, vector<32x32xf32>
    %c0_80 = arith.constant 0 : index
    %c0_81 = arith.constant 0 : index
    %135 = vector.load %arg9[%c0_80, %c0_81] : memref<32x32xf32, #tpu.memory_space<vmem>>, vector<32x32xf32>
    %c0_82 = arith.constant 0 : index
    %c0_83 = arith.constant 0 : index
    %136 = vector.load %arg10[%c0_82, %c0_83] : memref<1x32xf32, #tpu.memory_space<vmem>>, vector<1x32xf32>
    %cst_84 = arith.constant dense<0.000000e+00> : vector<8x8xf32>
    %137 = tpu.matmul %129, %129, %cst_84 {dimension_numbers = #tpu.dot_dimension_numbers<[1], [1], [0], [0], [0, 0, 1, 0], [], []>} : vector<8x32xf32>, vector<8x32xf32>, vector<8x8xf32> -> vector<8x8xf32>
    %138 = arith.mulf %137, %5 : vector<8x8xf32>
    %cst_85 = arith.constant dense<0.000000e+00> : vector<8xf32>
    %139 = vector.multi_reduction <add>, %138, %cst_85 [1] : vector<8x8xf32> to vector<8xf32>
    %140 = vector.shape_cast %139 : vector<8xf32> to vector<8x1xf32>
    %cst_86 = arith.constant dense<0.000000e+00> : vector<8xf32>
    %141 = vector.multi_reduction <add>, %138, %cst_86 [0] : vector<8x8xf32> to vector<8xf32>
    %142 = vector.shape_cast %141 : vector<8xf32> to vector<1x8xf32>
    %143 = vector.broadcast %140 : vector<8x1xf32> to vector<8x8xf32>
    %144 = vector.broadcast %142 : vector<1x8xf32> to vector<8x8xf32>
    %145 = arith.addf %143, %144 : vector<8x8xf32>
    %cst_87 = arith.constant 2.000000e+00 : f32
    %146 = vector.broadcast %cst_87 : f32 to vector<8x8xf32>
    %147 = arith.mulf %146, %137 : vector<8x8xf32>
    %148 = arith.subf %145, %147 : vector<8x8xf32>
    %cst_88 = arith.constant dense<0.000000e+00> : vector<8x32xf32>
    %149 = tpu.matmul %129, %130, %cst_88 {dimension_numbers = #tpu.dot_dimension_numbers<[1], [0], [0], [1], [0, 0, 1, 1], [], []>} : vector<8x32xf32>, vector<32x32xf32>, vector<8x32xf32> -> vector<8x32xf32>
    %cst_89 = arith.constant dense<0.000000e+00> : vector<8x32xf32>
    %150 = tpu.matmul %129, %131, %cst_89 {dimension_numbers = #tpu.dot_dimension_numbers<[1], [0], [0], [1], [0, 0, 1, 1], [], []>} : vector<8x32xf32>, vector<32x32xf32>, vector<8x32xf32> -> vector<8x32xf32>
    %151 = vector.shape_cast %149 : vector<8x32xf32> to vector<8x1x32xf32>
    %152 = vector.shape_cast %150 : vector<8x32xf32> to vector<1x8x32xf32>
    %153 = vector.broadcast %151 : vector<8x1x32xf32> to vector<8x8x32xf32>
    %154 = vector.broadcast %152 : vector<1x8x32xf32> to vector<8x8x32xf32>
    %155 = arith.addf %153, %154 : vector<8x8x32xf32>
    %156 = vector.shape_cast %148 : vector<8x8xf32> to vector<8x8x1xf32>
    %157 = vector.shape_cast %132 : vector<1x32xf32> to vector<1x1x32xf32>
    %158 = vector.broadcast %156 : vector<8x8x1xf32> to vector<8x8x32xf32>
    %159 = vector.broadcast %157 : vector<1x1x32xf32> to vector<8x8x32xf32>
    %160 = arith.mulf %158, %159 : vector<8x8x32xf32>
    %161 = arith.addf %155, %160 : vector<8x8x32xf32>
    %162 = vector.shape_cast %133 : vector<1x32xf32> to vector<1x1x32xf32>
    %163 = vector.broadcast %162 : vector<1x1x32xf32> to vector<8x8x32xf32>
    %164 = arith.addf %161, %163 : vector<8x8x32xf32>
    %cst_90 = arith.constant 0.000000e+00 : f32
    %165 = vector.broadcast %cst_90 : f32 to vector<8x8x32xf32>
    %166 = arith.cmpf oge, %164, %165 : vector<8x8x32xf32>
    %cst_91 = arith.constant 1.000000e-01 : f32
    %167 = vector.broadcast %cst_91 : f32 to vector<8x8x32xf32>
    %168 = arith.mulf %167, %164 : vector<8x8x32xf32>
    %169 = arith.select %166, %164, %168 : vector<8x8x32xi1>, vector<8x8x32xf32>
    %cst_92 = arith.constant dense<0.000000e+00> : vector<8x32xf32>
    %170 = vector.multi_reduction <add>, %169, %cst_92 [1] : vector<8x8x32xf32> to vector<8x32xf32>
    %cst_93 = arith.constant dense<0.000000e+00> : vector<8x32xf32>
    %171 = tpu.matmul %170, %134, %cst_93 {dimension_numbers = #tpu.dot_dimension_numbers<[1], [0], [0], [1], [0, 0, 1, 1], [], []>} : vector<8x32xf32>, vector<32x32xf32>, vector<8x32xf32> -> vector<8x32xf32>
    %cst_94 = arith.constant dense<0.000000e+00> : vector<8x32xf32>
    %172 = tpu.matmul %129, %135, %cst_94 {dimension_numbers = #tpu.dot_dimension_numbers<[1], [0], [0], [1], [0, 0, 1, 1], [], []>} : vector<8x32xf32>, vector<32x32xf32>, vector<8x32xf32> -> vector<8x32xf32>
    %173 = arith.addf %171, %172 : vector<8x32xf32>
    %174 = vector.broadcast %136 : vector<1x32xf32> to vector<8x32xf32>
    %175 = arith.addf %173, %174 : vector<8x32xf32>
    %cst_95 = arith.constant 0.000000e+00 : f32
    %176 = vector.broadcast %cst_95 : f32 to vector<8x32xf32>
    %177 = arith.cmpf oge, %175, %176 : vector<8x32xf32>
    %cst_96 = arith.constant 1.000000e-01 : f32
    %178 = vector.broadcast %cst_96 : f32 to vector<8x32xf32>
    %179 = arith.mulf %178, %175 : vector<8x32xf32>
    %180 = arith.select %177, %175, %179 : vector<8x32xi1>, vector<8x32xf32>
    %c0_97 = arith.constant 0 : index
    %c0_98 = arith.constant 0 : index
    %181 = vector.load %arg11[%c0_97, %c0_98] : memref<32x32xf32, #tpu.memory_space<vmem>>, vector<32x32xf32>
    %c0_99 = arith.constant 0 : index
    %c0_100 = arith.constant 0 : index
    %182 = vector.load %arg12[%c0_99, %c0_100] : memref<32x32xf32, #tpu.memory_space<vmem>>, vector<32x32xf32>
    %c0_101 = arith.constant 0 : index
    %c0_102 = arith.constant 0 : index
    %183 = vector.load %arg13[%c0_101, %c0_102] : memref<1x32xf32, #tpu.memory_space<vmem>>, vector<1x32xf32>
    %c0_103 = arith.constant 0 : index
    %c0_104 = arith.constant 0 : index
    %184 = vector.load %arg14[%c0_103, %c0_104] : memref<1x32xf32, #tpu.memory_space<vmem>>, vector<1x32xf32>
    %c0_105 = arith.constant 0 : index
    %c0_106 = arith.constant 0 : index
    %185 = vector.load %arg15[%c0_105, %c0_106] : memref<32x32xf32, #tpu.memory_space<vmem>>, vector<32x32xf32>
    %c0_107 = arith.constant 0 : index
    %c0_108 = arith.constant 0 : index
    %186 = vector.load %arg16[%c0_107, %c0_108] : memref<32x32xf32, #tpu.memory_space<vmem>>, vector<32x32xf32>
    %c0_109 = arith.constant 0 : index
    %c0_110 = arith.constant 0 : index
    %187 = vector.load %arg17[%c0_109, %c0_110] : memref<1x32xf32, #tpu.memory_space<vmem>>, vector<1x32xf32>
    %cst_111 = arith.constant dense<0.000000e+00> : vector<8x8xf32>
    %188 = tpu.matmul %180, %180, %cst_111 {dimension_numbers = #tpu.dot_dimension_numbers<[1], [1], [0], [0], [0, 0, 1, 0], [], []>} : vector<8x32xf32>, vector<8x32xf32>, vector<8x8xf32> -> vector<8x8xf32>
    %189 = arith.mulf %188, %5 : vector<8x8xf32>
    %cst_112 = arith.constant dense<0.000000e+00> : vector<8xf32>
    %190 = vector.multi_reduction <add>, %189, %cst_112 [1] : vector<8x8xf32> to vector<8xf32>
    %191 = vector.shape_cast %190 : vector<8xf32> to vector<8x1xf32>
    %cst_113 = arith.constant dense<0.000000e+00> : vector<8xf32>
    %192 = vector.multi_reduction <add>, %189, %cst_113 [0] : vector<8x8xf32> to vector<8xf32>
    %193 = vector.shape_cast %192 : vector<8xf32> to vector<1x8xf32>
    %194 = vector.broadcast %191 : vector<8x1xf32> to vector<8x8xf32>
    %195 = vector.broadcast %193 : vector<1x8xf32> to vector<8x8xf32>
    %196 = arith.addf %194, %195 : vector<8x8xf32>
    %cst_114 = arith.constant 2.000000e+00 : f32
    %197 = vector.broadcast %cst_114 : f32 to vector<8x8xf32>
    %198 = arith.mulf %197, %188 : vector<8x8xf32>
    %199 = arith.subf %196, %198 : vector<8x8xf32>
    %cst_115 = arith.constant dense<0.000000e+00> : vector<8x32xf32>
    %200 = tpu.matmul %180, %181, %cst_115 {dimension_numbers = #tpu.dot_dimension_numbers<[1], [0], [0], [1], [0, 0, 1, 1], [], []>} : vector<8x32xf32>, vector<32x32xf32>, vector<8x32xf32> -> vector<8x32xf32>
    %cst_116 = arith.constant dense<0.000000e+00> : vector<8x32xf32>
    %201 = tpu.matmul %180, %182, %cst_116 {dimension_numbers = #tpu.dot_dimension_numbers<[1], [0], [0], [1], [0, 0, 1, 1], [], []>} : vector<8x32xf32>, vector<32x32xf32>, vector<8x32xf32> -> vector<8x32xf32>
    %202 = vector.shape_cast %200 : vector<8x32xf32> to vector<8x1x32xf32>
    %203 = vector.shape_cast %201 : vector<8x32xf32> to vector<1x8x32xf32>
    %204 = vector.broadcast %202 : vector<8x1x32xf32> to vector<8x8x32xf32>
    %205 = vector.broadcast %203 : vector<1x8x32xf32> to vector<8x8x32xf32>
    %206 = arith.addf %204, %205 : vector<8x8x32xf32>
    %207 = vector.shape_cast %199 : vector<8x8xf32> to vector<8x8x1xf32>
    %208 = vector.shape_cast %183 : vector<1x32xf32> to vector<1x1x32xf32>
    %209 = vector.broadcast %207 : vector<8x8x1xf32> to vector<8x8x32xf32>
    %210 = vector.broadcast %208 : vector<1x1x32xf32> to vector<8x8x32xf32>
    %211 = arith.mulf %209, %210 : vector<8x8x32xf32>
    %212 = arith.addf %206, %211 : vector<8x8x32xf32>
    %213 = vector.shape_cast %184 : vector<1x32xf32> to vector<1x1x32xf32>
    %214 = vector.broadcast %213 : vector<1x1x32xf32> to vector<8x8x32xf32>
    %215 = arith.addf %212, %214 : vector<8x8x32xf32>
    %cst_117 = arith.constant 0.000000e+00 : f32
    %216 = vector.broadcast %cst_117 : f32 to vector<8x8x32xf32>
    %217 = arith.cmpf oge, %215, %216 : vector<8x8x32xf32>
    %cst_118 = arith.constant 1.000000e-01 : f32
    %218 = vector.broadcast %cst_118 : f32 to vector<8x8x32xf32>
    %219 = arith.mulf %218, %215 : vector<8x8x32xf32>
    %220 = arith.select %217, %215, %219 : vector<8x8x32xi1>, vector<8x8x32xf32>
    %cst_119 = arith.constant dense<0.000000e+00> : vector<8x32xf32>
    %221 = vector.multi_reduction <add>, %220, %cst_119 [1] : vector<8x8x32xf32> to vector<8x32xf32>
    %cst_120 = arith.constant dense<0.000000e+00> : vector<8x32xf32>
    %222 = tpu.matmul %221, %185, %cst_120 {dimension_numbers = #tpu.dot_dimension_numbers<[1], [0], [0], [1], [0, 0, 1, 1], [], []>} : vector<8x32xf32>, vector<32x32xf32>, vector<8x32xf32> -> vector<8x32xf32>
    %cst_121 = arith.constant dense<0.000000e+00> : vector<8x32xf32>
    %223 = tpu.matmul %180, %186, %cst_121 {dimension_numbers = #tpu.dot_dimension_numbers<[1], [0], [0], [1], [0, 0, 1, 1], [], []>} : vector<8x32xf32>, vector<32x32xf32>, vector<8x32xf32> -> vector<8x32xf32>
    %224 = arith.addf %222, %223 : vector<8x32xf32>
    %225 = vector.broadcast %187 : vector<1x32xf32> to vector<8x32xf32>
    %226 = arith.addf %224, %225 : vector<8x32xf32>
    %cst_122 = arith.constant 0.000000e+00 : f32
    %227 = vector.broadcast %cst_122 : f32 to vector<8x32xf32>
    %228 = arith.cmpf oge, %226, %227 : vector<8x32xf32>
    %cst_123 = arith.constant 1.000000e-01 : f32
    %229 = vector.broadcast %cst_123 : f32 to vector<8x32xf32>
    %230 = arith.mulf %229, %226 : vector<8x32xf32>
    %231 = arith.select %228, %226, %230 : vector<8x32xi1>, vector<8x32xf32>
    %232 = vector.shape_cast %231 : vector<8x32xf32> to vector<8x32x1xf32>
    %c0_124 = arith.constant 0 : index
    %c0_125 = arith.constant 0 : index
    %c0_126 = arith.constant 0 : index
    %233 = vector.load %arg18[%c0_124, %c0_125, %c0_126] : memref<8x32x16xf32, #tpu.memory_space<vmem>>, vector<8x32x16xf32>
    %234 = vector.broadcast %232 : vector<8x32x1xf32> to vector<8x32x16xf32>
    %235 = arith.mulf %234, %233 : vector<8x32x16xf32>
    %cst_127 = arith.constant dense<0.000000e+00> : vector<32x16xf32>
    %236 = vector.multi_reduction <add>, %235, %cst_127 [0] : vector<8x32x16xf32> to vector<32x16xf32>
    %cst_128 = arith.constant dense<0.000000e+00> : vector<16xf32>
    %237 = vector.multi_reduction <add>, %236, %cst_128 [0] : vector<32x16xf32> to vector<16xf32>
    %238 = vector.shape_cast %237 : vector<16xf32> to vector<1x16xf32>
    %c0_129 = arith.constant 0 : index
    %c0_130 = arith.constant 0 : index
    %239 = vector.load %arg19[%c0_129, %c0_130] : memref<1x16xf32, #tpu.memory_space<vmem>>, vector<1x16xf32>
    %240 = arith.addf %238, %239 : vector<1x16xf32>
    %241 = tpu.concatenate %128, %240 in 0 : vector<1x16xf32>, vector<1x16xf32> -> vector<2x16xf32>
    %c0_131 = arith.constant 0 : index
    %c0_132 = arith.constant 0 : index
    %242 = vector.load %arg20[%c0_131, %c0_132] : memref<2x16xf32, #tpu.memory_space<vmem>>, vector<2x16xf32>
    tpu.vector_store %arg20[%c0_131, %c0_132], %241 {strides = array<i32>} : memref<2x16xf32, #tpu.memory_space<vmem>>, vector<2x16xf32>,
    return
  }
  func.func @transform_0(%arg0: i32) -> (i32, i32) {
    %c0_i32 = arith.constant 0 : i32
    %c0_i32_0 = arith.constant 0 : i32
    %c0_i32_1 = arith.constant 0 : i32
    return %c0_i32, %c0_i32_0 : i32, i32
  }
  func.func @transform_1(%arg0: i32) -> (i32, i32) {
    %c0_i32 = arith.constant 0 : i32
    %c0_i32_0 = arith.constant 0 : i32
    %c0_i32_1 = arith.constant 0 : i32
    return %c0_i32, %c0_i32_0 : i32, i32
  }
  func.func @transform_2(%arg0: i32) -> (i32, i32) {
    %c0_i32 = arith.constant 0 : i32
    %c0_i32_0 = arith.constant 0 : i32
    %c0_i32_1 = arith.constant 0 : i32
    return %c0_i32, %c0_i32_0 : i32, i32
  }
  func.func @transform_3(%arg0: i32) -> (i32, i32) {
    %c0_i32 = arith.constant 0 : i32
    %c0_i32_0 = arith.constant 0 : i32
    %c0_i32_1 = arith.constant 0 : i32
    return %c0_i32, %c0_i32_0 : i32, i32
  }
  func.func @transform_4(%arg0: i32) -> (i32, i32) {
    %c0_i32 = arith.constant 0 : i32
    %c0_i32_0 = arith.constant 0 : i32
    %c0_i32_1 = arith.constant 0 : i32
    return %c0_i32, %c0_i32_0 : i32, i32
  }
  func.func @transform_5(%arg0: i32) -> (i32, i32) {
    %c0_i32 = arith.constant 0 : i32
    %c0_i32_0 = arith.constant 0 : i32
    %c0_i32_1 = arith.constant 0 : i32
    return %c0_i32, %c0_i32_0 : i32, i32
  }
  func.func @transform_6(%arg0: i32) -> (i32, i32) {
    %c0_i32 = arith.constant 0 : i32
    %c0_i32_0 = arith.constant 0 : i32
    %c0_i32_1 = arith.constant 0 : i32
    return %c0_i32, %c0_i32_0 : i32, i32
  }
  func.func @transform_7(%arg0: i32) -> (i32, i32) {
    %c0_i32 = arith.constant 0 : i32
    %c0_i32_0 = arith.constant 0 : i32
    %c0_i32_1 = arith.constant 0 : i32
    return %c0_i32, %c0_i32_0 : i32, i32
  }
  func.func @transform_8(%arg0: i32) -> (i32, i32) {
    %c0_i32 = arith.constant 0 : i32
    %c0_i32_0 = arith.constant 0 : i32
    %c0_i32_1 = arith.constant 0 : i32
    return %c0_i32, %c0_i32_0 : i32, i32
  }
  func.func @transform_9(%arg0: i32) -> (i32, i32) {
    %c0_i32 = arith.constant 0 : i32
    %c0_i32_0 = arith.constant 0 : i32
    %c0_i32_1 = arith.constant 0 : i32
    return %c0_i32, %c0_i32_0 : i32, i32
  }
  func.func @transform_10(%arg0: i32) -> (i32, i32) {
    %c0_i32 = arith.constant 0 : i32
    %c0_i32_0 = arith.constant 0 : i32
    %c0_i32_1 = arith.constant 0 : i32
    return %c0_i32, %c0_i32_0 : i32, i32
  }
  func.func @transform_11(%arg0: i32) -> (i32, i32) {
    %c0_i32 = arith.constant 0 : i32
    %c0_i32_0 = arith.constant 0 : i32
    %c0_i32_1 = arith.constant 0 : i32
    return %c0_i32, %c0_i32_0 : i32, i32
  }
  func.func @transform_12(%arg0: i32) -> (i32, i32) {
    %c0_i32 = arith.constant 0 : i32
    %c0_i32_0 = arith.constant 0 : i32
    %c0_i32_1 = arith.constant 0 : i32
    return %c0_i32, %c0_i32_0 : i32, i32
  }
  func.func @transform_13(%arg0: i32) -> (i32, i32) {
    %c0_i32 = arith.constant 0 : i32
    %c0_i32_0 = arith.constant 0 : i32
    %c0_i32_1 = arith.constant 0 : i32
    return %c0_i32, %c0_i32_0 : i32, i32
  }
  func.func @transform_14(%arg0: i32) -> (i32, i32) {
    %c0_i32 = arith.constant 0 : i32
    %c0_i32_0 = arith.constant 0 : i32
    %c0_i32_1 = arith.constant 0 : i32
    return %c0_i32, %c0_i32_0 : i32, i32
  }
  func.func @transform_15(%arg0: i32) -> (i32, i32) {
    %c0_i32 = arith.constant 0 : i32
    %c0_i32_0 = arith.constant 0 : i32
    %c0_i32_1 = arith.constant 0 : i32
    return %c0_i32, %c0_i32_0 : i32, i32
  }
  func.func @transform_16(%arg0: i32) -> (i32, i32) {
    %c0_i32 = arith.constant 0 : i32
    %c0_i32_0 = arith.constant 0 : i32
    %c0_i32_1 = arith.constant 0 : i32
    return %c0_i32, %c0_i32_0 : i32, i32
  }
  func.func @transform_17(%arg0: i32) -> (i32, i32, i32) {
    %c0_i32 = arith.constant 0 : i32
    %c0_i32_0 = arith.constant 0 : i32
    %c0_i32_1 = arith.constant 0 : i32
    %c0_i32_2 = arith.constant 0 : i32
    return %c0_i32, %c0_i32_0, %c0_i32_1 : i32, i32, i32
  }
  func.func @transform_18(%arg0: i32) -> (i32, i32) {
    %c0_i32 = arith.constant 0 : i32
    %c0_i32_0 = arith.constant 0 : i32
    %c0_i32_1 = arith.constant 0 : i32
    return %c0_i32, %c0_i32_0 : i32, i32
  }
  func.func @transform_19(%arg0: i32) -> (i32, i32) {
    %c0_i32 = arith.constant 0 : i32
    %c0_i32_0 = arith.constant 0 : i32
    %c0_i32_1 = arith.constant 0 : i32
    return %c0_i32, %c0_i32_0 : i32, i32
  }
}

</mosaic_0001>

<llo_original>
// kernel: tpu_custom_call.1
$region0: #{tpu_custom_call.1}
  #allocation0 [shape = 'u32[]', space=smem, size = 0x4, offset = 0x4, fixed_abs, tag = 'smem constant byte address 0x4 - core index']
  #allocation1 [shape = 'u32[144,128]{1,0:T(1,128)}', space=vmem, size = 0x12000, scoped, tag = 'internal scratch']
  %s0 = inlined_call_operand.vmem [shape: f32[16,4], index: 0, kind: input, shape index: {}]
  %s1 = inlined_call_operand.vmem [shape: f32[4,32], index: 1, kind: input, shape index: {}]
  %s2 = inlined_call_operand.vmem [shape: f32[1,32], index: 2, kind: input, shape index: {}]
  %s3 = inlined_call_operand.vmem [shape: f32[32,32], index: 3, kind: input, shape index: {}]
  %s4 = inlined_call_operand.vmem [shape: f32[32,32], index: 4, kind: input, shape index: {}]
  %s5 = inlined_call_operand.vmem [shape: f32[1,32], index: 5, kind: input, shape index: {}]
  %s6 = inlined_call_operand.vmem [shape: f32[1,32], index: 6, kind: input, shape index: {}]
  %s7 = inlined_call_operand.vmem [shape: f32[32,32], index: 7, kind: input, shape index: {}]
  %s8 = inlined_call_operand.vmem [shape: f32[32,32], index: 8, kind: input, shape index: {}]
  %s9 = inlined_call_operand.vmem [shape: f32[1,32], index: 9, kind: input, shape index: {}]
  %s10 = inlined_call_operand.vmem [shape: f32[32,32], index: 10, kind: input, shape index: {}]
  %s11 = inlined_call_operand.vmem [shape: f32[32,32], index: 11, kind: input, shape index: {}]
  %s12 = inlined_call_operand.vmem [shape: f32[1,32], index: 12, kind: input, shape index: {}]
  %s13 = inlined_call_operand.vmem [shape: f32[1,32], index: 13, kind: input, shape index: {}]
  %s14 = inlined_call_operand.vmem [shape: f32[32,32], index: 14, kind: input, shape index: {}]
  %s15 = inlined_call_operand.vmem [shape: f32[32,32], index: 15, kind: input, shape index: {}]
  %s16 = inlined_call_operand.vmem [shape: f32[1,32], index: 16, kind: input, shape index: {}]
  %s17 = inlined_call_operand.vmem [shape: f32[8,32,16], index: 17, kind: input, shape index: {}]
  %s18 = inlined_call_operand.vmem [shape: f32[1,16], index: 18, kind: input, shape index: {}]
  %s19 = inlined_call_operand.hbm [shape: f32[2,16], index: 19, kind: output, shape index: {}]
  %s20 = sld [smem:[#allocation0]]
  $region86: #{tpu_custom_call.1} parent=0
    _
  %s22 = ssub.s32 1, %s20
  %s23 = scalar_select 0, %s22, %s20
  $region1: #{tpu_custom_call.1} parent=0
    #allocation2 [shape = 'u8[1024]{0}', space=vmem, size = 0x400, scoped, tag = 'output window, operand 0, single buffered']
    #allocation3 [shape = 's32[1]{0}', space=sflag, size = 0x4, scoped, tag = 'scoped memory for tpu_custom_call.1']
    %24 = vsyncpa [#allocation3], 0
    // Predicated region
    $region2: #{tpu_custom_call.1} parent=1 // pred_check
      _
    $region3: #{tpu_custom_call.1} parent=1 // pred_check_branch
      %26 = sbr.rel (0) target = $region5
    $region4: #{tpu_custom_call.1} parent=1 // pred_region
      _
    $region5: #{tpu_custom_call.1} parent=1 // pred_fallthru
      _
    // Predicated region
    $region6: #{tpu_custom_call.1} parent=1 // pred_check
      _
    $region7: #{tpu_custom_call.1} parent=1 // pred_check_branch
      %28 = sbr.rel (0) target = $region9
    $region8: #{tpu_custom_call.1} parent=1 // pred_region
      _
    $region9: #{tpu_custom_call.1} parent=1 // pred_fallthru
      _
    // Predicated region
    $region10: #{tpu_custom_call.1} parent=1 // pred_check
      _
    $region11: #{tpu_custom_call.1} parent=1 // pred_check_branch
      %30 = sbr.rel (0) target = $region13
    $region12: #{tpu_custom_call.1} parent=1 // pred_region
      _
    $region13: #{tpu_custom_call.1} parent=1 // pred_fallthru
      _
    // Predicated region
    $region14: #{tpu_custom_call.1} parent=1 // pred_check
      _
    $region15: #{tpu_custom_call.1} parent=1 // pred_check_branch
      %32 = sbr.rel (0) target = $region17
    $region16: #{tpu_custom_call.1} parent=1 // pred_region
      _
    $region17: #{tpu_custom_call.1} parent=1 // pred_fallthru
      _
    // Predicated region
    $region18: #{tpu_custom_call.1} parent=1 // pred_check
      _
    $region19: #{tpu_custom_call.1} parent=1 // pred_check_branch
      %34 = sbr.rel (0) target = $region21
    $region20: #{tpu_custom_call.1} parent=1 // pred_region
      _
    $region21: #{tpu_custom_call.1} parent=1 // pred_fallthru
      _
    // Predicated region
    $region22: #{tpu_custom_call.1} parent=1 // pred_check
      _
    $region23: #{tpu_custom_call.1} parent=1 // pred_check_branch
      %36 = sbr.rel (0) target = $region25
    $region24: #{tpu_custom_call.1} parent=1 // pred_region
      _
    $region25: #{tpu_custom_call.1} parent=1 // pred_fallthru
      _
    // Predicated region
    $region26: #{tpu_custom_call.1} parent=1 // pred_check
      _
    $region27: #{tpu_custom_call.1} parent=1 // pred_check_branch
      %38 = sbr.rel (0) target = $region29
    $region28: #{tpu_custom_call.1} parent=1 // pred_region
      _
    $region29: #{tpu_custom_call.1} parent=1 // pred_fallthru
      _
    // Predicated region
    $region30: #{tpu_custom_call.1} parent=1 // pred_check
      _
    $region31: #{tpu_custom_call.1} parent=1 // pred_check_branch
      %40 = sbr.rel (0) target = $region33
    $region32: #{tpu_custom_call.1} parent=1 // pred_region
      _
    $region33: #{tpu_custom_call.1} parent=1 // pred_fallthru
      _
    // Predicated region
    $region34: #{tpu_custom_call.1} parent=1 // pred_check
      _
    $region35: #{tpu_custom_call.1} parent=1 // pred_check_branch
      %42 = sbr.rel (0) target = $region37
    $region36: #{tpu_custom_call.1} parent=1 // pred_region
      _
    $region37: #{tpu_custom_call.1} parent=1 // pred_fallthru
      _
    // Predicated region
    $region38: #{tpu_custom_call.1} parent=1 // pred_check
      _
    $region39: #{tpu_custom_call.1} parent=1 // pred_check_branch
      %44 = sbr.rel (0) target = $region41
    $region40: #{tpu_custom_call.1} parent=1 // pred_region
      _
    $region41: #{tpu_custom_call.1} parent=1 // pred_fallthru
      _
    // Predicated region
    $region42: #{tpu_custom_call.1} parent=1 // pred_check
      _
    $region43: #{tpu_custom_call.1} parent=1 // pred_check_branch
      %46 = sbr.rel (0) target = $region45
    $region44: #{tpu_custom_call.1} parent=1 // pred_region
      _
    $region45: #{tpu_custom_call.1} parent=1 // pred_fallthru
      _
    // Predicated region
    $region46: #{tpu_custom_call.1} parent=1 // pred_check
      _
    $region47: #{tpu_custom_call.1} parent=1 // pred_check_branch
      %48 = sbr.rel (0) target = $region49
    $region48: #{tpu_custom_call.1} parent=1 // pred_region
      _
    $region49: #{tpu_custom_call.1} parent=1 // pred_fallthru
      _
    // Predicated region
    $region50: #{tpu_custom_call.1} parent=1 // pred_check
      _
    $region51: #{tpu_custom_call.1} parent=1 // pred_check_branch
      %50 = sbr.rel (0) target = $region53
    $region52: #{tpu_custom_call.1} parent=1 // pred_region
      _
    $region53: #{tpu_custom_call.1} parent=1 // pred_fallthru
      _
    // Predicated region
    $region54: #{tpu_custom_call.1} parent=1 // pred_check
      _
    $region55: #{tpu_custom_call.1} parent=1 // pred_check_branch
      %52 = sbr.rel (0) target = $region57
    $region56: #{tpu_custom_call.1} parent=1 // pred_region
      _
    $region57: #{tpu_custom_call.1} parent=1 // pred_fallthru
      _
    // Predicated region
    $region58: #{tpu_custom_call.1} parent=1 // pred_check
      _
    $region59: #{tpu_custom_call.1} parent=1 // pred_check_branch
      %54 = sbr.rel (0) target = $region61
    $region60: #{tpu_custom_call.1} parent=1 // pred_region
      _
    $region61: #{tpu_custom_call.1} parent=1 // pred_fallthru
      _
    // Predicated region
    $region62: #{tpu_custom_call.1} parent=1 // pred_check
      _
    $region63: #{tpu_custom_call.1} parent=1 // pred_check_branch
      %56 = sbr.rel (0) target = $region65
    $region64: #{tpu_custom_call.1} parent=1 // pred_region
      _
    $region65: #{tpu_custom_call.1} parent=1 // pred_fallthru
      _
    // Predicated region
    $region66: #{tpu_custom_call.1} parent=1 // pred_check
      _
    $region67: #{tpu_custom_call.1} parent=1 // pred_check_branch
      %58 = sbr.rel (0) target = $region69
    $region68: #{tpu_custom_call.1} parent=1 // pred_region
      _
    $region69: #{tpu_custom_call.1} parent=1 // pred_fallthru
      _
    // Predicated region
    $region70: #{tpu_custom_call.1} parent=1 // pred_check
      _
    $region71: #{tpu_custom_call.1} parent=1 // pred_check_branch
      %60 = sbr.rel (0) target = $region73
    $region72: #{tpu_custom_call.1} parent=1 // pred_region
      _
    $region73: #{tpu_custom_call.1} parent=1 // pred_fallthru
      _
    // Predicated region
    $region74: #{tpu_custom_call.1} parent=1 // pred_check
      _
    $region75: #{tpu_custom_call.1} parent=1 // pred_check_branch
      %62 = sbr.rel (0) target = $region77
    $region76: #{tpu_custom_call.1} parent=1 // pred_region
      _
    $region77: #{tpu_custom_call.1} parent=1 // pred_fallthru
      _
    %v63 = vlaneseq
    %v64 = vshrl.u32 %v63, 7
    %v65 = vlaneseq
    %v66 = vand.u32 %v65, 127
    %vm67 = vcmp.eq.s32.totalorder %v64, %v66
    %v68 = vsel %vm67, 1.0, 0.0
    %v69 = vld [vmem:[%s0] sm:$0xff]
    %v70 = vld [vmem:[%s0 + $0x8] sm:$0xff]
    %v71 = vld [vmem:[%s1] sm:$0xf]
    %v72 = vld [vmem:[%s2] sm:$0x1]
    %v74 = vlaneseq
    %v75 = vshrl.u32 %v74, 7
    %v76 = vsub.s32 0, %v75
    %v77 = vrot.slane %v72, %v76
    %vm79 = vcmask 31744
    %v81 = vsel %vm79, %v69, 0
    %v84 = vsel %vm79, %v70, 0
    %vm86 = vcmask 1043456
    %v88 = vsel %vm86, %v71, 0
    %90 = vmatprep.subr.mxu0 0.0
    %91 = vmatpush1.msra.mxu0 0.0
    %92 = vmatprep.subr.mxu0 0.0
    %93 = vmatpush1.msra.mxu0 0.0
    %94 = vmatprep.subr.mxu0 0.0
    %95 = vmatpush1.msra.mxu0 0.0
    %96 = vmatprep.subr.mxu0 0.0
    %97 = vmatpush1.msra.mxu0 0.0
    %98 = vmatprep.subr.mxu0 0.0
    %99 = vmatpush1.msra.mxu0 0.0
    %100 = vmatprep.subr.mxu0 0.0
    %101 = vmatpush1.msra.mxu0 0.0
    %102 = vmatprep.subr.mxu0 0.0
    %103 = vmatpush1.msra.mxu0 0.0
    %104 = vmatprep.subr.mxu0 0.0
    %105 = vmatpush1.msra.mxu0 0.0
    %106 = vmatprep.subr.mxu0 0.0
    %107 = vmatpush1.msra.mxu0 0.0
    %108 = vmatprep.subr.mxu0 0.0
    %109 = vmatpush1.msra.mxu0 0.0
    %110 = vmatprep.subr.mxu0 0.0
    %111 = vmatpush1.msra.mxu0 0.0
    %112 = vmatprep.subr.mxu0 0.0
    %113 = vmatpush1.msra.mxu0 0.0
    %114 = vmatprep.subr.mxu0 0.0
    %115 = vmatpush1.msra.mxu0 0.0
    %116 = vmatprep.subr.mxu0 0.0
    %117 = vmatpush1.msra.mxu0 0.0
    %118 = vmatprep.subr.mxu0 0.0
    %119 = vmatpush1.msra.mxu0 0.0
    %120 = vmatprep.subr.mxu0 0.0
    %121 = vmatpush1.msra.mxu0 %v88
    %122 = vmatprep.subr.mxu0 0.0
    %123 = vmatpush2.msra.mxu0 0.0
    %124 = vmatprep.subr.mxu0 0.0
    %125 = vmatpush2.msra.mxu0 0.0
    %126 = vmatprep.subr.mxu0 0.0
    %127 = vmatpush2.msra.mxu0 0.0
    %128 = vmatprep.subr.mxu0 0.0
    %129 = vmatpush2.msra.mxu0 0.0
    %130 = vmatprep.subr.mxu0 0.0
    %131 = vmatpush2.msra.mxu0 0.0
    %132 = vmatprep.subr.mxu0 0.0
    %133 = vmatpush2.msra.mxu0 0.0
    %134 = vmatprep.subr.mxu0 0.0
    %135 = vmatpush2.msra.mxu0 0.0
    %136 = vmatprep.subr.mxu0 0.0
    %137 = vmatpush2.msra.mxu0 0.0
    %138 = vmatprep.subr.mxu0 0.0
    %139 = vmatpush2.msra.mxu0 0.0
    %140 = vmatprep.subr.mxu0 0.0
    %141 = vmatpush2.msra.mxu0 0.0
    %142 = vmatprep.subr.mxu0 0.0
    %143 = vmatpush2.msra.mxu0 0.0
    %144 = vmatprep.subr.mxu0 0.0
    %145 = vmatpush2.msra.mxu0 0.0
    %146 = vmatprep.subr.mxu0 0.0
    %147 = vmatpush2.msra.mxu0 0.0
    %148 = vmatprep.subr.mxu0 0.0
    %149 = vmatpush2.msra.mxu0 0.0
    %150 = vmatprep.subr.mxu0 0.0
    %151 = vmatpush2.msra.mxu0 0.0
    %152 = vmatprep.subr.mxu0 0.0
    %153 = vmatpush2.msra.mxu0 0.0
    %154 = vmatprep.mubr.f32.mxu0 0.0
    %155 = vmatmul.mubr.f32.gmra.mxu0 %v81
    %v156 = vpop.f32.mrf.mxu0
    %v157 = vadd.f32 %v77, %v156
    %v158 = vpop.f32.mrf.mxu0
    %159 = vmatprep.mubr.f32.mxu0 0.0
    %160 = vmatmul.mubr.f32.gmra.mxu0 %v84
    %v161 = vpop.f32.mrf.mxu0
    %v162 = vadd.f32 %v77, %v161
    %v163 = vpop.f32.mrf.mxu0
    %164 = vdwg.mxu0
    %vm165 = vcmp.ge.f32.partialorder %v157, 0.0
    %vm166 = vcmp.ge.f32.partialorder %v162, 0.0
    %v167 = vmul.f32 %v157, 0.1
    %v168 = vmul.f32 %v162, 0.1
    %v169 = vsel %vm165, %v157, %v167
    %v170 = vsel %vm166, %v162, %v168
    %v171 = vld [vmem:[%s3] sm:$0xff]
    %v172 = vld [vmem:[%s3 + $0x8] sm:$0xff]
    %v173 = vld [vmem:[%s3 + $0x10] sm:$0xff]
    %v174 = vld [vmem:[%s3 + $0x18] sm:$0xff]
    %v175 = vld [vmem:[%s4] sm:$0xff]
    %v176 = vld [vmem:[%s4 + $0x8] sm:$0xff]
    %v177 = vld [vmem:[%s4 + $0x10] sm:$0xff]
    %v178 = vld [vmem:[%s4 + $0x18] sm:$0xff]
    %v179 = vld [vmem:[%s5] sm:$0x1]
    %v180 = vld [vmem:[%s6] sm:$0x1]
    %v181 = vld [vmem:[%s7] sm:$0xff]
    %v182 = vld [vmem:[%s7 + $0x8] sm:$0xff]
    %v183 = vld [vmem:[%s7 + $0x10] sm:$0xff]
    %v184 = vld [vmem:[%s7 + $0x18] sm:$0xff]
    %v185 = vld [vmem:[%s8] sm:$0xff]
    %v186 = vld [vmem:[%s8 + $0x8] sm:$0xff]
    %v187 = vld [vmem:[%s8 + $0x10] sm:$0xff]
    %v188 = vld [vmem:[%s8 + $0x18] sm:$0xff]
    %v189 = vld [vmem:[%s9] sm:$0x1]
    %vm190 = vcmask 261120
    %v192 = vsel %vm190, %v169, 0
    %194 = vmatprep.subr.mxu0 0.0
    %195 = vmatpush1.xpose.msra.mxu0 0.0
    %196 = vmatprep.subr.mxu0 0.0
    %197 = vmatpush1.xpose.msra.mxu0 0.0
    %198 = vmatprep.subr.mxu0 0.0
    %199 = vmatpush1.xpose.msra.mxu0 0.0
    %200 = vmatprep.subr.mxu0 0.0
    %201 = vmatpush1.xpose.msra.mxu0 0.0
    %202 = vmatprep.subr.mxu0 0.0
    %203 = vmatpush1.xpose.msra.mxu0 0.0
    %204 = vmatprep.subr.mxu0 0.0
    %205 = vmatpush1.xpose.msra.mxu0 0.0
    %206 = vmatprep.subr.mxu0 0.0
    %207 = vmatpush1.xpose.msra.mxu0 0.0
    %208 = vmatprep.subr.mxu0 0.0
    %209 = vmatpush1.xpose.msra.mxu0 0.0
    %210 = vmatprep.subr.mxu0 0.0
    %211 = vmatpush1.xpose.msra.mxu0 0.0
    %212 = vmatprep.subr.mxu0 0.0
    %213 = vmatpush1.xpose.msra.mxu0 0.0
    %214 = vmatprep.subr.mxu0 0.0
    %215 = vmatpush1.xpose.msra.mxu0 0.0
    %216 = vmatprep.subr.mxu0 0.0
    %217 = vmatpush1.xpose.msra.mxu0 0.0
    %218 = vmatprep.subr.mxu0 0.0
    %219 = vmatpush1.xpose.msra.mxu0 0.0
    %220 = vmatprep.subr.mxu0 0.0
    %221 = vmatpush1.xpose.msra.mxu0 0.0
    %222 = vmatprep.subr.mxu0 0.0
    %223 = vmatpush1.xpose.msra.mxu0 0.0
    %224 = vmatprep.subr.mxu0 0.0
    %225 = vmatpush1.xpose.msra.mxu0 %v192
    %226 = vmatprep.subr.mxu0 0.0
    %227 = vmatpush2.xpose.msra.mxu0 0.0
    %228 = vmatprep.subr.mxu0 0.0
    %229 = vmatpush2.xpose.msra.mxu0 0.0
    %230 = vmatprep.subr.mxu0 0.0
    %231 = vmatpush2.xpose.msra.mxu0 0.0
    %232 = vmatprep.subr.mxu0 0.0
    %233 = vmatpush2.xpose.msra.mxu0 0.0
    %234 = vmatprep.subr.mxu0 0.0
    %235 = vmatpush2.xpose.msra.mxu0 0.0
    %236 = vmatprep.subr.mxu0 0.0
    %237 = vmatpush2.xpose.msra.mxu0 0.0
    %238 = vmatprep.subr.mxu0 0.0
    %239 = vmatpush2.xpose.msra.mxu0 0.0
    %240 = vmatprep.subr.mxu0 0.0
    %241 = vmatpush2.xpose.msra.mxu0 0.0
    %242 = vmatprep.subr.mxu0 0.0
    %243 = vmatpush2.xpose.msra.mxu0 0.0
    %244 = vmatprep.subr.mxu0 0.0
    %245 = vmatpush2.xpose.msra.mxu0 0.0
    %246 = vmatprep.subr.mxu0 0.0
    %247 = vmatpush2.xpose.msra.mxu0 0.0
    %248 = vmatprep.subr.mxu0 0.0
    %249 = vmatpush2.xpose.msra.mxu0 0.0
    %250 = vmatprep.subr.mxu0 0.0
    %251 = vmatpush2.xpose.msra.mxu0 0.0
    %252 = vmatprep.subr.mxu0 0.0
    %253 = vmatpush2.xpose.msra.mxu0 0.0
    %254 = vmatprep.subr.mxu0 0.0
    %255 = vmatpush2.xpose.msra.mxu0 0.0
    %256 = vmatprep.subr.mxu0 0.0
    %257 = vmatpush2.xpose.msra.mxu0 0.0
    %258 = vmatprep.mubr.f32.mxu0 0.0
    %259 = vmatmul.mubr.f32.gmra.mxu0 %v192
    %v260 = vpop.f32.mrf.mxu0
    %v261 = vadd.f32 0.0, %v260
    %v262 = vpop.f32.mrf.mxu0
    %263 = vdwg.mxu0
    %v264 = vmul.f32 %v261, %v68
    %vm265 = vcmask 64512
    %v266 = vsel %vm265, %v264, 0.0
    %267 = vadd.xlane.f32.xlu0 %v266
    %v268 = vpop.xlane.xlu0 %267
    %v269 = vrot.slane %v266, 4
    %v270 = vadd.f32 %v266, %v269
    %v271 = vrot.slane %v270, 2
    %v272 = vadd.f32 %v270, %v271
    %v273 = vrot.slane %v272, 1
    %v274 = vadd.f32 %v272, %v273
    %v275 = vadd.f32 %v268, %v274
    %v276 = vmul.f32 %v261, 2.0
    %v277 = vsub.f32 %v275, %v276
    %278 = vmatprep.subr.mxu0 0.0
    %279 = vmatpush1.msra.mxu0 0.0
    %280 = vmatprep.subr.mxu0 0.0
    %281 = vmatpush1.msra.mxu0 0.0
    %282 = vmatprep.subr.mxu0 0.0
    %283 = vmatpush1.msra.mxu0 0.0
    %284 = vmatprep.subr.mxu0 0.0
    %285 = vmatpush1.msra.mxu0 0.0
    %286 = vmatprep.subr.mxu0 0.0
    %287 = vmatpush1.msra.mxu0 0.0
    %288 = vmatprep.subr.mxu0 0.0
    %289 = vmatpush1.msra.mxu0 0.0
    %290 = vmatprep.subr.mxu0 0.0
    %291 = vmatpush1.msra.mxu0 0.0
    %292 = vmatprep.subr.mxu0 0.0
    %293 = vmatpush1.msra.mxu0 0.0
    %294 = vmatprep.subr.mxu0 0.0
    %295 = vmatpush1.msra.mxu0 0.0
    %296 = vmatprep.subr.mxu0 0.0
    %297 = vmatpush1.msra.mxu0 0.0
    %298 = vmatprep.subr.mxu0 0.0
    %299 = vmatpush1.msra.mxu0 0.0
    %300 = vmatprep.subr.mxu0 0.0
    %301 = vmatpush1.msra.mxu0 0.0
    %302 = vmatprep.subr.mxu0 0.0
    %303 = vmatpush1.msra.mxu0 %v174
    %304 = vmatprep.subr.mxu0 0.0
    %305 = vmatpush1.msra.mxu0 %v173
    %306 = vmatprep.subr.mxu0 0.0
    %307 = vmatpush1.msra.mxu0 %v172
    %308 = vmatprep.subr.mxu0 0.0
    %309 = vmatpush1.msra.mxu0 %v171
    %310 = vmatprep.subr.mxu0 0.0
    %311 = vmatpush2.msra.mxu0 0.0
    %312 = vmatprep.subr.mxu0 0.0
    %313 = vmatpush2.msra.mxu0 0.0
    %314 = vmatprep.subr.mxu0 0.0
    %315 = vmatpush2.msra.mxu0 0.0
    %316 = vmatprep.subr.mxu0 0.0
    %317 = vmatpush2.msra.mxu0 0.0
    %318 = vmatprep.subr.mxu0 0.0
    %319 = vmatpush2.msra.mxu0 0.0
    %320 = vmatprep.subr.mxu0 0.0
    %321 = vmatpush2.msra.mxu0 0.0
    %322 = vmatprep.subr.mxu0 0.0
    %323 = vmatpush2.msra.mxu0 0.0
    %324 = vmatprep.subr.mxu0 0.0
    %325 = vmatpush2.msra.mxu0 0.0
    %326 = vmatprep.subr.mxu0 0.0
    %327 = vmatpush2.msra.mxu0 0.0
    %328 = vmatprep.subr.mxu0 0.0
    %329 = vmatpush2.msra.mxu0 0.0
    %330 = vmatprep.subr.mxu0 0.0
    %331 = vmatpush2.msra.mxu0 0.0
    %332 = vmatprep.subr.mxu0 0.0
    %333 = vmatpush2.msra.mxu0 0.0
    %334 = vmatprep.subr.mxu0 0.0
    %335 = vmatpush2.msra.mxu0 0.0
    %336 = vmatprep.subr.mxu0 0.0
    %337 = vmatpush2.msra.mxu0 0.0
    %338 = vmatprep.subr.mxu0 0.0
    %339 = vmatpush2.msra.mxu0 0.0
    %340 = vmatprep.subr.mxu0 0.0
    %341 = vmatpush2.msra.mxu0 0.0
    %342 = vmatprep.mubr.f32.mxu0 0.0
    %343 = vmatmul.mubr.f32.gmra.mxu0 %v192
    %v344 = vpop.f32.mrf.mxu0
    %v345 = vadd.f32 0.0, %v344
    %v346 = vpop.f32.mrf.mxu0
    %347 = vdwg.mxu0
    %348 = vmatprep.subr.mxu0 0.0
    %349 = vmatpush1.msra.mxu0 0.0
    %350 = vmatprep.subr.mxu0 0.0
    %351 = vmatpush1.msra.mxu0 0.0
    %352 = vmatprep.subr.mxu0 0.0
    %353 = vmatpush1.msra.mxu0 0.0
    %354 = vmatprep.subr.mxu0 0.0
    %355 = vmatpush1.msra.mxu0 0.0
    %356 = vmatprep.subr.mxu0 0.0
    %357 = vmatpush1.msra.mxu0 0.0
    %358 = vmatprep.subr.mxu0 0.0
    %359 = vmatpush1.msra.mxu0 0.0
    %360 = vmatprep.subr.mxu0 0.0
    %361 = vmatpush1.msra.mxu0 0.0
    %362 = vmatprep.subr.mxu0 0.0
    %363 = vmatpush1.msra.mxu0 0.0
    %364 = vmatprep.subr.mxu0 0.0
    %365 = vmatpush1.msra.mxu0 0.0
    %366 = vmatprep.subr.mxu0 0.0
    %367 = vmatpush1.msra.mxu0 0.0
    %368 = vmatprep.subr.mxu0 0.0
    %369 = vmatpush1.msra.mxu0 0.0
    %370 = vmatprep.subr.mxu0 0.0
    %371 = vmatpush1.msra.mxu0 0.0
    %372 = vmatprep.subr.mxu0 0.0
    %373 = vmatpush1.msra.mxu0 %v178
    %374 = vmatprep.subr.mxu0 0.0
    %375 = vmatpush1.msra.mxu0 %v177
    %376 = vmatprep.subr.mxu0 0.0
    %377 = vmatpush1.msra.mxu0 %v176
    %378 = vmatprep.subr.mxu0 0.0
    %379 = vmatpush1.msra.mxu0 %v175
    %380 = vmatprep.subr.mxu0 0.0
    %381 = vmatpush2.msra.mxu0 0.0
    %382 = vmatprep.subr.mxu0 0.0
    %383 = vmatpush2.msra.mxu0 0.0
    %384 = vmatprep.subr.mxu0 0.0
    %385 = vmatpush2.msra.mxu0 0.0
    %386 = vmatprep.subr.mxu0 0.0
    %387 = vmatpush2.msra.mxu0 0.0
    %388 = vmatprep.subr.mxu0 0.0
    %389 = vmatpush2.msra.mxu0 0.0
    %390 = vmatprep.subr.mxu0 0.0
    %391 = vmatpush2.msra.mxu0 0.0
    %392 = vmatprep.subr.mxu0 0.0
    %393 = vmatpush2.msra.mxu0 0.0
    %394 = vmatprep.subr.mxu0 0.0
    %395 = vmatpush2.msra.mxu0 0.0
    %396 = vmatprep.subr.mxu0 0.0
    %397 = vmatpush2.msra.mxu0 0.0
    %398 = vmatprep.subr.mxu0 0.0
    %399 = vmatpush2.msra.mxu0 0.0
    %400 = vmatprep.subr.mxu0 0.0
    %401 = vmatpush2.msra.mxu0 0.0
    %402 = vmatprep.subr.mxu0 0.0
    %403 = vmatpush2.msra.mxu0 0.0
    %404 = vmatprep.subr.mxu0 0.0
    %405 = vmatpush2.msra.mxu0 0.0
    %406 = vmatprep.subr.mxu0 0.0
    %407 = vmatpush2.msra.mxu0 0.0
    %408 = vmatprep.subr.mxu0 0.0
    %409 = vmatpush2.msra.mxu0 0.0
    %410 = vmatprep.subr.mxu0 0.0
    %411 = vmatpush2.msra.mxu0 0.0
    %412 = vmatprep.mubr.f32.mxu0 0.0
    %413 = vmatmul.mubr.f32.gmra.mxu0 %v192
    %v414 = vpop.f32.mrf.mxu0
    %v415 = vadd.f32 0.0, %v414
    %v416 = vpop.f32.mrf.mxu0
    %417 = vdwg.mxu0
    %v419 = vcombine.high %v345, %v345
    %v421 = vunpack.c.l.s4 1966171168
    %v422 = vunpack.c.0.s8 %v421
    %v423 = vlaneseq
    %v424 = vshrl.u32 %v423, 7
    %v425 = vsub.s32 %v422, %v424
    %v426 = vrot.slane %v345, %v425
    %v428 = vunpack.c.l.s4 1966171168
    %v429 = vunpack.c.0.s8 %v428
    %v430 = vlaneseq
    %v431 = vshrl.u32 %v430, 7
    %v432 = vsub.s32 %v429, %v431
    %v433 = vrot.slane %v419, %v432
    %v434 = vcombine.high %v426, %v426
    %v435 = vcombine.high %v433, %v433
    %v437 = vunpack.c.l.s4 1966171168
    %v438 = vunpack.c.0.s8 %v437
    %v439 = vlaneseq
    %v440 = vshrl.u32 %v439, 7
    %v441 = vsub.s32 %v438, %v440
    %v442 = vrot.slane %v426, %v441
    %v444 = vunpack.c.l.s4 1966171168
    %v445 = vunpack.c.0.s8 %v444
    %v446 = vlaneseq
    %v447 = vshrl.u32 %v446, 7
    %v448 = vsub.s32 %v445, %v447
    %v449 = vrot.slane %v433, %v448
    %v451 = vunpack.c.l.s4 1966171168
    %v452 = vunpack.c.0.s8 %v451
    %v453 = vlaneseq
    %v454 = vshrl.u32 %v453, 7
    %v455 = vsub.s32 %v452, %v454
    %v456 = vrot.slane %v434, %v455
    %v458 = vunpack.c.l.s4 1966171168
    %v459 = vunpack.c.0.s8 %v458
    %v460 = vlaneseq
    %v461 = vshrl.u32 %v460, 7
    %v462 = vsub.s32 %v459, %v461
    %v463 = vrot.slane %v435, %v462
    %v464 = vcombine.high %v442, %v442
    %v465 = vcombine.high %v449, %v449
    %v466 = vcombine.high %v456, %v456
    %v467 = vcombine.high %v463, %v463
    %v468 = vlaneseq
    %v469 = vshrl.u32 %v468, 7
    %v470 = vsub.s32 0, %v469
    %v471 = vrot.slane %v442, %v470
    %v472 = vlaneseq
    %v473 = vshrl.u32 %v472, 7
    %v474 = vsub.s32 0, %v473
    %v475 = vrot.slane %v456, %v474
    %v476 = vlaneseq
    %v477 = vshrl.u32 %v476, 7
    %v478 = vsub.s32 0, %v477
    %v479 = vrot.slane %v464, %v478
    %v480 = vlaneseq
    %v481 = vshrl.u32 %v480, 7
    %v482 = vsub.s32 0, %v481
    %v483 = vrot.slane %v466, %v482
    %v484 = vlaneseq
    %v485 = vshrl.u32 %v484, 7
    %v486 = vsub.s32 0, %v485
    %v487 = vrot.slane %v449, %v486
    %v488 = vlaneseq
    %v489 = vshrl.u32 %v488, 7
    %v490 = vsub.s32 0, %v489
    %v491 = vrot.slane %v463, %v490
    %v492 = vlaneseq
    %v493 = vshrl.u32 %v492, 7
    %v494 = vsub.s32 0, %v493
    %v495 = vrot.slane %v465, %v494
    %v496 = vlaneseq
    %v497 = vshrl.u32 %v496, 7
    %v498 = vsub.s32 0, %v497
    %v499 = vrot.slane %v467, %v498
    %v508 = vadd.f32 %v471, %v415
    %v509 = vadd.f32 %v475, %v415
    %v510 = vadd.f32 %v479, %v415
    %v511 = vadd.f32 %v483, %v415
    %v512 = vadd.f32 %v487, %v415
    %v513 = vadd.f32 %v491, %v415
    %v514 = vadd.f32 %v495, %v415
    %v515 = vadd.f32 %v499, %v415
    %v516 = vlaneseq
    %v517 = vshrl.u32 %v516, 7
    %v518 = vsub.s32 0, %v517
    %v519 = vrot.slane %v277, %v518
    %521 = vbcast.lane.b32.xlu0 %v519, 256
    %v522 = vpop.permute.xlu0 %521
    %v523 = vlaneseq
    %v524 = vshrl.u32 %v523, 7
    %v525 = vsub.s32 1, %v524
    %v526 = vrot.slane %v277, %v525
    %528 = vbcast.lane.b32.xlu0 %v526, 256
    %v529 = vpop.permute.xlu0 %528
    %v530 = vlaneseq
    %v531 = vshrl.u32 %v530, 7
    %v532 = vsub.s32 2, %v531
    %v533 = vrot.slane %v277, %v532
    %535 = vbcast.lane.b32.xlu0 %v533, 256
    %v536 = vpop.permute.xlu0 %535
    %v537 = vlaneseq
    %v538 = vshrl.u32 %v537, 7
    %v539 = vsub.s32 3, %v538
    %v540 = vrot.slane %v277, %v539
    %542 = vbcast.lane.b32.xlu0 %v540, 256
    %v543 = vpop.permute.xlu0 %542
    %v544 = vlaneseq
    %v545 = vshrl.u32 %v544, 7
    %v546 = vsub.s32 4, %v545
    %v547 = vrot.slane %v277, %v546
    %549 = vbcast.lane.b32.xlu0 %v547, 256
    %v550 = vpop.permute.xlu0 %549
    %v551 = vlaneseq
    %v552 = vshrl.u32 %v551, 7
    %v553 = vsub.s32 5, %v552
    %v554 = vrot.slane %v277, %v553
    %556 = vbcast.lane.b32.xlu0 %v554, 256
    %v557 = vpop.permute.xlu0 %556
    %v558 = vlaneseq
    %v559 = vshrl.u32 %v558, 7
    %v560 = vsub.s32 6, %v559
    %v561 = vrot.slane %v277, %v560
    %563 = vbcast.lane.b32.xlu0 %v561, 256
    %v564 = vpop.permute.xlu0 %563
    %v565 = vlaneseq
    %v566 = vshrl.u32 %v565, 7
    %v567 = vsub.s32 7, %v566
    %v568 = vrot.slane %v277, %v567
    %570 = vbcast.lane.b32.xlu0 %v568, 256
    %v571 = vpop.permute.xlu0 %570
    %v573 = vlaneseq
    %v574 = vshrl.u32 %v573, 7
    %v575 = vsub.s32 0, %v574
    %v576 = vrot.slane %v179, %v575
    %v578 = vmul.f32 %v522, %v576
    %v579 = vmul.f32 %v529, %v576
    %v580 = vmul.f32 %v536, %v576
    %v581 = vmul.f32 %v543, %v576
    %v582 = vmul.f32 %v550, %v576
    %v583 = vmul.f32 %v557, %v576
    %v584 = vmul.f32 %v564, %v576
    %v585 = vmul.f32 %v571, %v576
    %v586 = vadd.f32 %v508, %v578
    %v587 = vadd.f32 %v509, %v579
    %v588 = vadd.f32 %v510, %v580
    %v589 = vadd.f32 %v511, %v581
    %v590 = vadd.f32 %v512, %v582
    %v591 = vadd.f32 %v513, %v583
    %v592 = vadd.f32 %v514, %v584
    %v593 = vadd.f32 %v515, %v585
    %v595 = vlaneseq
    %v596 = vshrl.u32 %v595, 7
    %v597 = vsub.s32 0, %v596
    %v598 = vrot.slane %v180, %v597
    %v600 = vadd.f32 %v586, %v598
    %v601 = vadd.f32 %v587, %v598
    %v602 = vadd.f32 %v588, %v598
    %v603 = vadd.f32 %v589, %v598
    %v604 = vadd.f32 %v590, %v598
    %v605 = vadd.f32 %v591, %v598
    %v606 = vadd.f32 %v592, %v598
    %v607 = vadd.f32 %v593, %v598
    %vm608 = vcmp.ge.f32.partialorder %v600, 0.0
    %vm609 = vcmp.ge.f32.partialorder %v601, 0.0
    %vm610 = vcmp.ge.f32.partialorder %v602, 0.0
    %vm611 = vcmp.ge.f32.partialorder %v603, 0.0
    %vm612 = vcmp.ge.f32.partialorder %v604, 0.0
    %vm613 = vcmp.ge.f32.partialorder %v605, 0.0
    %vm614 = vcmp.ge.f32.partialorder %v606, 0.0
    %vm615 = vcmp.ge.f32.partialorder %v607, 0.0
    %v616 = vmul.f32 %v600, 0.1
    %v617 = vmul.f32 %v601, 0.1
    %v618 = vmul.f32 %v602, 0.1
    %v619 = vmul.f32 %v603, 0.1
    %v620 = vmul.f32 %v604, 0.1
    %v621 = vmul.f32 %v605, 0.1
    %v622 = vmul.f32 %v606, 0.1
    %v623 = vmul.f32 %v607, 0.1
    %v624 = vsel %vm608, %v600, %v616
    %v625 = vsel %vm609, %v601, %v617
    %v626 = vsel %vm610, %v602, %v618
    %v627 = vsel %vm611, %v603, %v619
    %v628 = vsel %vm612, %v604, %v620
    %v629 = vsel %vm613, %v605, %v621
    %v630 = vsel %vm614, %v606, %v622
    %v631 = vsel %vm615, %v607, %v623
    %v632 = vsel %vm190, %v624, 0.0
    %v633 = vrot.slane %v632, 4
    %v634 = vadd.f32 %v632, %v633
    %v635 = vrot.slane %v634, 2
    %v636 = vadd.f32 %v634, %v635
    %v637 = vrot.slane %v636, 1
    %v638 = vadd.f32 %v636, %v637
    %v639 = vsel %vm190, %v625, 0.0
    %v640 = vrot.slane %v639, 4
    %v641 = vadd.f32 %v639, %v640
    %v642 = vrot.slane %v641, 2
    %v643 = vadd.f32 %v641, %v642
    %v644 = vrot.slane %v643, 1
    %v645 = vadd.f32 %v643, %v644
    %v646 = vsel %vm190, %v626, 0.0
    %v647 = vrot.slane %v646, 4
    %v648 = vadd.f32 %v646, %v647
    %v649 = vrot.slane %v648, 2
    %v650 = vadd.f32 %v648, %v649
    %v651 = vrot.slane %v650, 1
    %v652 = vadd.f32 %v650, %v651
    %v653 = vsel %vm190, %v627, 0.0
    %v654 = vrot.slane %v653, 4
    %v655 = vadd.f32 %v653, %v654
    %v656 = vrot.slane %v655, 2
    %v657 = vadd.f32 %v655, %v656
    %v658 = vrot.slane %v657, 1
    %v659 = vadd.f32 %v657, %v658
    %v660 = vsel %vm190, %v628, 0.0
    %v661 = vrot.slane %v660, 4
    %v662 = vadd.f32 %v660, %v661
    %v663 = vrot.slane %v662, 2
    %v664 = vadd.f32 %v662, %v663
    %v665 = vrot.slane %v664, 1
    %v666 = vadd.f32 %v664, %v665
    %v667 = vsel %vm190, %v629, 0.0
    %v668 = vrot.slane %v667, 4
    %v669 = vadd.f32 %v667, %v668
    %v670 = vrot.slane %v669, 2
    %v671 = vadd.f32 %v669, %v670
    %v672 = vrot.slane %v671, 1
    %v673 = vadd.f32 %v671, %v672
    %v674 = vsel %vm190, %v630, 0.0
    %v675 = vrot.slane %v674, 4
    %v676 = vadd.f32 %v674, %v675
    %v677 = vrot.slane %v676, 2
    %v678 = vadd.f32 %v676, %v677
    %v679 = vrot.slane %v678, 1
    %v680 = vadd.f32 %v678, %v679
    %v681 = vsel %vm190, %v631, 0.0
    %v682 = vrot.slane %v681, 4
    %v683 = vadd.f32 %v681, %v682
    %v684 = vrot.slane %v683, 2
    %v685 = vadd.f32 %v683, %v684
    %v686 = vrot.slane %v685, 1
    %v687 = vadd.f32 %v685, %v686
    %688 = vmatprep.subr.mxu0 0.0
    %689 = vmatpush1.msra.mxu0 0.0
    %690 = vmatprep.subr.mxu0 0.0
    %691 = vmatpush1.msra.mxu0 0.0
    %692 = vmatprep.subr.mxu0 0.0
    %693 = vmatpush1.msra.mxu0 0.0
    %694 = vmatprep.subr.mxu0 0.0
    %695 = vmatpush1.msra.mxu0 0.0
    %696 = vmatprep.subr.mxu0 0.0
    %697 = vmatpush1.msra.mxu0 0.0
    %698 = vmatprep.subr.mxu0 0.0
    %699 = vmatpush1.msra.mxu0 0.0
    %700 = vmatprep.subr.mxu0 0.0
    %701 = vmatpush1.msra.mxu0 0.0
    %702 = vmatprep.subr.mxu0 0.0
    %703 = vmatpush1.msra.mxu0 0.0
    %704 = vmatprep.subr.mxu0 0.0
    %705 = vmatpush1.msra.mxu0 0.0
    %706 = vmatprep.subr.mxu0 0.0
    %707 = vmatpush1.msra.mxu0 0.0
    %708 = vmatprep.subr.mxu0 0.0
    %709 = vmatpush1.msra.mxu0 0.0
    %710 = vmatprep.subr.mxu0 0.0
    %711 = vmatpush1.msra.mxu0 0.0
    %712 = vmatprep.subr.mxu0 0.0
    %713 = vmatpush1.msra.mxu0 %v188
    %714 = vmatprep.subr.mxu0 0.0
    %715 = vmatpush1.msra.mxu0 %v187
    %716 = vmatprep.subr.mxu0 0.0
    %717 = vmatpush1.msra.mxu0 %v186
    %718 = vmatprep.subr.mxu0 0.0
    %719 = vmatpush1.msra.mxu0 %v185
    %720 = vmatprep.subr.mxu0 0.0
    %721 = vmatpush2.msra.mxu0 0.0
    %722 = vmatprep.subr.mxu0 0.0
    %723 = vmatpush2.msra.mxu0 0.0
    %724 = vmatprep.subr.mxu0 0.0
    %725 = vmatpush2.msra.mxu0 0.0
    %726 = vmatprep.subr.mxu0 0.0
    %727 = vmatpush2.msra.mxu0 0.0
    %728 = vmatprep.subr.mxu0 0.0
    %729 = vmatpush2.msra.mxu0 0.0
    %730 = vmatprep.subr.mxu0 0.0
    %731 = vmatpush2.msra.mxu0 0.0
    %732 = vmatprep.subr.mxu0 0.0
    %733 = vmatpush2.msra.mxu0 0.0
    %734 = vmatprep.subr.mxu0 0.0
    %735 = vmatpush2.msra.mxu0 0.0
    %736 = vmatprep.subr.mxu0 0.0
    %737 = vmatpush2.msra.mxu0 0.0
    %738 = vmatprep.subr.mxu0 0.0
    %739 = vmatpush2.msra.mxu0 0.0
    %740 = vmatprep.subr.mxu0 0.0
    %741 = vmatpush2.msra.mxu0 0.0
    %742 = vmatprep.subr.mxu0 0.0
    %743 = vmatpush2.msra.mxu0 0.0
    %744 = vmatprep.subr.mxu0 0.0
    %745 = vmatpush2.msra.mxu0 0.0
    %746 = vmatprep.subr.mxu0 0.0
    %747 = vmatpush2.msra.mxu0 0.0
    %748 = vmatprep.subr.mxu0 0.0
    %749 = vmatpush2.msra.mxu0 0.0
    %750 = vmatprep.subr.mxu0 0.0
    %751 = vmatpush2.msra.mxu0 0.0
    %752 = vmatprep.mubr.f32.mxu0 0.0
    %753 = vmatmul.mubr.f32.gmra.mxu0 %v192
    %v754 = vpop.f32.mrf.mxu0
    %v755 = vadd.f32 0.0, %v754
    %v756 = vpop.f32.mrf.mxu0
    %757 = vdwg.mxu0
    %vm766 = vcmask 1041409
    %v767 = vsel %vm766, %v645, %v638
    %vm768 = vcmask 1042434
    %v769 = vsel %vm768, %v652, %v767
    %vm770 = vcmask 1043459
    %v771 = vsel %vm770, %v659, %v769
    %vm772 = vcmask 1044484
    %v773 = vsel %vm772, %v666, %v771
    %vm774 = vcmask 1045509
    %v775 = vsel %vm774, %v673, %v773
    %vm776 = vcmask 1046534
    %v777 = vsel %vm776, %v680, %v775
    %vm778 = vcmask 1047559
    %v779 = vsel %vm778, %v687, %v777
    %v780 = vsel %vm190, %v779, 0
    %782 = vmatprep.subr.mxu0 0.0
    %783 = vmatpush1.msra.mxu0 0.0
    %784 = vmatprep.subr.mxu0 0.0
    %785 = vmatpush1.msra.mxu0 0.0
    %786 = vmatprep.subr.mxu0 0.0
    %787 = vmatpush1.msra.mxu0 0.0
    %788 = vmatprep.subr.mxu0 0.0
    %789 = vmatpush1.msra.mxu0 0.0
    %790 = vmatprep.subr.mxu0 0.0
    %791 = vmatpush1.msra.mxu0 0.0
    %792 = vmatprep.subr.mxu0 0.0
    %793 = vmatpush1.msra.mxu0 0.0
    %794 = vmatprep.subr.mxu0 0.0
    %795 = vmatpush1.msra.mxu0 0.0
    %796 = vmatprep.subr.mxu0 0.0
    %797 = vmatpush1.msra.mxu0 0.0
    %798 = vmatprep.subr.mxu0 0.0
    %799 = vmatpush1.msra.mxu0 0.0
    %800 = vmatprep.subr.mxu0 0.0
    %801 = vmatpush1.msra.mxu0 0.0
    %802 = vmatprep.subr.mxu0 0.0
    %803 = vmatpush1.msra.mxu0 0.0
    %804 = vmatprep.subr.mxu0 0.0
    %805 = vmatpush1.msra.mxu0 0.0
    %806 = vmatprep.subr.mxu0 0.0
    %807 = vmatpush1.msra.mxu0 %v184
    %808 = vmatprep.subr.mxu0 0.0
    %809 = vmatpush1.msra.mxu0 %v183
    %810 = vmatprep.subr.mxu0 0.0
    %811 = vmatpush1.msra.mxu0 %v182
    %812 = vmatprep.subr.mxu0 0.0
    %813 = vmatpush1.msra.mxu0 %v181
    %814 = vmatprep.subr.mxu0 0.0
    %815 = vmatpush2.msra.mxu0 0.0
    %816 = vmatprep.subr.mxu0 0.0
    %817 = vmatpush2.msra.mxu0 0.0
    %818 = vmatprep.subr.mxu0 0.0
    %819 = vmatpush2.msra.mxu0 0.0
    %820 = vmatprep.subr.mxu0 0.0
    %821 = vmatpush2.msra.mxu0 0.0
    %822 = vmatprep.subr.mxu0 0.0
    %823 = vmatpush2.msra.mxu0 0.0
    %824 = vmatprep.subr.mxu0 0.0
    %825 = vmatpush2.msra.mxu0 0.0
    %826 = vmatprep.subr.mxu0 0.0
    %827 = vmatpush2.msra.mxu0 0.0
    %828 = vmatprep.subr.mxu0 0.0
    %829 = vmatpush2.msra.mxu0 0.0
    %830 = vmatprep.subr.mxu0 0.0
    %831 = vmatpush2.msra.mxu0 0.0
    %832 = vmatprep.subr.mxu0 0.0
    %833 = vmatpush2.msra.mxu0 0.0
    %834 = vmatprep.subr.mxu0 0.0
    %835 = vmatpush2.msra.mxu0 0.0
    %836 = vmatprep.subr.mxu0 0.0
    %837 = vmatpush2.msra.mxu0 0.0
    %838 = vmatprep.subr.mxu0 0.0
    %839 = vmatpush2.msra.mxu0 0.0
    %840 = vmatprep.subr.mxu0 0.0
    %841 = vmatpush2.msra.mxu0 0.0
    %842 = vmatprep.subr.mxu0 0.0
    %843 = vmatpush2.msra.mxu0 0.0
    %844 = vmatprep.subr.mxu0 0.0
    %845 = vmatpush2.msra.mxu0 0.0
    %846 = vmatprep.mubr.f32.mxu0 0.0
    %847 = vmatmul.mubr.f32.gmra.mxu0 %v780
    %v848 = vpop.f32.mrf.mxu0
    %v849 = vadd.f32 %v755, %v848
    %v850 = vpop.f32.mrf.mxu0
    %851 = vdwg.mxu0
    %v853 = vlaneseq
    %v854 = vshrl.u32 %v853, 7
    %v855 = vsub.s32 0, %v854
    %v856 = vrot.slane %v189, %v855
    %v858 = vadd.f32 %v849, %v856
    %vm859 = vcmp.ge.f32.partialorder %v858, 0.0
    %v860 = vmul.f32 %v858, 0.1
    %v861 = vsel %vm859, %v858, %v860
    %v862 = vld [vmem:[%s10] sm:$0xff]
    %v863 = vld [vmem:[%s10 + $0x8] sm:$0xff]
    %v864 = vld [vmem:[%s10 + $0x10] sm:$0xff]
    %v865 = vld [vmem:[%s10 + $0x18] sm:$0xff]
    %v866 = vld [vmem:[%s11] sm:$0xff]
    %v867 = vld [vmem:[%s11 + $0x8] sm:$0xff]
    %v868 = vld [vmem:[%s11 + $0x10] sm:$0xff]
    %v869 = vld [vmem:[%s11 + $0x18] sm:$0xff]
    %v870 = vld [vmem:[%s12] sm:$0x1]
    %v871 = vld [vmem:[%s13] sm:$0x1]
    %v872 = vld [vmem:[%s14] sm:$0xff]
    %v873 = vld [vmem:[%s14 + $0x8] sm:$0xff]
    %v874 = vld [vmem:[%s14 + $0x10] sm:$0xff]
    %v875 = vld [vmem:[%s14 + $0x18] sm:$0xff]
    %v876 = vld [vmem:[%s15] sm:$0xff]
    %v877 = vld [vmem:[%s15 + $0x8] sm:$0xff]
    %v878 = vld [vmem:[%s15 + $0x10] sm:$0xff]
    %v879 = vld [vmem:[%s15 + $0x18] sm:$0xff]
    %v880 = vld [vmem:[%s16] sm:$0x1]
    %v882 = vsel %vm190, %v861, 0
    %884 = vmatprep.subr.mxu0 0.0
    %885 = vmatpush1.xpose.msra.mxu0 0.0
    %886 = vmatprep.subr.mxu0 0.0
    %887 = vmatpush1.xpose.msra.mxu0 0.0
    %888 = vmatprep.subr.mxu0 0.0
    %889 = vmatpush1.xpose.msra.mxu0 0.0
    %890 = vmatprep.subr.mxu0 0.0
    %891 = vmatpush1.xpose.msra.mxu0 0.0
    %892 = vmatprep.subr.mxu0 0.0
    %893 = vmatpush1.xpose.msra.mxu0 0.0
    %894 = vmatprep.subr.mxu0 0.0
    %895 = vmatpush1.xpose.msra.mxu0 0.0
    %896 = vmatprep.subr.mxu0 0.0
    %897 = vmatpush1.xpose.msra.mxu0 0.0
    %898 = vmatprep.subr.mxu0 0.0
    %899 = vmatpush1.xpose.msra.mxu0 0.0
    %900 = vmatprep.subr.mxu0 0.0
    %901 = vmatpush1.xpose.msra.mxu0 0.0
    %902 = vmatprep.subr.mxu0 0.0
    %903 = vmatpush1.xpose.msra.mxu0 0.0
    %904 = vmatprep.subr.mxu0 0.0
    %905 = vmatpush1.xpose.msra.mxu0 0.0
    %906 = vmatprep.subr.mxu0 0.0
    %907 = vmatpush1.xpose.msra.mxu0 0.0
    %908 = vmatprep.subr.mxu0 0.0
    %909 = vmatpush1.xpose.msra.mxu0 0.0
    %910 = vmatprep.subr.mxu0 0.0
    %911 = vmatpush1.xpose.msra.mxu0 0.0
    %912 = vmatprep.subr.mxu0 0.0
    %913 = vmatpush1.xpose.msra.mxu0 0.0
    %914 = vmatprep.subr.mxu0 0.0
    %915 = vmatpush1.xpose.msra.mxu0 %v882
    %916 = vmatprep.subr.mxu0 0.0
    %917 = vmatpush2.xpose.msra.mxu0 0.0
    %918 = vmatprep.subr.mxu0 0.0
    %919 = vmatpush2.xpose.msra.mxu0 0.0
    %920 = vmatprep.subr.mxu0 0.0
    %921 = vmatpush2.xpose.msra.mxu0 0.0
    %922 = vmatprep.subr.mxu0 0.0
    %923 = vmatpush2.xpose.msra.mxu0 0.0
    %924 = vmatprep.subr.mxu0 0.0
    %925 = vmatpush2.xpose.msra.mxu0 0.0
    %926 = vmatprep.subr.mxu0 0.0
    %927 = vmatpush2.xpose.msra.mxu0 0.0
    %928 = vmatprep.subr.mxu0 0.0
    %929 = vmatpush2.xpose.msra.mxu0 0.0
    %930 = vmatprep.subr.mxu0 0.0
    %931 = vmatpush2.xpose.msra.mxu0 0.0
    %932 = vmatprep.subr.mxu0 0.0
    %933 = vmatpush2.xpose.msra.mxu0 0.0
    %934 = vmatprep.subr.mxu0 0.0
    %935 = vmatpush2.xpose.msra.mxu0 0.0
    %936 = vmatprep.subr.mxu0 0.0
    %937 = vmatpush2.xpose.msra.mxu0 0.0
    %938 = vmatprep.subr.mxu0 0.0
    %939 = vmatpush2.xpose.msra.mxu0 0.0
    %940 = vmatprep.subr.mxu0 0.0
    %941 = vmatpush2.xpose.msra.mxu0 0.0
    %942 = vmatprep.subr.mxu0 0.0
    %943 = vmatpush2.xpose.msra.mxu0 0.0
    %944 = vmatprep.subr.mxu0 0.0
    %945 = vmatpush2.xpose.msra.mxu0 0.0
    %946 = vmatprep.subr.mxu0 0.0
    %947 = vmatpush2.xpose.msra.mxu0 0.0
    %948 = vmatprep.mubr.f32.mxu0 0.0
    %949 = vmatmul.mubr.f32.gmra.mxu0 %v882
    %v950 = vpop.f32.mrf.mxu0
    %v951 = vadd.f32 0.0, %v950
    %v952 = vpop.f32.mrf.mxu0
    %953 = vdwg.mxu0
    %v954 = vmul.f32 %v951, %v68
    %v955 = vsel %vm265, %v954, 0.0
    %956 = vadd.xlane.f32.xlu0 %v955
    %v957 = vpop.xlane.xlu0 %956
    %v958 = vrot.slane %v955, 4
    %v959 = vadd.f32 %v955, %v958
    %v960 = vrot.slane %v959, 2
    %v961 = vadd.f32 %v959, %v960
    %v962 = vrot.slane %v961, 1
    %v963 = vadd.f32 %v961, %v962
    %v964 = vadd.f32 %v957, %v963
    %v965 = vmul.f32 %v951, 2.0
    %v966 = vsub.f32 %v964, %v965
    %967 = vmatprep.subr.mxu0 0.0
    %968 = vmatpush1.msra.mxu0 0.0
    %969 = vmatprep.subr.mxu0 0.0
    %970 = vmatpush1.msra.mxu0 0.0
    %971 = vmatprep.subr.mxu0 0.0
    %972 = vmatpush1.msra.mxu0 0.0
    %973 = vmatprep.subr.mxu0 0.0
    %974 = vmatpush1.msra.mxu0 0.0
    %975 = vmatprep.subr.mxu0 0.0
    %976 = vmatpush1.msra.mxu0 0.0
    %977 = vmatprep.subr.mxu0 0.0
    %978 = vmatpush1.msra.mxu0 0.0
    %979 = vmatprep.subr.mxu0 0.0
    %980 = vmatpush1.msra.mxu0 0.0
    %981 = vmatprep.subr.mxu0 0.0
    %982 = vmatpush1.msra.mxu0 0.0
    %983 = vmatprep.subr.mxu0 0.0
    %984 = vmatpush1.msra.mxu0 0.0
    %985 = vmatprep.subr.mxu0 0.0
    %986 = vmatpush1.msra.mxu0 0.0
    %987 = vmatprep.subr.mxu0 0.0
    %988 = vmatpush1.msra.mxu0 0.0
    %989 = vmatprep.subr.mxu0 0.0
    %990 = vmatpush1.msra.mxu0 0.0
    %991 = vmatprep.subr.mxu0 0.0
    %992 = vmatpush1.msra.mxu0 %v865
    %993 = vmatprep.subr.mxu0 0.0
    %994 = vmatpush1.msra.mxu0 %v864
    %995 = vmatprep.subr.mxu0 0.0
    %996 = vmatpush1.msra.mxu0 %v863
    %997 = vmatprep.subr.mxu0 0.0
    %998 = vmatpush1.msra.mxu0 %v862
    %999 = vmatprep.subr.mxu0 0.0
    %1000 = vmatpush2.msra.mxu0 0.0
    %1001 = vmatprep.subr.mxu0 0.0
    %1002 = vmatpush2.msra.mxu0 0.0
    %1003 = vmatprep.subr.mxu0 0.0
    %1004 = vmatpush2.msra.mxu0 0.0
    %1005 = vmatprep.subr.mxu0 0.0
    %1006 = vmatpush2.msra.mxu0 0.0
    %1007 = vmatprep.subr.mxu0 0.0
    %1008 = vmatpush2.msra.mxu0 0.0
    %1009 = vmatprep.subr.mxu0 0.0
    %1010 = vmatpush2.msra.mxu0 0.0
    %1011 = vmatprep.subr.mxu0 0.0
    %1012 = vmatpush2.msra.mxu0 0.0
    %1013 = vmatprep.subr.mxu0 0.0
    %1014 = vmatpush2.msra.mxu0 0.0
    %1015 = vmatprep.subr.mxu0 0.0
    %1016 = vmatpush2.msra.mxu0 0.0
    %1017 = vmatprep.subr.mxu0 0.0
    %1018 = vmatpush2.msra.mxu0 0.0
    %1019 = vmatprep.subr.mxu0 0.0
    %1020 = vmatpush2.msra.mxu0 0.0
    %1021 = vmatprep.subr.mxu0 0.0
    %1022 = vmatpush2.msra.mxu0 0.0
    %1023 = vmatprep.subr.mxu0 0.0
    %1024 = vmatpush2.msra.mxu0 0.0
    %1025 = vmatprep.subr.mxu0 0.0
    %1026 = vmatpush2.msra.mxu0 0.0
    %1027 = vmatprep.subr.mxu0 0.0
    %1028 = vmatpush2.msra.mxu0 0.0
    %1029 = vmatprep.subr.mxu0 0.0
    %1030 = vmatpush2.msra.mxu0 0.0
    %1031 = vmatprep.mubr.f32.mxu0 0.0
    %1032 = vmatmul.mubr.f32.gmra.mxu0 %v882
    %v1033 = vpop.f32.mrf.mxu0
    %v1034 = vadd.f32 0.0, %v1033
    %v1035 = vpop.f32.mrf.mxu0
    %1036 = vdwg.mxu0
    %1037 = vmatprep.subr.mxu0 0.0
    %1038 = vmatpush1.msra.mxu0 0.0
    %1039 = vmatprep.subr.mxu0 0.0
    %1040 = vmatpush1.msra.mxu0 0.0
    %1041 = vmatprep.subr.mxu0 0.0
    %1042 = vmatpush1.msra.mxu0 0.0
    %1043 = vmatprep.subr.mxu0 0.0
    %1044 = vmatpush1.msra.mxu0 0.0
    %1045 = vmatprep.subr.mxu0 0.0
    %1046 = vmatpush1.msra.mxu0 0.0
    %1047 = vmatprep.subr.mxu0 0.0
    %1048 = vmatpush1.msra.mxu0 0.0
    %1049 = vmatprep.subr.mxu0 0.0
    %1050 = vmatpush1.msra.mxu0 0.0
    %1051 = vmatprep.subr.mxu0 0.0
    %1052 = vmatpush1.msra.mxu0 0.0
    %1053 = vmatprep.subr.mxu0 0.0
    %1054 = vmatpush1.msra.mxu0 0.0
    %1055 = vmatprep.subr.mxu0 0.0
    %1056 = vmatpush1.msra.mxu0 0.0
    %1057 = vmatprep.subr.mxu0 0.0
    %1058 = vmatpush1.msra.mxu0 0.0
    %1059 = vmatprep.subr.mxu0 0.0
    %1060 = vmatpush1.msra.mxu0 0.0
    %1061 = vmatprep.subr.mxu0 0.0
    %1062 = vmatpush1.msra.mxu0 %v869
    %1063 = vmatprep.subr.mxu0 0.0
    %1064 = vmatpush1.msra.mxu0 %v868
    %1065 = vmatprep.subr.mxu0 0.0
    %1066 = vmatpush1.msra.mxu0 %v867
    %1067 = vmatprep.subr.mxu0 0.0
    %1068 = vmatpush1.msra.mxu0 %v866
    %1069 = vmatprep.subr.mxu0 0.0
    %1070 = vmatpush2.msra.mxu0 0.0
    %1071 = vmatprep.subr.mxu0 0.0
    %1072 = vmatpush2.msra.mxu0 0.0
    %1073 = vmatprep.subr.mxu0 0.0
    %1074 = vmatpush2.msra.mxu0 0.0
    %1075 = vmatprep.subr.mxu0 0.0
    %1076 = vmatpush2.msra.mxu0 0.0
    %1077 = vmatprep.subr.mxu0 0.0
    %1078 = vmatpush2.msra.mxu0 0.0
    %1079 = vmatprep.subr.mxu0 0.0
    %1080 = vmatpush2.msra.mxu0 0.0
    %1081 = vmatprep.subr.mxu0 0.0
    %1082 = vmatpush2.msra.mxu0 0.0
    %1083 = vmatprep.subr.mxu0 0.0
    %1084 = vmatpush2.msra.mxu0 0.0
    %1085 = vmatprep.subr.mxu0 0.0
    %1086 = vmatpush2.msra.mxu0 0.0
    %1087 = vmatprep.subr.mxu0 0.0
    %1088 = vmatpush2.msra.mxu0 0.0
    %1089 = vmatprep.subr.mxu0 0.0
    %1090 = vmatpush2.msra.mxu0 0.0
    %1091 = vmatprep.subr.mxu0 0.0
    %1092 = vmatpush2.msra.mxu0 0.0
    %1093 = vmatprep.subr.mxu0 0.0
    %1094 = vmatpush2.msra.mxu0 0.0
    %1095 = vmatprep.subr.mxu0 0.0
    %1096 = vmatpush2.msra.mxu0 0.0
    %1097 = vmatprep.subr.mxu0 0.0
    %1098 = vmatpush2.msra.mxu0 0.0
    %1099 = vmatprep.subr.mxu0 0.0
    %1100 = vmatpush2.msra.mxu0 0.0
    %1101 = vmatprep.mubr.f32.mxu0 0.0
    %1102 = vmatmul.mubr.f32.gmra.mxu0 %v882
    %v1103 = vpop.f32.mrf.mxu0
    %v1104 = vadd.f32 0.0, %v1103
    %v1105 = vpop.f32.mrf.mxu0
    %1106 = vdwg.mxu0
    %v1108 = vcombine.high %v1034, %v1034
    %v1110 = vunpack.c.l.s4 1966171168
    %v1111 = vunpack.c.0.s8 %v1110
    %v1112 = vlaneseq
    %v1113 = vshrl.u32 %v1112, 7
    %v1114 = vsub.s32 %v1111, %v1113
    %v1115 = vrot.slane %v1034, %v1114
    %v1117 = vunpack.c.l.s4 1966171168
    %v1118 = vunpack.c.0.s8 %v1117
    %v1119 = vlaneseq
    %v1120 = vshrl.u32 %v1119, 7
    %v1121 = vsub.s32 %v1118, %v1120
    %v1122 = vrot.slane %v1108, %v1121
    %v1123 = vcombine.high %v1115, %v1115
    %v1124 = vcombine.high %v1122, %v1122
    %v1126 = vunpack.c.l.s4 1966171168
    %v1127 = vunpack.c.0.s8 %v1126
    %v1128 = vlaneseq
    %v1129 = vshrl.u32 %v1128, 7
    %v1130 = vsub.s32 %v1127, %v1129
    %v1131 = vrot.slane %v1115, %v1130
    %v1133 = vunpack.c.l.s4 1966171168
    %v1134 = vunpack.c.0.s8 %v1133
    %v1135 = vlaneseq
    %v1136 = vshrl.u32 %v1135, 7
    %v1137 = vsub.s32 %v1134, %v1136
    %v1138 = vrot.slane %v1122, %v1137
    %v1140 = vunpack.c.l.s4 1966171168
    %v1141 = vunpack.c.0.s8 %v1140
    %v1142 = vlaneseq
    %v1143 = vshrl.u32 %v1142, 7
    %v1144 = vsub.s32 %v1141, %v1143
    %v1145 = vrot.slane %v1123, %v1144
    %v1147 = vunpack.c.l.s4 1966171168
    %v1148 = vunpack.c.0.s8 %v1147
    %v1149 = vlaneseq
    %v1150 = vshrl.u32 %v1149, 7
    %v1151 = vsub.s32 %v1148, %v1150
    %v1152 = vrot.slane %v1124, %v1151
    %v1153 = vcombine.high %v1131, %v1131
    %v1154 = vcombine.high %v1138, %v1138
    %v1155 = vcombine.high %v1145, %v1145
    %v1156 = vcombine.high %v1152, %v1152
    %v1157 = vlaneseq
    %v1158 = vshrl.u32 %v1157, 7
    %v1159 = vsub.s32 0, %v1158
    %v1160 = vrot.slane %v1131, %v1159
    %v1161 = vlaneseq
    %v1162 = vshrl.u32 %v1161, 7
    %v1163 = vsub.s32 0, %v1162
    %v1164 = vrot.slane %v1145, %v1163
    %v1165 = vlaneseq
    %v1166 = vshrl.u32 %v1165, 7
    %v1167 = vsub.s32 0, %v1166
    %v1168 = vrot.slane %v1153, %v1167
    %v1169 = vlaneseq
    %v1170 = vshrl.u32 %v1169, 7
    %v1171 = vsub.s32 0, %v1170
    %v1172 = vrot.slane %v1155, %v1171
    %v1173 = vlaneseq
    %v1174 = vshrl.u32 %v1173, 7
    %v1175 = vsub.s32 0, %v1174
    %v1176 = vrot.slane %v1138, %v1175
    %v1177 = vlaneseq
    %v1178 = vshrl.u32 %v1177, 7
    %v1179 = vsub.s32 0, %v1178
    %v1180 = vrot.slane %v1152, %v1179
    %v1181 = vlaneseq
    %v1182 = vshrl.u32 %v1181, 7
    %v1183 = vsub.s32 0, %v1182
    %v1184 = vrot.slane %v1154, %v1183
    %v1185 = vlaneseq
    %v1186 = vshrl.u32 %v1185, 7
    %v1187 = vsub.s32 0, %v1186
    %v1188 = vrot.slane %v1156, %v1187
    %v1197 = vadd.f32 %v1160, %v1104
    %v1198 = vadd.f32 %v1164, %v1104
    %v1199 = vadd.f32 %v1168, %v1104
    %v1200 = vadd.f32 %v1172, %v1104
    %v1201 = vadd.f32 %v1176, %v1104
    %v1202 = vadd.f32 %v1180, %v1104
    %v1203 = vadd.f32 %v1184, %v1104
    %v1204 = vadd.f32 %v1188, %v1104
    %v1205 = vlaneseq
    %v1206 = vshrl.u32 %v1205, 7
    %v1207 = vsub.s32 0, %v1206
    %v1208 = vrot.slane %v966, %v1207
    %1210 = vbcast.lane.b32.xlu0 %v1208, 256
    %v1211 = vpop.permute.xlu0 %1210
    %v1212 = vlaneseq
    %v1213 = vshrl.u32 %v1212, 7
    %v1214 = vsub.s32 1, %v1213
    %v1215 = vrot.slane %v966, %v1214
    %1217 = vbcast.lane.b32.xlu0 %v1215, 256
    %v1218 = vpop.permute.xlu0 %1217
    %v1219 = vlaneseq
    %v1220 = vshrl.u32 %v1219, 7
    %v1221 = vsub.s32 2, %v1220
    %v1222 = vrot.slane %v966, %v1221
    %1224 = vbcast.lane.b32.xlu0 %v1222, 256
    %v1225 = vpop.permute.xlu0 %1224
    %v1226 = vlaneseq
    %v1227 = vshrl.u32 %v1226, 7
    %v1228 = vsub.s32 3, %v1227
    %v1229 = vrot.slane %v966, %v1228
    %1231 = vbcast.lane.b32.xlu0 %v1229, 256
    %v1232 = vpop.permute.xlu0 %1231
    %v1233 = vlaneseq
    %v1234 = vshrl.u32 %v1233, 7
    %v1235 = vsub.s32 4, %v1234
    %v1236 = vrot.slane %v966, %v1235
    %1238 = vbcast.lane.b32.xlu0 %v1236, 256
    %v1239 = vpop.permute.xlu0 %1238
    %v1240 = vlaneseq
    %v1241 = vshrl.u32 %v1240, 7
    %v1242 = vsub.s32 5, %v1241
    %v1243 = vrot.slane %v966, %v1242
    %1245 = vbcast.lane.b32.xlu0 %v1243, 256
    %v1246 = vpop.permute.xlu0 %1245
    %v1247 = vlaneseq
    %v1248 = vshrl.u32 %v1247, 7
    %v1249 = vsub.s32 6, %v1248
    %v1250 = vrot.slane %v966, %v1249
    %1252 = vbcast.lane.b32.xlu0 %v1250, 256
    %v1253 = vpop.permute.xlu0 %1252
    %v1254 = vlaneseq
    %v1255 = vshrl.u32 %v1254, 7
    %v1256 = vsub.s32 7, %v1255
    %v1257 = vrot.slane %v966, %v1256
    %1259 = vbcast.lane.b32.xlu0 %v1257, 256
    %v1260 = vpop.permute.xlu0 %1259
    %v1262 = vlaneseq
    %v1263 = vshrl.u32 %v1262, 7
    %v1264 = vsub.s32 0, %v1263
    %v1265 = vrot.slane %v870, %v1264
    %v1267 = vmul.f32 %v1211, %v1265
    %v1268 = vmul.f32 %v1218, %v1265
    %v1269 = vmul.f32 %v1225, %v1265
    %v1270 = vmul.f32 %v1232, %v1265
    %v1271 = vmul.f32 %v1239, %v1265
    %v1272 = vmul.f32 %v1246, %v1265
    %v1273 = vmul.f32 %v1253, %v1265
    %v1274 = vmul.f32 %v1260, %v1265
    %v1275 = vadd.f32 %v1197, %v1267
    %v1276 = vadd.f32 %v1198, %v1268
    %v1277 = vadd.f32 %v1199, %v1269
    %v1278 = vadd.f32 %v1200, %v1270
    %v1279 = vadd.f32 %v1201, %v1271
    %v1280 = vadd.f32 %v1202, %v1272
    %v1281 = vadd.f32 %v1203, %v1273
    %v1282 = vadd.f32 %v1204, %v1274
    %v1284 = vlaneseq
    %v1285 = vshrl.u32 %v1284, 7
    %v1286 = vsub.s32 0, %v1285
    %v1287 = vrot.slane %v871, %v1286
    %v1289 = vadd.f32 %v1275, %v1287
    %v1290 = vadd.f32 %v1276, %v1287
    %v1291 = vadd.f32 %v1277, %v1287
    %v1292 = vadd.f32 %v1278, %v1287
    %v1293 = vadd.f32 %v1279, %v1287
    %v1294 = vadd.f32 %v1280, %v1287
    %v1295 = vadd.f32 %v1281, %v1287
    %v1296 = vadd.f32 %v1282, %v1287
    %vm1297 = vcmp.ge.f32.partialorder %v1289, 0.0
    %vm1298 = vcmp.ge.f32.partialorder %v1290, 0.0
    %vm1299 = vcmp.ge.f32.partialorder %v1291, 0.0
    %vm1300 = vcmp.ge.f32.partialorder %v1292, 0.0
    %vm1301 = vcmp.ge.f32.partialorder %v1293, 0.0
    %vm1302 = vcmp.ge.f32.partialorder %v1294, 0.0
    %vm1303 = vcmp.ge.f32.partialorder %v1295, 0.0
    %vm1304 = vcmp.ge.f32.partialorder %v1296, 0.0
    %v1305 = vmul.f32 %v1289, 0.1
    %v1306 = vmul.f32 %v1290, 0.1
    %v1307 = vmul.f32 %v1291, 0.1
    %v1308 = vmul.f32 %v1292, 0.1
    %v1309 = vmul.f32 %v1293, 0.1
    %v1310 = vmul.f32 %v1294, 0.1
    %v1311 = vmul.f32 %v1295, 0.1
    %v1312 = vmul.f32 %v1296, 0.1
    %v1313 = vsel %vm1297, %v1289, %v1305
    %v1314 = vsel %vm1298, %v1290, %v1306
    %v1315 = vsel %vm1299, %v1291, %v1307
    %v1316 = vsel %vm1300, %v1292, %v1308
    %v1317 = vsel %vm1301, %v1293, %v1309
    %v1318 = vsel %vm1302, %v1294, %v1310
    %v1319 = vsel %vm1303, %v1295, %v1311
    %v1320 = vsel %vm1304, %v1296, %v1312
    %v1321 = vsel %vm190, %v1313, 0.0
    %v1322 = vrot.slane %v1321, 4
    %v1323 = vadd.f32 %v1321, %v1322
    %v1324 = vrot.slane %v1323, 2
    %v1325 = vadd.f32 %v1323, %v1324
    %v1326 = vrot.slane %v1325, 1
    %v1327 = vadd.f32 %v1325, %v1326
    %v1328 = vsel %vm190, %v1314, 0.0
    %v1329 = vrot.slane %v1328, 4
    %v1330 = vadd.f32 %v1328, %v1329
    %v1331 = vrot.slane %v1330, 2
    %v1332 = vadd.f32 %v1330, %v1331
    %v1333 = vrot.slane %v1332, 1
    %v1334 = vadd.f32 %v1332, %v1333
    %v1335 = vsel %vm190, %v1315, 0.0
    %v1336 = vrot.slane %v1335, 4
    %v1337 = vadd.f32 %v1335, %v1336
    %v1338 = vrot.slane %v1337, 2
    %v1339 = vadd.f32 %v1337, %v1338
    %v1340 = vrot.slane %v1339, 1
    %v1341 = vadd.f32 %v1339, %v1340
    %v1342 = vsel %vm190, %v1316, 0.0
    %v1343 = vrot.slane %v1342, 4
    %v1344 = vadd.f32 %v1342, %v1343
    %v1345 = vrot.slane %v1344, 2
    %v1346 = vadd.f32 %v1344, %v1345
    %v1347 = vrot.slane %v1346, 1
    %v1348 = vadd.f32 %v1346, %v1347
    %v1349 = vsel %vm190, %v1317, 0.0
    %v1350 = vrot.slane %v1349, 4
    %v1351 = vadd.f32 %v1349, %v1350
    %v1352 = vrot.slane %v1351, 2
    %v1353 = vadd.f32 %v1351, %v1352
    %v1354 = vrot.slane %v1353, 1
    %v1355 = vadd.f32 %v1353, %v1354
    %v1356 = vsel %vm190, %v1318, 0.0
    %v1357 = vrot.slane %v1356, 4
    %v1358 = vadd.f32 %v1356, %v1357
    %v1359 = vrot.slane %v1358, 2
    %v1360 = vadd.f32 %v1358, %v1359
    %v1361 = vrot.slane %v1360, 1
    %v1362 = vadd.f32 %v1360, %v1361
    %v1363 = vsel %vm190, %v1319, 0.0
    %v1364 = vrot.slane %v1363, 4
    %v1365 = vadd.f32 %v1363, %v1364
    %v1366 = vrot.slane %v1365, 2
    %v1367 = vadd.f32 %v1365, %v1366
    %v1368 = vrot.slane %v1367, 1
    %v1369 = vadd.f32 %v1367, %v1368
    %v1370 = vsel %vm190, %v1320, 0.0
    %v1371 = vrot.slane %v1370, 4
    %v1372 = vadd.f32 %v1370, %v1371
    %v1373 = vrot.slane %v1372, 2
    %v1374 = vadd.f32 %v1372, %v1373
    %v1375 = vrot.slane %v1374, 1
    %v1376 = vadd.f32 %v1374, %v1375
    %1377 = vmatprep.subr.mxu0 0.0
    %1378 = vmatpush1.msra.mxu0 0.0
    %1379 = vmatprep.subr.mxu0 0.0
    %1380 = vmatpush1.msra.mxu0 0.0
    %1381 = vmatprep.subr.mxu0 0.0
    %1382 = vmatpush1.msra.mxu0 0.0
    %1383 = vmatprep.subr.mxu0 0.0
    %1384 = vmatpush1.msra.mxu0 0.0
    %1385 = vmatprep.subr.mxu0 0.0
    %1386 = vmatpush1.msra.mxu0 0.0
    %1387 = vmatprep.subr.mxu0 0.0
    %1388 = vmatpush1.msra.mxu0 0.0
    %1389 = vmatprep.subr.mxu0 0.0
    %1390 = vmatpush1.msra.mxu0 0.0
    %1391 = vmatprep.subr.mxu0 0.0
    %1392 = vmatpush1.msra.mxu0 0.0
    %1393 = vmatprep.subr.mxu0 0.0
    %1394 = vmatpush1.msra.mxu0 0.0
    %1395 = vmatprep.subr.mxu0 0.0
    %1396 = vmatpush1.msra.mxu0 0.0
    %1397 = vmatprep.subr.mxu0 0.0
    %1398 = vmatpush1.msra.mxu0 0.0
    %1399 = vmatprep.subr.mxu0 0.0
    %1400 = vmatpush1.msra.mxu0 0.0
    %1401 = vmatprep.subr.mxu0 0.0
    %1402 = vmatpush1.msra.mxu0 %v879
    %1403 = vmatprep.subr.mxu0 0.0
    %1404 = vmatpush1.msra.mxu0 %v878
    %1405 = vmatprep.subr.mxu0 0.0
    %1406 = vmatpush1.msra.mxu0 %v877
    %1407 = vmatprep.subr.mxu0 0.0
    %1408 = vmatpush1.msra.mxu0 %v876
    %1409 = vmatprep.subr.mxu0 0.0
    %1410 = vmatpush2.msra.mxu0 0.0
    %1411 = vmatprep.subr.mxu0 0.0
    %1412 = vmatpush2.msra.mxu0 0.0
    %1413 = vmatprep.subr.mxu0 0.0
    %1414 = vmatpush2.msra.mxu0 0.0
    %1415 = vmatprep.subr.mxu0 0.0
    %1416 = vmatpush2.msra.mxu0 0.0
    %1417 = vmatprep.subr.mxu0 0.0
    %1418 = vmatpush2.msra.mxu0 0.0
    %1419 = vmatprep.subr.mxu0 0.0
    %1420 = vmatpush2.msra.mxu0 0.0
    %1421 = vmatprep.subr.mxu0 0.0
    %1422 = vmatpush2.msra.mxu0 0.0
    %1423 = vmatprep.subr.mxu0 0.0
    %1424 = vmatpush2.msra.mxu0 0.0
    %1425 = vmatprep.subr.mxu0 0.0
    %1426 = vmatpush2.msra.mxu0 0.0
    %1427 = vmatprep.subr.mxu0 0.0
    %1428 = vmatpush2.msra.mxu0 0.0
    %1429 = vmatprep.subr.mxu0 0.0
    %1430 = vmatpush2.msra.mxu0 0.0
    %1431 = vmatprep.subr.mxu0 0.0
    %1432 = vmatpush2.msra.mxu0 0.0
    %1433 = vmatprep.subr.mxu0 0.0
    %1434 = vmatpush2.msra.mxu0 0.0
    %1435 = vmatprep.subr.mxu0 0.0
    %1436 = vmatpush2.msra.mxu0 0.0
    %1437 = vmatprep.subr.mxu0 0.0
    %1438 = vmatpush2.msra.mxu0 0.0
    %1439 = vmatprep.subr.mxu0 0.0
    %1440 = vmatpush2.msra.mxu0 0.0
    %1441 = vmatprep.mubr.f32.mxu0 0.0
    %1442 = vmatmul.mubr.f32.gmra.mxu0 %v882
    %v1443 = vpop.f32.mrf.mxu0
    %v1444 = vadd.f32 0.0, %v1443
    %v1445 = vpop.f32.mrf.mxu0
    %1446 = vdwg.mxu0
    %v1455 = vsel %vm766, %v1334, %v1327
    %v1456 = vsel %vm768, %v1341, %v1455
    %v1457 = vsel %vm770, %v1348, %v1456
    %v1458 = vsel %vm772, %v1355, %v1457
    %v1459 = vsel %vm774, %v1362, %v1458
    %v1460 = vsel %vm776, %v1369, %v1459
    %v1461 = vsel %vm778, %v1376, %v1460
    %v1462 = vsel %vm190, %v1461, 0
    %1464 = vmatprep.subr.mxu0 0.0
    %1465 = vmatpush1.msra.mxu0 0.0
    %1466 = vmatprep.subr.mxu0 0.0
    %1467 = vmatpush1.msra.mxu0 0.0
    %1468 = vmatprep.subr.mxu0 0.0
    %1469 = vmatpush1.msra.mxu0 0.0
    %1470 = vmatprep.subr.mxu0 0.0
    %1471 = vmatpush1.msra.mxu0 0.0
    %1472 = vmatprep.subr.mxu0 0.0
    %1473 = vmatpush1.msra.mxu0 0.0
    %1474 = vmatprep.subr.mxu0 0.0
    %1475 = vmatpush1.msra.mxu0 0.0
    %1476 = vmatprep.subr.mxu0 0.0
    %1477 = vmatpush1.msra.mxu0 0.0
    %1478 = vmatprep.subr.mxu0 0.0
    %1479 = vmatpush1.msra.mxu0 0.0
    %1480 = vmatprep.subr.mxu0 0.0
    %1481 = vmatpush1.msra.mxu0 0.0
    %1482 = vmatprep.subr.mxu0 0.0
    %1483 = vmatpush1.msra.mxu0 0.0
    %1484 = vmatprep.subr.mxu0 0.0
    %1485 = vmatpush1.msra.mxu0 0.0
    %1486 = vmatprep.subr.mxu0 0.0
    %1487 = vmatpush1.msra.mxu0 0.0
    %1488 = vmatprep.subr.mxu0 0.0
    %1489 = vmatpush1.msra.mxu0 %v875
    %1490 = vmatprep.subr.mxu0 0.0
    %1491 = vmatpush1.msra.mxu0 %v874
    %1492 = vmatprep.subr.mxu0 0.0
    %1493 = vmatpush1.msra.mxu0 %v873
    %1494 = vmatprep.subr.mxu0 0.0
    %1495 = vmatpush1.msra.mxu0 %v872
    %1496 = vmatprep.subr.mxu0 0.0
    %1497 = vmatpush2.msra.mxu0 0.0
    %1498 = vmatprep.subr.mxu0 0.0
    %1499 = vmatpush2.msra.mxu0 0.0
    %1500 = vmatprep.subr.mxu0 0.0
    %1501 = vmatpush2.msra.mxu0 0.0
    %1502 = vmatprep.subr.mxu0 0.0
    %1503 = vmatpush2.msra.mxu0 0.0
    %1504 = vmatprep.subr.mxu0 0.0
    %1505 = vmatpush2.msra.mxu0 0.0
    %1506 = vmatprep.subr.mxu0 0.0
    %1507 = vmatpush2.msra.mxu0 0.0
    %1508 = vmatprep.subr.mxu0 0.0
    %1509 = vmatpush2.msra.mxu0 0.0
    %1510 = vmatprep.subr.mxu0 0.0
    %1511 = vmatpush2.msra.mxu0 0.0
    %1512 = vmatprep.subr.mxu0 0.0
    %1513 = vmatpush2.msra.mxu0 0.0
    %1514 = vmatprep.subr.mxu0 0.0
    %1515 = vmatpush2.msra.mxu0 0.0
    %1516 = vmatprep.subr.mxu0 0.0
    %1517 = vmatpush2.msra.mxu0 0.0
    %1518 = vmatprep.subr.mxu0 0.0
    %1519 = vmatpush2.msra.mxu0 0.0
    %1520 = vmatprep.subr.mxu0 0.0
    %1521 = vmatpush2.msra.mxu0 0.0
    %1522 = vmatprep.subr.mxu0 0.0
    %1523 = vmatpush2.msra.mxu0 0.0
    %1524 = vmatprep.subr.mxu0 0.0
    %1525 = vmatpush2.msra.mxu0 0.0
    %1526 = vmatprep.subr.mxu0 0.0
    %1527 = vmatpush2.msra.mxu0 0.0
    %1528 = vmatprep.mubr.f32.mxu0 0.0
    %1529 = vmatmul.mubr.f32.gmra.mxu0 %v1462
    %v1530 = vpop.f32.mrf.mxu0
    %v1531 = vadd.f32 %v1444, %v1530
    %v1532 = vpop.f32.mrf.mxu0
    %1533 = vdwg.mxu0
    %v1535 = vlaneseq
    %v1536 = vshrl.u32 %v1535, 7
    %v1537 = vsub.s32 0, %v1536
    %v1538 = vrot.slane %v880, %v1537
    %v1540 = vadd.f32 %v1531, %v1538
    %vm1541 = vcmp.ge.f32.partialorder %v1540, 0.0
    %v1542 = vmul.f32 %v1540, 0.1
    %v1543 = vsel %vm1541, %v1540, %v1542
    %v1544 = vlaneseq
    %v1545 = vshrl.u32 %v1544, 7
    %v1546 = vsub.s32 0, %v1545
    %v1547 = vrot.slane %v1543, %v1546
    %1549 = vbcast.lane.b32.xlu0 %v1547, 256
    %v1550 = vpop.permute.xlu0 %1549
    %s1552 = sor.u32 256, 8
    %1553 = vbcast.lane.b32.xlu0 %v1547, %s1552
    %v1554 = vpop.permute.xlu0 %1553
    %s1556 = sor.u32 256, 16
    %1557 = vbcast.lane.b32.xlu0 %v1547, %s1556
    %v1558 = vpop.permute.xlu0 %1557
    %s1560 = sor.u32 256, 24
    %1561 = vbcast.lane.b32.xlu0 %v1547, %s1560
    %v1562 = vpop.permute.xlu0 %1561
    %v1563 = vlaneseq
    %v1564 = vshrl.u32 %v1563, 7
    %v1565 = vsub.s32 1, %v1564
    %v1566 = vrot.slane %v1543, %v1565
    %1568 = vbcast.lane.b32.xlu0 %v1566, 256
    %v1569 = vpop.permute.xlu0 %1568
    %s1571 = sor.u32 256, 8
    %1572 = vbcast.lane.b32.xlu0 %v1566, %s1571
    %v1573 = vpop.permute.xlu0 %1572
    %s1575 = sor.u32 256, 16
    %1576 = vbcast.lane.b32.xlu0 %v1566, %s1575
    %v1577 = vpop.permute.xlu0 %1576
    %s1579 = sor.u32 256, 24
    %1580 = vbcast.lane.b32.xlu0 %v1566, %s1579
    %v1581 = vpop.permute.xlu0 %1580
    %v1582 = vlaneseq
    %v1583 = vshrl.u32 %v1582, 7
    %v1584 = vsub.s32 2, %v1583
    %v1585 = vrot.slane %v1543, %v1584
    %1587 = vbcast.lane.b32.xlu0 %v1585, 256
    %v1588 = vpop.permute.xlu0 %1587
    %s1590 = sor.u32 256, 8
    %1591 = vbcast.lane.b32.xlu0 %v1585, %s1590
    %v1592 = vpop.permute.xlu0 %1591
    %s1594 = sor.u32 256, 16
    %1595 = vbcast.lane.b32.xlu0 %v1585, %s1594
    %v1596 = vpop.permute.xlu0 %1595
    %s1598 = sor.u32 256, 24
    %1599 = vbcast.lane.b32.xlu0 %v1585, %s1598
    %v1600 = vpop.permute.xlu0 %1599
    %v1601 = vlaneseq
    %v1602 = vshrl.u32 %v1601, 7
    %v1603 = vsub.s32 3, %v1602
    %v1604 = vrot.slane %v1543, %v1603
    %1606 = vbcast.lane.b32.xlu0 %v1604, 256
    %v1607 = vpop.permute.xlu0 %1606
    %s1609 = sor.u32 256, 8
    %1610 = vbcast.lane.b32.xlu0 %v1604, %s1609
    %v1611 = vpop.permute.xlu0 %1610
    %s1613 = sor.u32 256, 16
    %1614 = vbcast.lane.b32.xlu0 %v1604, %s1613
    %v1615 = vpop.permute.xlu0 %1614
    %s1617 = sor.u32 256, 24
    %1618 = vbcast.lane.b32.xlu0 %v1604, %s1617
    %v1619 = vpop.permute.xlu0 %1618
    %v1620 = vlaneseq
    %v1621 = vshrl.u32 %v1620, 7
    %v1622 = vsub.s32 4, %v1621
    %v1623 = vrot.slane %v1543, %v1622
    %1625 = vbcast.lane.b32.xlu0 %v1623, 256
    %v1626 = vpop.permute.xlu0 %1625
    %s1628 = sor.u32 256, 8
    %1629 = vbcast.lane.b32.xlu0 %v1623, %s1628
    %v1630 = vpop.permute.xlu0 %1629
    %s1632 = sor.u32 256, 16
    %1633 = vbcast.lane.b32.xlu0 %v1623, %s1632
    %v1634 = vpop.permute.xlu0 %1633
    %s1636 = sor.u32 256, 24
    %1637 = vbcast.lane.b32.xlu0 %v1623, %s1636
    %v1638 = vpop.permute.xlu0 %1637
    %v1639 = vlaneseq
    %v1640 = vshrl.u32 %v1639, 7
    %v1641 = vsub.s32 5, %v1640
    %v1642 = vrot.slane %v1543, %v1641
    %1644 = vbcast.lane.b32.xlu0 %v1642, 256
    %v1645 = vpop.permute.xlu0 %1644
    %s1647 = sor.u32 256, 8
    %1648 = vbcast.lane.b32.xlu0 %v1642, %s1647
    %v1649 = vpop.permute.xlu0 %1648
    %s1651 = sor.u32 256, 16
    %1652 = vbcast.lane.b32.xlu0 %v1642, %s1651
    %v1653 = vpop.permute.xlu0 %1652
    %s1655 = sor.u32 256, 24
    %1656 = vbcast.lane.b32.xlu0 %v1642, %s1655
    %v1657 = vpop.permute.xlu0 %1656
    %v1658 = vlaneseq
    %v1659 = vshrl.u32 %v1658, 7
    %v1660 = vsub.s32 6, %v1659
    %v1661 = vrot.slane %v1543, %v1660
    %1663 = vbcast.lane.b32.xlu0 %v1661, 256
    %v1664 = vpop.permute.xlu0 %1663
    %s1666 = sor.u32 256, 8
    %1667 = vbcast.lane.b32.xlu0 %v1661, %s1666
    %v1668 = vpop.permute.xlu0 %1667
    %s1670 = sor.u32 256, 16
    %1671 = vbcast.lane.b32.xlu0 %v1661, %s1670
    %v1672 = vpop.permute.xlu0 %1671
    %s1674 = sor.u32 256, 24
    %1675 = vbcast.lane.b32.xlu0 %v1661, %s1674
    %v1676 = vpop.permute.xlu0 %1675
    %v1677 = vlaneseq
    %v1678 = vshrl.u32 %v1677, 7
    %v1679 = vsub.s32 7, %v1678
    %v1680 = vrot.slane %v1543, %v1679
    %1682 = vbcast.lane.b32.xlu0 %v1680, 256
    %v1683 = vpop.permute.xlu0 %1682
    %s1685 = sor.u32 256, 8
    %1686 = vbcast.lane.b32.xlu0 %v1680, %s1685
    %v1687 = vpop.permute.xlu0 %1686
    %s1689 = sor.u32 256, 16
    %1690 = vbcast.lane.b32.xlu0 %v1680, %s1689
    %v1691 = vpop.permute.xlu0 %1690
    %s1693 = sor.u32 256, 24
    %1694 = vbcast.lane.b32.xlu0 %v1680, %s1693
    %v1695 = vpop.permute.xlu0 %1694
    %v1696 = vld [vmem:[%s17] sm:$0xff]
    %v1697 = vld [vmem:[%s17 + $0x8] sm:$0xff]
    %v1698 = vld [vmem:[%s17 + $0x10] sm:$0xff]
    %v1699 = vld [vmem:[%s17 + $0x18] sm:$0xff]
    %v1700 = vld [vmem:[%s17 + $0x20] sm:$0xff]
    %v1701 = vld [vmem:[%s17 + $0x28] sm:$0xff]
    %v1702 = vld [vmem:[%s17 + $0x30] sm:$0xff]
    %v1703 = vld [vmem:[%s17 + $0x38] sm:$0xff]
    %v1704 = vld [vmem:[%s17 + $0x40] sm:$0xff]
    %v1705 = vld [vmem:[%s17 + $0x48] sm:$0xff]
    %v1706 = vld [vmem:[%s17 + $0x50] sm:$0xff]
    %v1707 = vld [vmem:[%s17 + $0x58] sm:$0xff]
    %v1708 = vld [vmem:[%s17 + $0x60] sm:$0xff]
    %v1709 = vld [vmem:[%s17 + $0x68] sm:$0xff]
    %v1710 = vld [vmem:[%s17 + $0x70] sm:$0xff]
    %v1711 = vld [vmem:[%s17 + $0x78] sm:$0xff]
    %v1712 = vld [vmem:[%s17 + $0x80] sm:$0xff]
    %v1713 = vld [vmem:[%s17 + $0x88] sm:$0xff]
    %v1714 = vld [vmem:[%s17 + $0x90] sm:$0xff]
    %v1715 = vld [vmem:[%s17 + $0x98] sm:$0xff]
    %v1716 = vld [vmem:[%s17 + $0xa0] sm:$0xff]
    %v1717 = vld [vmem:[%s17 + $0xa8] sm:$0xff]
    %v1718 = vld [vmem:[%s17 + $0xb0] sm:$0xff]
    %v1719 = vld [vmem:[%s17 + $0xb8] sm:$0xff]
    %v1720 = vld [vmem:[%s17 + $0xc0] sm:$0xff]
    %v1721 = vld [vmem:[%s17 + $0xc8] sm:$0xff]
    %v1722 = vld [vmem:[%s17 + $0xd0] sm:$0xff]
    %v1723 = vld [vmem:[%s17 + $0xd8] sm:$0xff]
    %v1724 = vld [vmem:[%s17 + $0xe0] sm:$0xff]
    %v1725 = vld [vmem:[%s17 + $0xe8] sm:$0xff]
    %v1726 = vld [vmem:[%s17 + $0xf0] sm:$0xff]
    %v1727 = vld [vmem:[%s17 + $0xf8] sm:$0xff]
    %v1728 = vmul.f32 %v1550, %v1696
    %v1729 = vmul.f32 %v1554, %v1697
    %v1730 = vmul.f32 %v1558, %v1698
    %v1731 = vmul.f32 %v1562, %v1699
    %v1732 = vmul.f32 %v1569, %v1700
    %v1733 = vmul.f32 %v1573, %v1701
    %v1734 = vmul.f32 %v1577, %v1702
    %v1735 = vmul.f32 %v1581, %v1703
    %v1736 = vmul.f32 %v1588, %v1704
    %v1737 = vmul.f32 %v1592, %v1705
    %v1738 = vmul.f32 %v1596, %v1706
    %v1739 = vmul.f32 %v1600, %v1707
    %v1740 = vmul.f32 %v1607, %v1708
    %v1741 = vmul.f32 %v1611, %v1709
    %v1742 = vmul.f32 %v1615, %v1710
    %v1743 = vmul.f32 %v1619, %v1711
    %v1744 = vmul.f32 %v1626, %v1712
    %v1745 = vmul.f32 %v1630, %v1713
    %v1746 = vmul.f32 %v1634, %v1714
    %v1747 = vmul.f32 %v1638, %v1715
    %v1748 = vmul.f32 %v1645, %v1716
    %v1749 = vmul.f32 %v1649, %v1717
    %v1750 = vmul.f32 %v1653, %v1718
    %v1751 = vmul.f32 %v1657, %v1719
    %v1752 = vmul.f32 %v1664, %v1720
    %v1753 = vmul.f32 %v1668, %v1721
    %v1754 = vmul.f32 %v1672, %v1722
    %v1755 = vmul.f32 %v1676, %v1723
    %v1756 = vmul.f32 %v1683, %v1724
    %v1757 = vmul.f32 %v1687, %v1725
    %v1758 = vmul.f32 %v1691, %v1726
    %v1759 = vmul.f32 %v1695, %v1727
    %vm1760 = vcmask 130048
    %v1761 = vsel %vm1760, %v1728, 0.0
    %v1762 = vsel %vm1760, %v1732, 0.0
    %v1763 = vadd.f32 %v1761, %v1762
    %v1764 = vsel %vm1760, %v1736, 0.0
    %v1765 = vadd.f32 %v1763, %v1764
    %v1766 = vsel %vm1760, %v1740, 0.0
    %v1767 = vadd.f32 %v1765, %v1766
    %v1768 = vsel %vm1760, %v1744, 0.0
    %v1769 = vadd.f32 %v1767, %v1768
    %v1770 = vsel %vm1760, %v1748, 0.0
    %v1771 = vadd.f32 %v1769, %v1770
    %v1772 = vsel %vm1760, %v1752, 0.0
    %v1773 = vadd.f32 %v1771, %v1772
    %v1774 = vsel %vm1760, %v1756, 0.0
    %v1775 = vadd.f32 %v1773, %v1774
    %v1776 = vsel %vm1760, %v1729, 0.0
    %v1777 = vsel %vm1760, %v1733, 0.0
    %v1778 = vadd.f32 %v1776, %v1777
    %v1779 = vsel %vm1760, %v1737, 0.0
    %v1780 = vadd.f32 %v1778, %v1779
    %v1781 = vsel %vm1760, %v1741, 0.0
    %v1782 = vadd.f32 %v1780, %v1781
    %v1783 = vsel %vm1760, %v1745, 0.0
    %v1784 = vadd.f32 %v1782, %v1783
    %v1785 = vsel %vm1760, %v1749, 0.0
    %v1786 = vadd.f32 %v1784, %v1785
    %v1787 = vsel %vm1760, %v1753, 0.0
    %v1788 = vadd.f32 %v1786, %v1787
    %v1789 = vsel %vm1760, %v1757, 0.0
    %v1790 = vadd.f32 %v1788, %v1789
    %v1791 = vsel %vm1760, %v1730, 0.0
    %v1792 = vsel %vm1760, %v1734, 0.0
    %v1793 = vadd.f32 %v1791, %v1792
    %v1794 = vsel %vm1760, %v1738, 0.0
    %v1795 = vadd.f32 %v1793, %v1794
    %v1796 = vsel %vm1760, %v1742, 0.0
    %v1797 = vadd.f32 %v1795, %v1796
    %v1798 = vsel %vm1760, %v1746, 0.0
    %v1799 = vadd.f32 %v1797, %v1798
    %v1800 = vsel %vm1760, %v1750, 0.0
    %v1801 = vadd.f32 %v1799, %v1800
    %v1802 = vsel %vm1760, %v1754, 0.0
    %v1803 = vadd.f32 %v1801, %v1802
    %v1804 = vsel %vm1760, %v1758, 0.0
    %v1805 = vadd.f32 %v1803, %v1804
    %v1806 = vsel %vm1760, %v1731, 0.0
    %v1807 = vsel %vm1760, %v1735, 0.0
    %v1808 = vadd.f32 %v1806, %v1807
    %v1809 = vsel %vm1760, %v1739, 0.0
    %v1810 = vadd.f32 %v1808, %v1809
    %v1811 = vsel %vm1760, %v1743, 0.0
    %v1812 = vadd.f32 %v1810, %v1811
    %v1813 = vsel %vm1760, %v1747, 0.0
    %v1814 = vadd.f32 %v1812, %v1813
    %v1815 = vsel %vm1760, %v1751, 0.0
    %v1816 = vadd.f32 %v1814, %v1815
    %v1817 = vsel %vm1760, %v1755, 0.0
    %v1818 = vadd.f32 %v1816, %v1817
    %v1819 = vsel %vm1760, %v1759, 0.0
    %v1820 = vadd.f32 %v1818, %v1819
    %v1821 = vsel %vm1760, %v1775, 0.0
    %v1822 = vsel %vm1760, %v1790, 0.0
    %v1823 = vadd.f32 %v1821, %v1822
    %v1824 = vsel %vm1760, %v1805, 0.0
    %v1825 = vadd.f32 %v1823, %v1824
    %v1826 = vsel %vm1760, %v1820, 0.0
    %v1827 = vadd.f32 %v1825, %v1826
    %v1828 = vrot.slane %v1827, 4
    %v1829 = vadd.f32 %v1827, %v1828
    %v1830 = vrot.slane %v1829, 2
    %v1831 = vadd.f32 %v1829, %v1830
    %v1832 = vrot.slane %v1831, 1
    %v1833 = vadd.f32 %v1831, %v1832
    %v1834 = vld [vmem:[%s18] sm:$0x1]
    %v1835 = vadd.f32 %v1833, %v1834
    %v1837 = vsel %vm190, %v170, 0
    %1839 = vmatprep.subr.mxu0 0.0
    %1840 = vmatpush1.xpose.msra.mxu0 0.0
    %1841 = vmatprep.subr.mxu0 0.0
    %1842 = vmatpush1.xpose.msra.mxu0 0.0
    %1843 = vmatprep.subr.mxu0 0.0
    %1844 = vmatpush1.xpose.msra.mxu0 0.0
    %1845 = vmatprep.subr.mxu0 0.0
    %1846 = vmatpush1.xpose.msra.mxu0 0.0
    %1847 = vmatprep.subr.mxu0 0.0
    %1848 = vmatpush1.xpose.msra.mxu0 0.0
    %1849 = vmatprep.subr.mxu0 0.0
    %1850 = vmatpush1.xpose.msra.mxu0 0.0
    %1851 = vmatprep.subr.mxu0 0.0
    %1852 = vmatpush1.xpose.msra.mxu0 0.0
    %1853 = vmatprep.subr.mxu0 0.0
    %1854 = vmatpush1.xpose.msra.mxu0 0.0
    %1855 = vmatprep.subr.mxu0 0.0
    %1856 = vmatpush1.xpose.msra.mxu0 0.0
    %1857 = vmatprep.subr.mxu0 0.0
    %1858 = vmatpush1.xpose.msra.mxu0 0.0
    %1859 = vmatprep.subr.mxu0 0.0
    %1860 = vmatpush1.xpose.msra.mxu0 0.0
    %1861 = vmatprep.subr.mxu0 0.0
    %1862 = vmatpush1.xpose.msra.mxu0 0.0
    %1863 = vmatprep.subr.mxu0 0.0
    %1864 = vmatpush1.xpose.msra.mxu0 0.0
    %1865 = vmatprep.subr.mxu0 0.0
    %1866 = vmatpush1.xpose.msra.mxu0 0.0
    %1867 = vmatprep.subr.mxu0 0.0
    %1868 = vmatpush1.xpose.msra.mxu0 0.0
    %1869 = vmatprep.subr.mxu0 0.0
    %1870 = vmatpush1.xpose.msra.mxu0 %v1837
    %1871 = vmatprep.subr.mxu0 0.0
    %1872 = vmatpush2.xpose.msra.mxu0 0.0
    %1873 = vmatprep.subr.mxu0 0.0
    %1874 = vmatpush2.xpose.msra.mxu0 0.0
    %1875 = vmatprep.subr.mxu0 0.0
    %1876 = vmatpush2.xpose.msra.mxu0 0.0
    %1877 = vmatprep.subr.mxu0 0.0
    %1878 = vmatpush2.xpose.msra.mxu0 0.0
    %1879 = vmatprep.subr.mxu0 0.0
    %1880 = vmatpush2.xpose.msra.mxu0 0.0
    %1881 = vmatprep.subr.mxu0 0.0
    %1882 = vmatpush2.xpose.msra.mxu0 0.0
    %1883 = vmatprep.subr.mxu0 0.0
    %1884 = vmatpush2.xpose.msra.mxu0 0.0
    %1885 = vmatprep.subr.mxu0 0.0
    %1886 = vmatpush2.xpose.msra.mxu0 0.0
    %1887 = vmatprep.subr.mxu0 0.0
    %1888 = vmatpush2.xpose.msra.mxu0 0.0
    %1889 = vmatprep.subr.mxu0 0.0
    %1890 = vmatpush2.xpose.msra.mxu0 0.0
    %1891 = vmatprep.subr.mxu0 0.0
    %1892 = vmatpush2.xpose.msra.mxu0 0.0
    %1893 = vmatprep.subr.mxu0 0.0
    %1894 = vmatpush2.xpose.msra.mxu0 0.0
    %1895 = vmatprep.subr.mxu0 0.0
    %1896 = vmatpush2.xpose.msra.mxu0 0.0
    %1897 = vmatprep.subr.mxu0 0.0
    %1898 = vmatpush2.xpose.msra.mxu0 0.0
    %1899 = vmatprep.subr.mxu0 0.0
    %1900 = vmatpush2.xpose.msra.mxu0 0.0
    %1901 = vmatprep.subr.mxu0 0.0
    %1902 = vmatpush2.xpose.msra.mxu0 0.0
    %1903 = vmatprep.mubr.f32.mxu0 0.0
    %1904 = vmatmul.mubr.f32.gmra.mxu0 %v1837
    %v1905 = vpop.f32.mrf.mxu0
    %v1906 = vadd.f32 0.0, %v1905
    %v1907 = vpop.f32.mrf.mxu0
    %1908 = vdwg.mxu0
    %v1909 = vmul.f32 %v1906, %v68
    %v1910 = vsel %vm265, %v1909, 0.0
    %1911 = vadd.xlane.f32.xlu0 %v1910
    %v1912 = vpop.xlane.xlu0 %1911
    %v1913 = vrot.slane %v1910, 4
    %v1914 = vadd.f32 %v1910, %v1913
    %v1915 = vrot.slane %v1914, 2
    %v1916 = vadd.f32 %v1914, %v1915
    %v1917 = vrot.slane %v1916, 1
    %v1918 = vadd.f32 %v1916, %v1917
    %v1919 = vadd.f32 %v1912, %v1918
    %v1920 = vmul.f32 %v1906, 2.0
    %v1921 = vsub.f32 %v1919, %v1920
    %1922 = vmatprep.subr.mxu0 0.0
    %1923 = vmatpush1.msra.mxu0 0.0
    %1924 = vmatprep.subr.mxu0 0.0
    %1925 = vmatpush1.msra.mxu0 0.0
    %1926 = vmatprep.subr.mxu0 0.0
    %1927 = vmatpush1.msra.mxu0 0.0
    %1928 = vmatprep.subr.mxu0 0.0
    %1929 = vmatpush1.msra.mxu0 0.0
    %1930 = vmatprep.subr.mxu0 0.0
    %1931 = vmatpush1.msra.mxu0 0.0
    %1932 = vmatprep.subr.mxu0 0.0
    %1933 = vmatpush1.msra.mxu0 0.0
    %1934 = vmatprep.subr.mxu0 0.0
    %1935 = vmatpush1.msra.mxu0 0.0
    %1936 = vmatprep.subr.mxu0 0.0
    %1937 = vmatpush1.msra.mxu0 0.0
    %1938 = vmatprep.subr.mxu0 0.0
    %1939 = vmatpush1.msra.mxu0 0.0
    %1940 = vmatprep.subr.mxu0 0.0
    %1941 = vmatpush1.msra.mxu0 0.0
    %1942 = vmatprep.subr.mxu0 0.0
    %1943 = vmatpush1.msra.mxu0 0.0
    %1944 = vmatprep.subr.mxu0 0.0
    %1945 = vmatpush1.msra.mxu0 0.0
    %1946 = vmatprep.subr.mxu0 0.0
    %1947 = vmatpush1.msra.mxu0 %v174
    %1948 = vmatprep.subr.mxu0 0.0
    %1949 = vmatpush1.msra.mxu0 %v173
    %1950 = vmatprep.subr.mxu0 0.0
    %1951 = vmatpush1.msra.mxu0 %v172
    %1952 = vmatprep.subr.mxu0 0.0
    %1953 = vmatpush1.msra.mxu0 %v171
    %1954 = vmatprep.subr.mxu0 0.0
    %1955 = vmatpush2.msra.mxu0 0.0
    %1956 = vmatprep.subr.mxu0 0.0
    %1957 = vmatpush2.msra.mxu0 0.0
    %1958 = vmatprep.subr.mxu0 0.0
    %1959 = vmatpush2.msra.mxu0 0.0
    %1960 = vmatprep.subr.mxu0 0.0
    %1961 = vmatpush2.msra.mxu0 0.0
    %1962 = vmatprep.subr.mxu0 0.0
    %1963 = vmatpush2.msra.mxu0 0.0
    %1964 = vmatprep.subr.mxu0 0.0
    %1965 = vmatpush2.msra.mxu0 0.0
    %1966 = vmatprep.subr.mxu0 0.0
    %1967 = vmatpush2.msra.mxu0 0.0
    %1968 = vmatprep.subr.mxu0 0.0
    %1969 = vmatpush2.msra.mxu0 0.0
    %1970 = vmatprep.subr.mxu0 0.0
    %1971 = vmatpush2.msra.mxu0 0.0
    %1972 = vmatprep.subr.mxu0 0.0
    %1973 = vmatpush2.msra.mxu0 0.0
    %1974 = vmatprep.subr.mxu0 0.0
    %1975 = vmatpush2.msra.mxu0 0.0
    %1976 = vmatprep.subr.mxu0 0.0
    %1977 = vmatpush2.msra.mxu0 0.0
    %1978 = vmatprep.subr.mxu0 0.0
    %1979 = vmatpush2.msra.mxu0 0.0
    %1980 = vmatprep.subr.mxu0 0.0
    %1981 = vmatpush2.msra.mxu0 0.0
    %1982 = vmatprep.subr.mxu0 0.0
    %1983 = vmatpush2.msra.mxu0 0.0
    %1984 = vmatprep.subr.mxu0 0.0
    %1985 = vmatpush2.msra.mxu0 0.0
    %1986 = vmatprep.mubr.f32.mxu0 0.0
    %1987 = vmatmul.mubr.f32.gmra.mxu0 %v1837
    %v1988 = vpop.f32.mrf.mxu0
    %v1989 = vadd.f32 0.0, %v1988
    %v1990 = vpop.f32.mrf.mxu0
    %1991 = vdwg.mxu0
    %1992 = vmatprep.subr.mxu0 0.0
    %1993 = vmatpush1.msra.mxu0 0.0
    %1994 = vmatprep.subr.mxu0 0.0
    %1995 = vmatpush1.msra.mxu0 0.0
    %1996 = vmatprep.subr.mxu0 0.0
    %1997 = vmatpush1.msra.mxu0 0.0
    %1998 = vmatprep.subr.mxu0 0.0
    %1999 = vmatpush1.msra.mxu0 0.0
    %2000 = vmatprep.subr.mxu0 0.0
    %2001 = vmatpush1.msra.mxu0 0.0
    %2002 = vmatprep.subr.mxu0 0.0
    %2003 = vmatpush1.msra.mxu0 0.0
    %2004 = vmatprep.subr.mxu0 0.0
    %2005 = vmatpush1.msra.mxu0 0.0
    %2006 = vmatprep.subr.mxu0 0.0
    %2007 = vmatpush1.msra.mxu0 0.0
    %2008 = vmatprep.subr.mxu0 0.0
    %2009 = vmatpush1.msra.mxu0 0.0
    %2010 = vmatprep.subr.mxu0 0.0
    %2011 = vmatpush1.msra.mxu0 0.0
    %2012 = vmatprep.subr.mxu0 0.0
    %2013 = vmatpush1.msra.mxu0 0.0
    %2014 = vmatprep.subr.mxu0 0.0
    %2015 = vmatpush1.msra.mxu0 0.0
    %2016 = vmatprep.subr.mxu0 0.0
    %2017 = vmatpush1.msra.mxu0 %v178
    %2018 = vmatprep.subr.mxu0 0.0
    %2019 = vmatpush1.msra.mxu0 %v177
    %2020 = vmatprep.subr.mxu0 0.0
    %2021 = vmatpush1.msra.mxu0 %v176
    %2022 = vmatprep.subr.mxu0 0.0
    %2023 = vmatpush1.msra.mxu0 %v175
    %2024 = vmatprep.subr.mxu0 0.0
    %2025 = vmatpush2.msra.mxu0 0.0
    %2026 = vmatprep.subr.mxu0 0.0
    %2027 = vmatpush2.msra.mxu0 0.0
    %2028 = vmatprep.subr.mxu0 0.0
    %2029 = vmatpush2.msra.mxu0 0.0
    %2030 = vmatprep.subr.mxu0 0.0
    %2031 = vmatpush2.msra.mxu0 0.0
    %2032 = vmatprep.subr.mxu0 0.0
    %2033 = vmatpush2.msra.mxu0 0.0
    %2034 = vmatprep.subr.mxu0 0.0
    %2035 = vmatpush2.msra.mxu0 0.0
    %2036 = vmatprep.subr.mxu0 0.0
    %2037 = vmatpush2.msra.mxu0 0.0
    %2038 = vmatprep.subr.mxu0 0.0
    %2039 = vmatpush2.msra.mxu0 0.0
    %2040 = vmatprep.subr.mxu0 0.0
    %2041 = vmatpush2.msra.mxu0 0.0
    %2042 = vmatprep.subr.mxu0 0.0
    %2043 = vmatpush2.msra.mxu0 0.0
    %2044 = vmatprep.subr.mxu0 0.0
    %2045 = vmatpush2.msra.mxu0 0.0
    %2046 = vmatprep.subr.mxu0 0.0
    %2047 = vmatpush2.msra.mxu0 0.0
    %2048 = vmatprep.subr.mxu0 0.0
    %2049 = vmatpush2.msra.mxu0 0.0
    %2050 = vmatprep.subr.mxu0 0.0
    %2051 = vmatpush2.msra.mxu0 0.0
    %2052 = vmatprep.subr.mxu0 0.0
    %2053 = vmatpush2.msra.mxu0 0.0
    %2054 = vmatprep.subr.mxu0 0.0
    %2055 = vmatpush2.msra.mxu0 0.0
    %2056 = vmatprep.mubr.f32.mxu0 0.0
    %2057 = vmatmul.mubr.f32.gmra.mxu0 %v1837
    %v2058 = vpop.f32.mrf.mxu0
    %v2059 = vadd.f32 0.0, %v2058
    %v2060 = vpop.f32.mrf.mxu0
    %2061 = vdwg.mxu0
    %v2063 = vcombine.high %v1989, %v1989
    %v2065 = vunpack.c.l.s4 1966171168
    %v2066 = vunpack.c.0.s8 %v2065
    %v2067 = vlaneseq
    %v2068 = vshrl.u32 %v2067, 7
    %v2069 = vsub.s32 %v2066, %v2068
    %v2070 = vrot.slane %v1989, %v2069
    %v2072 = vunpack.c.l.s4 1966171168
    %v2073 = vunpack.c.0.s8 %v2072
    %v2074 = vlaneseq
    %v2075 = vshrl.u32 %v2074, 7
    %v2076 = vsub.s32 %v2073, %v2075
    %v2077 = vrot.slane %v2063, %v2076
    %v2078 = vcombine.high %v2070, %v2070
    %v2079 = vcombine.high %v2077, %v2077
    %v2081 = vunpack.c.l.s4 1966171168
    %v2082 = vunpack.c.0.s8 %v2081
    %v2083 = vlaneseq
    %v2084 = vshrl.u32 %v2083, 7
    %v2085 = vsub.s32 %v2082, %v2084
    %v2086 = vrot.slane %v2070, %v2085
    %v2088 = vunpack.c.l.s4 1966171168
    %v2089 = vunpack.c.0.s8 %v2088
    %v2090 = vlaneseq
    %v2091 = vshrl.u32 %v2090, 7
    %v2092 = vsub.s32 %v2089, %v2091
    %v2093 = vrot.slane %v2077, %v2092
    %v2095 = vunpack.c.l.s4 1966171168
    %v2096 = vunpack.c.0.s8 %v2095
    %v2097 = vlaneseq
    %v2098 = vshrl.u32 %v2097, 7
    %v2099 = vsub.s32 %v2096, %v2098
    %v2100 = vrot.slane %v2078, %v2099
    %v2102 = vunpack.c.l.s4 1966171168
    %v2103 = vunpack.c.0.s8 %v2102
    %v2104 = vlaneseq
    %v2105 = vshrl.u32 %v2104, 7
    %v2106 = vsub.s32 %v2103, %v2105
    %v2107 = vrot.slane %v2079, %v2106
    %v2108 = vcombine.high %v2086, %v2086
    %v2109 = vcombine.high %v2093, %v2093
    %v2110 = vcombine.high %v2100, %v2100
    %v2111 = vcombine.high %v2107, %v2107
    %v2112 = vlaneseq
    %v2113 = vshrl.u32 %v2112, 7
    %v2114 = vsub.s32 0, %v2113
    %v2115 = vrot.slane %v2086, %v2114
    %v2116 = vlaneseq
    %v2117 = vshrl.u32 %v2116, 7
    %v2118 = vsub.s32 0, %v2117
    %v2119 = vrot.slane %v2100, %v2118
    %v2120 = vlaneseq
    %v2121 = vshrl.u32 %v2120, 7
    %v2122 = vsub.s32 0, %v2121
    %v2123 = vrot.slane %v2108, %v2122
    %v2124 = vlaneseq
    %v2125 = vshrl.u32 %v2124, 7
    %v2126 = vsub.s32 0, %v2125
    %v2127 = vrot.slane %v2110, %v2126
    %v2128 = vlaneseq
    %v2129 = vshrl.u32 %v2128, 7
    %v2130 = vsub.s32 0, %v2129
    %v2131 = vrot.slane %v2093, %v2130
    %v2132 = vlaneseq
    %v2133 = vshrl.u32 %v2132, 7
    %v2134 = vsub.s32 0, %v2133
    %v2135 = vrot.slane %v2107, %v2134
    %v2136 = vlaneseq
    %v2137 = vshrl.u32 %v2136, 7
    %v2138 = vsub.s32 0, %v2137
    %v2139 = vrot.slane %v2109, %v2138
    %v2140 = vlaneseq
    %v2141 = vshrl.u32 %v2140, 7
    %v2142 = vsub.s32 0, %v2141
    %v2143 = vrot.slane %v2111, %v2142
    %v2152 = vadd.f32 %v2115, %v2059
    %v2153 = vadd.f32 %v2119, %v2059
    %v2154 = vadd.f32 %v2123, %v2059
    %v2155 = vadd.f32 %v2127, %v2059
    %v2156 = vadd.f32 %v2131, %v2059
    %v2157 = vadd.f32 %v2135, %v2059
    %v2158 = vadd.f32 %v2139, %v2059
    %v2159 = vadd.f32 %v2143, %v2059
    %v2160 = vlaneseq
    %v2161 = vshrl.u32 %v2160, 7
    %v2162 = vsub.s32 0, %v2161
    %v2163 = vrot.slane %v1921, %v2162
    %2165 = vbcast.lane.b32.xlu0 %v2163, 256
    %v2166 = vpop.permute.xlu0 %2165
    %v2167 = vlaneseq
    %v2168 = vshrl.u32 %v2167, 7
    %v2169 = vsub.s32 1, %v2168
    %v2170 = vrot.slane %v1921, %v2169
    %2172 = vbcast.lane.b32.xlu0 %v2170, 256
    %v2173 = vpop.permute.xlu0 %2172
    %v2174 = vlaneseq
    %v2175 = vshrl.u32 %v2174, 7
    %v2176 = vsub.s32 2, %v2175
    %v2177 = vrot.slane %v1921, %v2176
    %2179 = vbcast.lane.b32.xlu0 %v2177, 256
    %v2180 = vpop.permute.xlu0 %2179
    %v2181 = vlaneseq
    %v2182 = vshrl.u32 %v2181, 7
    %v2183 = vsub.s32 3, %v2182
    %v2184 = vrot.slane %v1921, %v2183
    %2186 = vbcast.lane.b32.xlu0 %v2184, 256
    %v2187 = vpop.permute.xlu0 %2186
    %v2188 = vlaneseq
    %v2189 = vshrl.u32 %v2188, 7
    %v2190 = vsub.s32 4, %v2189
    %v2191 = vrot.slane %v1921, %v2190
    %2193 = vbcast.lane.b32.xlu0 %v2191, 256
    %v2194 = vpop.permute.xlu0 %2193
    %v2195 = vlaneseq
    %v2196 = vshrl.u32 %v2195, 7
    %v2197 = vsub.s32 5, %v2196
    %v2198 = vrot.slane %v1921, %v2197
    %2200 = vbcast.lane.b32.xlu0 %v2198, 256
    %v2201 = vpop.permute.xlu0 %2200
    %v2202 = vlaneseq
    %v2203 = vshrl.u32 %v2202, 7
    %v2204 = vsub.s32 6, %v2203
    %v2205 = vrot.slane %v1921, %v2204
    %2207 = vbcast.lane.b32.xlu0 %v2205, 256
    %v2208 = vpop.permute.xlu0 %2207
    %v2209 = vlaneseq
    %v2210 = vshrl.u32 %v2209, 7
    %v2211 = vsub.s32 7, %v2210
    %v2212 = vrot.slane %v1921, %v2211
    %2214 = vbcast.lane.b32.xlu0 %v2212, 256
    %v2215 = vpop.permute.xlu0 %2214
    %v2216 = vmul.f32 %v2166, %v576
    %v2217 = vmul.f32 %v2173, %v576
    %v2218 = vmul.f32 %v2180, %v576
    %v2219 = vmul.f32 %v2187, %v576
    %v2220 = vmul.f32 %v2194, %v576
    %v2221 = vmul.f32 %v2201, %v576
    %v2222 = vmul.f32 %v2208, %v576
    %v2223 = vmul.f32 %v2215, %v576
    %v2224 = vadd.f32 %v2152, %v2216
    %v2225 = vadd.f32 %v2153, %v2217
    %v2226 = vadd.f32 %v2154, %v2218
    %v2227 = vadd.f32 %v2155, %v2219
    %v2228 = vadd.f32 %v2156, %v2220
    %v2229 = vadd.f32 %v2157, %v2221
    %v2230 = vadd.f32 %v2158, %v2222
    %v2231 = vadd.f32 %v2159, %v2223
    %v2232 = vadd.f32 %v2224, %v598
    %v2233 = vadd.f32 %v2225, %v598
    %v2234 = vadd.f32 %v2226, %v598
    %v2235 = vadd.f32 %v2227, %v598
    %v2236 = vadd.f32 %v2228, %v598
    %v2237 = vadd.f32 %v2229, %v598
    %v2238 = vadd.f32 %v2230, %v598
    %v2239 = vadd.f32 %v2231, %v598
    %vm2240 = vcmp.ge.f32.partialorder %v2232, 0.0
    %vm2241 = vcmp.ge.f32.partialorder %v2233, 0.0
    %vm2242 = vcmp.ge.f32.partialorder %v2234, 0.0
    %vm2243 = vcmp.ge.f32.partialorder %v2235, 0.0
    %vm2244 = vcmp.ge.f32.partialorder %v2236, 0.0
    %vm2245 = vcmp.ge.f32.partialorder %v2237, 0.0
    %vm2246 = vcmp.ge.f32.partialorder %v2238, 0.0
    %vm2247 = vcmp.ge.f32.partialorder %v2239, 0.0
    %v2248 = vmul.f32 %v2232, 0.1
    %v2249 = vmul.f32 %v2233, 0.1
    %v2250 = vmul.f32 %v2234, 0.1
    %v2251 = vmul.f32 %v2235, 0.1
    %v2252 = vmul.f32 %v2236, 0.1
    %v2253 = vmul.f32 %v2237, 0.1
    %v2254 = vmul.f32 %v2238, 0.1
    %v2255 = vmul.f32 %v2239, 0.1
    %v2256 = vsel %vm2240, %v2232, %v2248
    %v2257 = vsel %vm2241, %v2233, %v2249
    %v2258 = vsel %vm2242, %v2234, %v2250
    %v2259 = vsel %vm2243, %v2235, %v2251
    %v2260 = vsel %vm2244, %v2236, %v2252
    %v2261 = vsel %vm2245, %v2237, %v2253
    %v2262 = vsel %vm2246, %v2238, %v2254
    %v2263 = vsel %vm2247, %v2239, %v2255
    %v2264 = vsel %vm190, %v2256, 0.0
    %v2265 = vrot.slane %v2264, 4
    %v2266 = vadd.f32 %v2264, %v2265
    %v2267 = vrot.slane %v2266, 2
    %v2268 = vadd.f32 %v2266, %v2267
    %v2269 = vrot.slane %v2268, 1
    %v2270 = vadd.f32 %v2268, %v2269
    %v2271 = vsel %vm190, %v2257, 0.0
    %v2272 = vrot.slane %v2271, 4
    %v2273 = vadd.f32 %v2271, %v2272
    %v2274 = vrot.slane %v2273, 2
    %v2275 = vadd.f32 %v2273, %v2274
    %v2276 = vrot.slane %v2275, 1
    %v2277 = vadd.f32 %v2275, %v2276
    %v2278 = vsel %vm190, %v2258, 0.0
    %v2279 = vrot.slane %v2278, 4
    %v2280 = vadd.f32 %v2278, %v2279
    %v2281 = vrot.slane %v2280, 2
    %v2282 = vadd.f32 %v2280, %v2281
    %v2283 = vrot.slane %v2282, 1
    %v2284 = vadd.f32 %v2282, %v2283
    %v2285 = vsel %vm190, %v2259, 0.0
    %v2286 = vrot.slane %v2285, 4
    %v2287 = vadd.f32 %v2285, %v2286
    %v2288 = vrot.slane %v2287, 2
    %v2289 = vadd.f32 %v2287, %v2288
    %v2290 = vrot.slane %v2289, 1
    %v2291 = vadd.f32 %v2289, %v2290
    %v2292 = vsel %vm190, %v2260, 0.0
    %v2293 = vrot.slane %v2292, 4
    %v2294 = vadd.f32 %v2292, %v2293
    %v2295 = vrot.slane %v2294, 2
    %v2296 = vadd.f32 %v2294, %v2295
    %v2297 = vrot.slane %v2296, 1
    %v2298 = vadd.f32 %v2296, %v2297
    %v2299 = vsel %vm190, %v2261, 0.0
    %v2300 = vrot.slane %v2299, 4
    %v2301 = vadd.f32 %v2299, %v2300
    %v2302 = vrot.slane %v2301, 2
    %v2303 = vadd.f32 %v2301, %v2302
    %v2304 = vrot.slane %v2303, 1
    %v2305 = vadd.f32 %v2303, %v2304
    %v2306 = vsel %vm190, %v2262, 0.0
    %v2307 = vrot.slane %v2306, 4
    %v2308 = vadd.f32 %v2306, %v2307
    %v2309 = vrot.slane %v2308, 2
    %v2310 = vadd.f32 %v2308, %v2309
    %v2311 = vrot.slane %v2310, 1
    %v2312 = vadd.f32 %v2310, %v2311
    %v2313 = vsel %vm190, %v2263, 0.0
    %v2314 = vrot.slane %v2313, 4
    %v2315 = vadd.f32 %v2313, %v2314
    %v2316 = vrot.slane %v2315, 2
    %v2317 = vadd.f32 %v2315, %v2316
    %v2318 = vrot.slane %v2317, 1
    %v2319 = vadd.f32 %v2317, %v2318
    %2320 = vmatprep.subr.mxu0 0.0
    %2321 = vmatpush1.msra.mxu0 0.0
    %2322 = vmatprep.subr.mxu0 0.0
    %2323 = vmatpush1.msra.mxu0 0.0
    %2324 = vmatprep.subr.mxu0 0.0
    %2325 = vmatpush1.msra.mxu0 0.0
    %2326 = vmatprep.subr.mxu0 0.0
    %2327 = vmatpush1.msra.mxu0 0.0
    %2328 = vmatprep.subr.mxu0 0.0
    %2329 = vmatpush1.msra.mxu0 0.0
    %2330 = vmatprep.subr.mxu0 0.0
    %2331 = vmatpush1.msra.mxu0 0.0
    %2332 = vmatprep.subr.mxu0 0.0
    %2333 = vmatpush1.msra.mxu0 0.0
    %2334 = vmatprep.subr.mxu0 0.0
    %2335 = vmatpush1.msra.mxu0 0.0
    %2336 = vmatprep.subr.mxu0 0.0
    %2337 = vmatpush1.msra.mxu0 0.0
    %2338 = vmatprep.subr.mxu0 0.0
    %2339 = vmatpush1.msra.mxu0 0.0
    %2340 = vmatprep.subr.mxu0 0.0
    %2341 = vmatpush1.msra.mxu0 0.0
    %2342 = vmatprep.subr.mxu0 0.0
    %2343 = vmatpush1.msra.mxu0 0.0
    %2344 = vmatprep.subr.mxu0 0.0
    %2345 = vmatpush1.msra.mxu0 %v188
    %2346 = vmatprep.subr.mxu0 0.0
    %2347 = vmatpush1.msra.mxu0 %v187
    %2348 = vmatprep.subr.mxu0 0.0
    %2349 = vmatpush1.msra.mxu0 %v186
    %2350 = vmatprep.subr.mxu0 0.0
    %2351 = vmatpush1.msra.mxu0 %v185
    %2352 = vmatprep.subr.mxu0 0.0
    %2353 = vmatpush2.msra.mxu0 0.0
    %2354 = vmatprep.subr.mxu0 0.0
    %2355 = vmatpush2.msra.mxu0 0.0
    %2356 = vmatprep.subr.mxu0 0.0
    %2357 = vmatpush2.msra.mxu0 0.0
    %2358 = vmatprep.subr.mxu0 0.0
    %2359 = vmatpush2.msra.mxu0 0.0
    %2360 = vmatprep.subr.mxu0 0.0
    %2361 = vmatpush2.msra.mxu0 0.0
    %2362 = vmatprep.subr.mxu0 0.0
    %2363 = vmatpush2.msra.mxu0 0.0
    %2364 = vmatprep.subr.mxu0 0.0
    %2365 = vmatpush2.msra.mxu0 0.0
    %2366 = vmatprep.subr.mxu0 0.0
    %2367 = vmatpush2.msra.mxu0 0.0
    %2368 = vmatprep.subr.mxu0 0.0
    %2369 = vmatpush2.msra.mxu0 0.0
    %2370 = vmatprep.subr.mxu0 0.0
    %2371 = vmatpush2.msra.mxu0 0.0
    %2372 = vmatprep.subr.mxu0 0.0
    %2373 = vmatpush2.msra.mxu0 0.0
    %2374 = vmatprep.subr.mxu0 0.0
    %2375 = vmatpush2.msra.mxu0 0.0
    %2376 = vmatprep.subr.mxu0 0.0
    %2377 = vmatpush2.msra.mxu0 0.0
    %2378 = vmatprep.subr.mxu0 0.0
    %2379 = vmatpush2.msra.mxu0 0.0
    %2380 = vmatprep.subr.mxu0 0.0
    %2381 = vmatpush2.msra.mxu0 0.0
    %2382 = vmatprep.subr.mxu0 0.0
    %2383 = vmatpush2.msra.mxu0 0.0
    %2384 = vmatprep.mubr.f32.mxu0 0.0
    %2385 = vmatmul.mubr.f32.gmra.mxu0 %v1837
    %v2386 = vpop.f32.mrf.mxu0
    %v2387 = vadd.f32 0.0, %v2386
    %v2388 = vpop.f32.mrf.mxu0
    %2389 = vdwg.mxu0
    %v2398 = vsel %vm766, %v2277, %v2270
    %v2399 = vsel %vm768, %v2284, %v2398
    %v2400 = vsel %vm770, %v2291, %v2399
    %v2401 = vsel %vm772, %v2298, %v2400
    %v2402 = vsel %vm774, %v2305, %v2401
    %v2403 = vsel %vm776, %v2312, %v2402
    %v2404 = vsel %vm778, %v2319, %v2403
    %v2405 = vsel %vm190, %v2404, 0
    %2407 = vmatprep.subr.mxu0 0.0
    %2408 = vmatpush1.msra.mxu0 0.0
    %2409 = vmatprep.subr.mxu0 0.0
    %2410 = vmatpush1.msra.mxu0 0.0
    %2411 = vmatprep.subr.mxu0 0.0
    %2412 = vmatpush1.msra.mxu0 0.0
    %2413 = vmatprep.subr.mxu0 0.0
    %2414 = vmatpush1.msra.mxu0 0.0
    %2415 = vmatprep.subr.mxu0 0.0
    %2416 = vmatpush1.msra.mxu0 0.0
    %2417 = vmatprep.subr.mxu0 0.0
    %2418 = vmatpush1.msra.mxu0 0.0
    %2419 = vmatprep.subr.mxu0 0.0
    %2420 = vmatpush1.msra.mxu0 0.0
    %2421 = vmatprep.subr.mxu0 0.0
    %2422 = vmatpush1.msra.mxu0 0.0
    %2423 = vmatprep.subr.mxu0 0.0
    %2424 = vmatpush1.msra.mxu0 0.0
    %2425 = vmatprep.subr.mxu0 0.0
    %2426 = vmatpush1.msra.mxu0 0.0
    %2427 = vmatprep.subr.mxu0 0.0
    %2428 = vmatpush1.msra.mxu0 0.0
    %2429 = vmatprep.subr.mxu0 0.0
    %2430 = vmatpush1.msra.mxu0 0.0
    %2431 = vmatprep.subr.mxu0 0.0
    %2432 = vmatpush1.msra.mxu0 %v184
    %2433 = vmatprep.subr.mxu0 0.0
    %2434 = vmatpush1.msra.mxu0 %v183
    %2435 = vmatprep.subr.mxu0 0.0
    %2436 = vmatpush1.msra.mxu0 %v182
    %2437 = vmatprep.subr.mxu0 0.0
    %2438 = vmatpush1.msra.mxu0 %v181
    %2439 = vmatprep.subr.mxu0 0.0
    %2440 = vmatpush2.msra.mxu0 0.0
    %2441 = vmatprep.subr.mxu0 0.0
    %2442 = vmatpush2.msra.mxu0 0.0
    %2443 = vmatprep.subr.mxu0 0.0
    %2444 = vmatpush2.msra.mxu0 0.0
    %2445 = vmatprep.subr.mxu0 0.0
    %2446 = vmatpush2.msra.mxu0 0.0
    %2447 = vmatprep.subr.mxu0 0.0
    %2448 = vmatpush2.msra.mxu0 0.0
    %2449 = vmatprep.subr.mxu0 0.0
    %2450 = vmatpush2.msra.mxu0 0.0
    %2451 = vmatprep.subr.mxu0 0.0
    %2452 = vmatpush2.msra.mxu0 0.0
    %2453 = vmatprep.subr.mxu0 0.0
    %2454 = vmatpush2.msra.mxu0 0.0
    %2455 = vmatprep.subr.mxu0 0.0
    %2456 = vmatpush2.msra.mxu0 0.0
    %2457 = vmatprep.subr.mxu0 0.0
    %2458 = vmatpush2.msra.mxu0 0.0
    %2459 = vmatprep.subr.mxu0 0.0
    %2460 = vmatpush2.msra.mxu0 0.0
    %2461 = vmatprep.subr.mxu0 0.0
    %2462 = vmatpush2.msra.mxu0 0.0
    %2463 = vmatprep.subr.mxu0 0.0
    %2464 = vmatpush2.msra.mxu0 0.0
    %2465 = vmatprep.subr.mxu0 0.0
    %2466 = vmatpush2.msra.mxu0 0.0
    %2467 = vmatprep.subr.mxu0 0.0
    %2468 = vmatpush2.msra.mxu0 0.0
    %2469 = vmatprep.subr.mxu0 0.0
    %2470 = vmatpush2.msra.mxu0 0.0
    %2471 = vmatprep.mubr.f32.mxu0 0.0
    %2472 = vmatmul.mubr.f32.gmra.mxu0 %v2405
    %v2473 = vpop.f32.mrf.mxu0
    %v2474 = vadd.f32 %v2387, %v2473
    %v2475 = vpop.f32.mrf.mxu0
    %2476 = vdwg.mxu0
    %v2477 = vadd.f32 %v2474, %v856
    %vm2478 = vcmp.ge.f32.partialorder %v2477, 0.0
    %v2479 = vmul.f32 %v2477, 0.1
    %v2480 = vsel %vm2478, %v2477, %v2479
    %v2482 = vsel %vm190, %v2480, 0
    %2484 = vmatprep.subr.mxu0 0.0
    %2485 = vmatpush1.xpose.msra.mxu0 0.0
    %2486 = vmatprep.subr.mxu0 0.0
    %2487 = vmatpush1.xpose.msra.mxu0 0.0
    %2488 = vmatprep.subr.mxu0 0.0
    %2489 = vmatpush1.xpose.msra.mxu0 0.0
    %2490 = vmatprep.subr.mxu0 0.0
    %2491 = vmatpush1.xpose.msra.mxu0 0.0
    %2492 = vmatprep.subr.mxu0 0.0
    %2493 = vmatpush1.xpose.msra.mxu0 0.0
    %2494 = vmatprep.subr.mxu0 0.0
    %2495 = vmatpush1.xpose.msra.mxu0 0.0
    %2496 = vmatprep.subr.mxu0 0.0
    %2497 = vmatpush1.xpose.msra.mxu0 0.0
    %2498 = vmatprep.subr.mxu0 0.0
    %2499 = vmatpush1.xpose.msra.mxu0 0.0
    %2500 = vmatprep.subr.mxu0 0.0
    %2501 = vmatpush1.xpose.msra.mxu0 0.0
    %2502 = vmatprep.subr.mxu0 0.0
    %2503 = vmatpush1.xpose.msra.mxu0 0.0
    %2504 = vmatprep.subr.mxu0 0.0
    %2505 = vmatpush1.xpose.msra.mxu0 0.0
    %2506 = vmatprep.subr.mxu0 0.0
    %2507 = vmatpush1.xpose.msra.mxu0 0.0
    %2508 = vmatprep.subr.mxu0 0.0
    %2509 = vmatpush1.xpose.msra.mxu0 0.0
    %2510 = vmatprep.subr.mxu0 0.0
    %2511 = vmatpush1.xpose.msra.mxu0 0.0
    %2512 = vmatprep.subr.mxu0 0.0
    %2513 = vmatpush1.xpose.msra.mxu0 0.0
    %2514 = vmatprep.subr.mxu0 0.0
    %2515 = vmatpush1.xpose.msra.mxu0 %v2482
    %2516 = vmatprep.subr.mxu0 0.0
    %2517 = vmatpush2.xpose.msra.mxu0 0.0
    %2518 = vmatprep.subr.mxu0 0.0
    %2519 = vmatpush2.xpose.msra.mxu0 0.0
    %2520 = vmatprep.subr.mxu0 0.0
    %2521 = vmatpush2.xpose.msra.mxu0 0.0
    %2522 = vmatprep.subr.mxu0 0.0
    %2523 = vmatpush2.xpose.msra.mxu0 0.0
    %2524 = vmatprep.subr.mxu0 0.0
    %2525 = vmatpush2.xpose.msra.mxu0 0.0
    %2526 = vmatprep.subr.mxu0 0.0
    %2527 = vmatpush2.xpose.msra.mxu0 0.0
    %2528 = vmatprep.subr.mxu0 0.0
    %2529 = vmatpush2.xpose.msra.mxu0 0.0
    %2530 = vmatprep.subr.mxu0 0.0
    %2531 = vmatpush2.xpose.msra.mxu0 0.0
    %2532 = vmatprep.subr.mxu0 0.0
    %2533 = vmatpush2.xpose.msra.mxu0 0.0
    %2534 = vmatprep.subr.mxu0 0.0
    %2535 = vmatpush2.xpose.msra.mxu0 0.0
    %2536 = vmatprep.subr.mxu0 0.0
    %2537 = vmatpush2.xpose.msra.mxu0 0.0
    %2538 = vmatprep.subr.mxu0 0.0
    %2539 = vmatpush2.xpose.msra.mxu0 0.0
    %2540 = vmatprep.subr.mxu0 0.0
    %2541 = vmatpush2.xpose.msra.mxu0 0.0
    %2542 = vmatprep.subr.mxu0 0.0
    %2543 = vmatpush2.xpose.msra.mxu0 0.0
    %2544 = vmatprep.subr.mxu0 0.0
    %2545 = vmatpush2.xpose.msra.mxu0 0.0
    %2546 = vmatprep.subr.mxu0 0.0
    %2547 = vmatpush2.xpose.msra.mxu0 0.0
    %2548 = vmatprep.mubr.f32.mxu0 0.0
    %2549 = vmatmul.mubr.f32.gmra.mxu0 %v2482
    %v2550 = vpop.f32.mrf.mxu0
    %v2551 = vadd.f32 0.0, %v2550
    %v2552 = vpop.f32.mrf.mxu0
    %2553 = vdwg.mxu0
    %v2554 = vmul.f32 %v2551, %v68
    %v2555 = vsel %vm265, %v2554, 0.0
    %2556 = vadd.xlane.f32.xlu0 %v2555
    %v2557 = vpop.xlane.xlu0 %2556
    %v2558 = vrot.slane %v2555, 4
    %v2559 = vadd.f32 %v2555, %v2558
    %v2560 = vrot.slane %v2559, 2
    %v2561 = vadd.f32 %v2559, %v2560
    %v2562 = vrot.slane %v2561, 1
    %v2563 = vadd.f32 %v2561, %v2562
    %v2564 = vadd.f32 %v2557, %v2563
    %v2565 = vmul.f32 %v2551, 2.0
    %v2566 = vsub.f32 %v2564, %v2565
    %2567 = vmatprep.subr.mxu0 0.0
    %2568 = vmatpush1.msra.mxu0 0.0
    %2569 = vmatprep.subr.mxu0 0.0
    %2570 = vmatpush1.msra.mxu0 0.0
    %2571 = vmatprep.subr.mxu0 0.0
    %2572 = vmatpush1.msra.mxu0 0.0
    %2573 = vmatprep.subr.mxu0 0.0
    %2574 = vmatpush1.msra.mxu0 0.0
    %2575 = vmatprep.subr.mxu0 0.0
    %2576 = vmatpush1.msra.mxu0 0.0
    %2577 = vmatprep.subr.mxu0 0.0
    %2578 = vmatpush1.msra.mxu0 0.0
    %2579 = vmatprep.subr.mxu0 0.0
    %2580 = vmatpush1.msra.mxu0 0.0
    %2581 = vmatprep.subr.mxu0 0.0
    %2582 = vmatpush1.msra.mxu0 0.0
    %2583 = vmatprep.subr.mxu0 0.0
    %2584 = vmatpush1.msra.mxu0 0.0
    %2585 = vmatprep.subr.mxu0 0.0
    %2586 = vmatpush1.msra.mxu0 0.0
    %2587 = vmatprep.subr.mxu0 0.0
    %2588 = vmatpush1.msra.mxu0 0.0
    %2589 = vmatprep.subr.mxu0 0.0
    %2590 = vmatpush1.msra.mxu0 0.0
    %2591 = vmatprep.subr.mxu0 0.0
    %2592 = vmatpush1.msra.mxu0 %v865
    %2593 = vmatprep.subr.mxu0 0.0
    %2594 = vmatpush1.msra.mxu0 %v864
    %2595 = vmatprep.subr.mxu0 0.0
    %2596 = vmatpush1.msra.mxu0 %v863
    %2597 = vmatprep.subr.mxu0 0.0
    %2598 = vmatpush1.msra.mxu0 %v862
    %2599 = vmatprep.subr.mxu0 0.0
    %2600 = vmatpush2.msra.mxu0 0.0
    %2601 = vmatprep.subr.mxu0 0.0
    %2602 = vmatpush2.msra.mxu0 0.0
    %2603 = vmatprep.subr.mxu0 0.0
    %2604 = vmatpush2.msra.mxu0 0.0
    %2605 = vmatprep.subr.mxu0 0.0
    %2606 = vmatpush2.msra.mxu0 0.0
    %2607 = vmatprep.subr.mxu0 0.0
    %2608 = vmatpush2.msra.mxu0 0.0
    %2609 = vmatprep.subr.mxu0 0.0
    %2610 = vmatpush2.msra.mxu0 0.0
    %2611 = vmatprep.subr.mxu0 0.0
    %2612 = vmatpush2.msra.mxu0 0.0
    %2613 = vmatprep.subr.mxu0 0.0
    %2614 = vmatpush2.msra.mxu0 0.0
    %2615 = vmatprep.subr.mxu0 0.0
    %2616 = vmatpush2.msra.mxu0 0.0
    %2617 = vmatprep.subr.mxu0 0.0
    %2618 = vmatpush2.msra.mxu0 0.0
    %2619 = vmatprep.subr.mxu0 0.0
    %2620 = vmatpush2.msra.mxu0 0.0
    %2621 = vmatprep.subr.mxu0 0.0
    %2622 = vmatpush2.msra.mxu0 0.0
    %2623 = vmatprep.subr.mxu0 0.0
    %2624 = vmatpush2.msra.mxu0 0.0
    %2625 = vmatprep.subr.mxu0 0.0
    %2626 = vmatpush2.msra.mxu0 0.0
    %2627 = vmatprep.subr.mxu0 0.0
    %2628 = vmatpush2.msra.mxu0 0.0
    %2629 = vmatprep.subr.mxu0 0.0
    %2630 = vmatpush2.msra.mxu0 0.0
    %2631 = vmatprep.mubr.f32.mxu0 0.0
    %2632 = vmatmul.mubr.f32.gmra.mxu0 %v2482
    %v2633 = vpop.f32.mrf.mxu0
    %v2634 = vadd.f32 0.0, %v2633
    %v2635 = vpop.f32.mrf.mxu0
    %2636 = vdwg.mxu0
    %2637 = vmatprep.subr.mxu0 0.0
    %2638 = vmatpush1.msra.mxu0 0.0
    %2639 = vmatprep.subr.mxu0 0.0
    %2640 = vmatpush1.msra.mxu0 0.0
    %2641 = vmatprep.subr.mxu0 0.0
    %2642 = vmatpush1.msra.mxu0 0.0
    %2643 = vmatprep.subr.mxu0 0.0
    %2644 = vmatpush1.msra.mxu0 0.0
    %2645 = vmatprep.subr.mxu0 0.0
    %2646 = vmatpush1.msra.mxu0 0.0
    %2647 = vmatprep.subr.mxu0 0.0
    %2648 = vmatpush1.msra.mxu0 0.0
    %2649 = vmatprep.subr.mxu0 0.0
    %2650 = vmatpush1.msra.mxu0 0.0
    %2651 = vmatprep.subr.mxu0 0.0
    %2652 = vmatpush1.msra.mxu0 0.0
    %2653 = vmatprep.subr.mxu0 0.0
    %2654 = vmatpush1.msra.mxu0 0.0
    %2655 = vmatprep.subr.mxu0 0.0
    %2656 = vmatpush1.msra.mxu0 0.0
    %2657 = vmatprep.subr.mxu0 0.0
    %2658 = vmatpush1.msra.mxu0 0.0
    %2659 = vmatprep.subr.mxu0 0.0
    %2660 = vmatpush1.msra.mxu0 0.0
    %2661 = vmatprep.subr.mxu0 0.0
    %2662 = vmatpush1.msra.mxu0 %v869
    %2663 = vmatprep.subr.mxu0 0.0
    %2664 = vmatpush1.msra.mxu0 %v868
    %2665 = vmatprep.subr.mxu0 0.0
    %2666 = vmatpush1.msra.mxu0 %v867
    %2667 = vmatprep.subr.mxu0 0.0
    %2668 = vmatpush1.msra.mxu0 %v866
    %2669 = vmatprep.subr.mxu0 0.0
    %2670 = vmatpush2.msra.mxu0 0.0
    %2671 = vmatprep.subr.mxu0 0.0
    %2672 = vmatpush2.msra.mxu0 0.0
    %2673 = vmatprep.subr.mxu0 0.0
    %2674 = vmatpush2.msra.mxu0 0.0
    %2675 = vmatprep.subr.mxu0 0.0
    %2676 = vmatpush2.msra.mxu0 0.0
    %2677 = vmatprep.subr.mxu0 0.0
    %2678 = vmatpush2.msra.mxu0 0.0
    %2679 = vmatprep.subr.mxu0 0.0
    %2680 = vmatpush2.msra.mxu0 0.0
    %2681 = vmatprep.subr.mxu0 0.0
    %2682 = vmatpush2.msra.mxu0 0.0
    %2683 = vmatprep.subr.mxu0 0.0
    %2684 = vmatpush2.msra.mxu0 0.0
    %2685 = vmatprep.subr.mxu0 0.0
    %2686 = vmatpush2.msra.mxu0 0.0
    %2687 = vmatprep.subr.mxu0 0.0
    %2688 = vmatpush2.msra.mxu0 0.0
    %2689 = vmatprep.subr.mxu0 0.0
    %2690 = vmatpush2.msra.mxu0 0.0
    %2691 = vmatprep.subr.mxu0 0.0
    %2692 = vmatpush2.msra.mxu0 0.0
    %2693 = vmatprep.subr.mxu0 0.0
    %2694 = vmatpush2.msra.mxu0 0.0
    %2695 = vmatprep.subr.mxu0 0.0
    %2696 = vmatpush2.msra.mxu0 0.0
    %2697 = vmatprep.subr.mxu0 0.0
    %2698 = vmatpush2.msra.mxu0 0.0
    %2699 = vmatprep.subr.mxu0 0.0
    %2700 = vmatpush2.msra.mxu0 0.0
    %2701 = vmatprep.mubr.f32.mxu0 0.0
    %2702 = vmatmul.mubr.f32.gmra.mxu0 %v2482
    %v2703 = vpop.f32.mrf.mxu0
    %v2704 = vadd.f32 0.0, %v2703
    %v2705 = vpop.f32.mrf.mxu0
    %2706 = vdwg.mxu0
    %v2708 = vcombine.high %v2634, %v2634
    %v2710 = vunpack.c.l.s4 1966171168
    %v2711 = vunpack.c.0.s8 %v2710
    %v2712 = vlaneseq
    %v2713 = vshrl.u32 %v2712, 7
    %v2714 = vsub.s32 %v2711, %v2713
    %v2715 = vrot.slane %v2634, %v2714
    %v2717 = vunpack.c.l.s4 1966171168
    %v2718 = vunpack.c.0.s8 %v2717
    %v2719 = vlaneseq
    %v2720 = vshrl.u32 %v2719, 7
    %v2721 = vsub.s32 %v2718, %v2720
    %v2722 = vrot.slane %v2708, %v2721
    %v2723 = vcombine.high %v2715, %v2715
    %v2724 = vcombine.high %v2722, %v2722
    %v2726 = vunpack.c.l.s4 1966171168
    %v2727 = vunpack.c.0.s8 %v2726
    %v2728 = vlaneseq
    %v2729 = vshrl.u32 %v2728, 7
    %v2730 = vsub.s32 %v2727, %v2729
    %v2731 = vrot.slane %v2715, %v2730
    %v2733 = vunpack.c.l.s4 1966171168
    %v2734 = vunpack.c.0.s8 %v2733
    %v2735 = vlaneseq
    %v2736 = vshrl.u32 %v2735, 7
    %v2737 = vsub.s32 %v2734, %v2736
    %v2738 = vrot.slane %v2722, %v2737
    %v2740 = vunpack.c.l.s4 1966171168
    %v2741 = vunpack.c.0.s8 %v2740
    %v2742 = vlaneseq
    %v2743 = vshrl.u32 %v2742, 7
    %v2744 = vsub.s32 %v2741, %v2743
    %v2745 = vrot.slane %v2723, %v2744
    %v2747 = vunpack.c.l.s4 1966171168
    %v2748 = vunpack.c.0.s8 %v2747
    %v2749 = vlaneseq
    %v2750 = vshrl.u32 %v2749, 7
    %v2751 = vsub.s32 %v2748, %v2750
    %v2752 = vrot.slane %v2724, %v2751
    %v2753 = vcombine.high %v2731, %v2731
    %v2754 = vcombine.high %v2738, %v2738
    %v2755 = vcombine.high %v2745, %v2745
    %v2756 = vcombine.high %v2752, %v2752
    %v2757 = vlaneseq
    %v2758 = vshrl.u32 %v2757, 7
    %v2759 = vsub.s32 0, %v2758
    %v2760 = vrot.slane %v2731, %v2759
    %v2761 = vlaneseq
    %v2762 = vshrl.u32 %v2761, 7
    %v2763 = vsub.s32 0, %v2762
    %v2764 = vrot.slane %v2745, %v2763
    %v2765 = vlaneseq
    %v2766 = vshrl.u32 %v2765, 7
    %v2767 = vsub.s32 0, %v2766
    %v2768 = vrot.slane %v2753, %v2767
    %v2769 = vlaneseq
    %v2770 = vshrl.u32 %v2769, 7
    %v2771 = vsub.s32 0, %v2770
    %v2772 = vrot.slane %v2755, %v2771
    %v2773 = vlaneseq
    %v2774 = vshrl.u32 %v2773, 7
    %v2775 = vsub.s32 0, %v2774
    %v2776 = vrot.slane %v2738, %v2775
    %v2777 = vlaneseq
    %v2778 = vshrl.u32 %v2777, 7
    %v2779 = vsub.s32 0, %v2778
    %v2780 = vrot.slane %v2752, %v2779
    %v2781 = vlaneseq
    %v2782 = vshrl.u32 %v2781, 7
    %v2783 = vsub.s32 0, %v2782
    %v2784 = vrot.slane %v2754, %v2783
    %v2785 = vlaneseq
    %v2786 = vshrl.u32 %v2785, 7
    %v2787 = vsub.s32 0, %v2786
    %v2788 = vrot.slane %v2756, %v2787
    %v2797 = vadd.f32 %v2760, %v2704
    %v2798 = vadd.f32 %v2764, %v2704
    %v2799 = vadd.f32 %v2768, %v2704
    %v2800 = vadd.f32 %v2772, %v2704
    %v2801 = vadd.f32 %v2776, %v2704
    %v2802 = vadd.f32 %v2780, %v2704
    %v2803 = vadd.f32 %v2784, %v2704
    %v2804 = vadd.f32 %v2788, %v2704
    %v2805 = vlaneseq
    %v2806 = vshrl.u32 %v2805, 7
    %v2807 = vsub.s32 0, %v2806
    %v2808 = vrot.slane %v2566, %v2807
    %2810 = vbcast.lane.b32.xlu0 %v2808, 256
    %v2811 = vpop.permute.xlu0 %2810
    %v2812 = vlaneseq
    %v2813 = vshrl.u32 %v2812, 7
    %v2814 = vsub.s32 1, %v2813
    %v2815 = vrot.slane %v2566, %v2814
    %2817 = vbcast.lane.b32.xlu0 %v2815, 256
    %v2818 = vpop.permute.xlu0 %2817
    %v2819 = vlaneseq
    %v2820 = vshrl.u32 %v2819, 7
    %v2821 = vsub.s32 2, %v2820
    %v2822 = vrot.slane %v2566, %v2821
    %2824 = vbcast.lane.b32.xlu0 %v2822, 256
    %v2825 = vpop.permute.xlu0 %2824
    %v2826 = vlaneseq
    %v2827 = vshrl.u32 %v2826, 7
    %v2828 = vsub.s32 3, %v2827
    %v2829 = vrot.slane %v2566, %v2828
    %2831 = vbcast.lane.b32.xlu0 %v2829, 256
    %v2832 = vpop.permute.xlu0 %2831
    %v2833 = vlaneseq
    %v2834 = vshrl.u32 %v2833, 7
    %v2835 = vsub.s32 4, %v2834
    %v2836 = vrot.slane %v2566, %v2835
    %2838 = vbcast.lane.b32.xlu0 %v2836, 256
    %v2839 = vpop.permute.xlu0 %2838
    %v2840 = vlaneseq
    %v2841 = vshrl.u32 %v2840, 7
    %v2842 = vsub.s32 5, %v2841
    %v2843 = vrot.slane %v2566, %v2842
    %2845 = vbcast.lane.b32.xlu0 %v2843, 256
    %v2846 = vpop.permute.xlu0 %2845
    %v2847 = vlaneseq
    %v2848 = vshrl.u32 %v2847, 7
    %v2849 = vsub.s32 6, %v2848
    %v2850 = vrot.slane %v2566, %v2849
    %2852 = vbcast.lane.b32.xlu0 %v2850, 256
    %v2853 = vpop.permute.xlu0 %2852
    %v2854 = vlaneseq
    %v2855 = vshrl.u32 %v2854, 7
    %v2856 = vsub.s32 7, %v2855
    %v2857 = vrot.slane %v2566, %v2856
    %2859 = vbcast.lane.b32.xlu0 %v2857, 256
    %v2860 = vpop.permute.xlu0 %2859
    %v2861 = vmul.f32 %v2811, %v1265
    %v2862 = vmul.f32 %v2818, %v1265
    %v2863 = vmul.f32 %v2825, %v1265
    %v2864 = vmul.f32 %v2832, %v1265
    %v2865 = vmul.f32 %v2839, %v1265
    %v2866 = vmul.f32 %v2846, %v1265
    %v2867 = vmul.f32 %v2853, %v1265
    %v2868 = vmul.f32 %v2860, %v1265
    %v2869 = vadd.f32 %v2797, %v2861
    %v2870 = vadd.f32 %v2798, %v2862
    %v2871 = vadd.f32 %v2799, %v2863
    %v2872 = vadd.f32 %v2800, %v2864
    %v2873 = vadd.f32 %v2801, %v2865
    %v2874 = vadd.f32 %v2802, %v2866
    %v2875 = vadd.f32 %v2803, %v2867
    %v2876 = vadd.f32 %v2804, %v2868
    %v2877 = vadd.f32 %v2869, %v1287
    %v2878 = vadd.f32 %v2870, %v1287
    %v2879 = vadd.f32 %v2871, %v1287
    %v2880 = vadd.f32 %v2872, %v1287
    %v2881 = vadd.f32 %v2873, %v1287
    %v2882 = vadd.f32 %v2874, %v1287
    %v2883 = vadd.f32 %v2875, %v1287
    %v2884 = vadd.f32 %v2876, %v1287
    %vm2885 = vcmp.ge.f32.partialorder %v2877, 0.0
    %vm2886 = vcmp.ge.f32.partialorder %v2878, 0.0
    %vm2887 = vcmp.ge.f32.partialorder %v2879, 0.0
    %vm2888 = vcmp.ge.f32.partialorder %v2880, 0.0
    %vm2889 = vcmp.ge.f32.partialorder %v2881, 0.0
    %vm2890 = vcmp.ge.f32.partialorder %v2882, 0.0
    %vm2891 = vcmp.ge.f32.partialorder %v2883, 0.0
    %vm2892 = vcmp.ge.f32.partialorder %v2884, 0.0
    %v2893 = vmul.f32 %v2877, 0.1
    %v2894 = vmul.f32 %v2878, 0.1
    %v2895 = vmul.f32 %v2879, 0.1
    %v2896 = vmul.f32 %v2880, 0.1
    %v2897 = vmul.f32 %v2881, 0.1
    %v2898 = vmul.f32 %v2882, 0.1
    %v2899 = vmul.f32 %v2883, 0.1
    %v2900 = vmul.f32 %v2884, 0.1
    %v2901 = vsel %vm2885, %v2877, %v2893
    %v2902 = vsel %vm2886, %v2878, %v2894
    %v2903 = vsel %vm2887, %v2879, %v2895
    %v2904 = vsel %vm2888, %v2880, %v2896
    %v2905 = vsel %vm2889, %v2881, %v2897
    %v2906 = vsel %vm2890, %v2882, %v2898
    %v2907 = vsel %vm2891, %v2883, %v2899
    %v2908 = vsel %vm2892, %v2884, %v2900
    %v2909 = vsel %vm190, %v2901, 0.0
    %v2910 = vrot.slane %v2909, 4
    %v2911 = vadd.f32 %v2909, %v2910
    %v2912 = vrot.slane %v2911, 2
    %v2913 = vadd.f32 %v2911, %v2912
    %v2914 = vrot.slane %v2913, 1
    %v2915 = vadd.f32 %v2913, %v2914
    %v2916 = vsel %vm190, %v2902, 0.0
    %v2917 = vrot.slane %v2916, 4
    %v2918 = vadd.f32 %v2916, %v2917
    %v2919 = vrot.slane %v2918, 2
    %v2920 = vadd.f32 %v2918, %v2919
    %v2921 = vrot.slane %v2920, 1
    %v2922 = vadd.f32 %v2920, %v2921
    %v2923 = vsel %vm190, %v2903, 0.0
    %v2924 = vrot.slane %v2923, 4
    %v2925 = vadd.f32 %v2923, %v2924
    %v2926 = vrot.slane %v2925, 2
    %v2927 = vadd.f32 %v2925, %v2926
    %v2928 = vrot.slane %v2927, 1
    %v2929 = vadd.f32 %v2927, %v2928
    %v2930 = vsel %vm190, %v2904, 0.0
    %v2931 = vrot.slane %v2930, 4
    %v2932 = vadd.f32 %v2930, %v2931
    %v2933 = vrot.slane %v2932, 2
    %v2934 = vadd.f32 %v2932, %v2933
    %v2935 = vrot.slane %v2934, 1
    %v2936 = vadd.f32 %v2934, %v2935
    %v2937 = vsel %vm190, %v2905, 0.0
    %v2938 = vrot.slane %v2937, 4
    %v2939 = vadd.f32 %v2937, %v2938
    %v2940 = vrot.slane %v2939, 2
    %v2941 = vadd.f32 %v2939, %v2940
    %v2942 = vrot.slane %v2941, 1
    %v2943 = vadd.f32 %v2941, %v2942
    %v2944 = vsel %vm190, %v2906, 0.0
    %v2945 = vrot.slane %v2944, 4
    %v2946 = vadd.f32 %v2944, %v2945
    %v2947 = vrot.slane %v2946, 2
    %v2948 = vadd.f32 %v2946, %v2947
    %v2949 = vrot.slane %v2948, 1
    %v2950 = vadd.f32 %v2948, %v2949
    %v2951 = vsel %vm190, %v2907, 0.0
    %v2952 = vrot.slane %v2951, 4
    %v2953 = vadd.f32 %v2951, %v2952
    %v2954 = vrot.slane %v2953, 2
    %v2955 = vadd.f32 %v2953, %v2954
    %v2956 = vrot.slane %v2955, 1
    %v2957 = vadd.f32 %v2955, %v2956
    %v2958 = vsel %vm190, %v2908, 0.0
    %v2959 = vrot.slane %v2958, 4
    %v2960 = vadd.f32 %v2958, %v2959
    %v2961 = vrot.slane %v2960, 2
    %v2962 = vadd.f32 %v2960, %v2961
    %v2963 = vrot.slane %v2962, 1
    %v2964 = vadd.f32 %v2962, %v2963
    %2965 = vmatprep.subr.mxu0 0.0
    %2966 = vmatpush1.msra.mxu0 0.0
    %2967 = vmatprep.subr.mxu0 0.0
    %2968 = vmatpush1.msra.mxu0 0.0
    %2969 = vmatprep.subr.mxu0 0.0
    %2970 = vmatpush1.msra.mxu0 0.0
    %2971 = vmatprep.subr.mxu0 0.0
    %2972 = vmatpush1.msra.mxu0 0.0
    %2973 = vmatprep.subr.mxu0 0.0
    %2974 = vmatpush1.msra.mxu0 0.0
    %2975 = vmatprep.subr.mxu0 0.0
    %2976 = vmatpush1.msra.mxu0 0.0
    %2977 = vmatprep.subr.mxu0 0.0
    %2978 = vmatpush1.msra.mxu0 0.0
    %2979 = vmatprep.subr.mxu0 0.0
    %2980 = vmatpush1.msra.mxu0 0.0
    %2981 = vmatprep.subr.mxu0 0.0
    %2982 = vmatpush1.msra.mxu0 0.0
    %2983 = vmatprep.subr.mxu0 0.0
    %2984 = vmatpush1.msra.mxu0 0.0
    %2985 = vmatprep.subr.mxu0 0.0
    %2986 = vmatpush1.msra.mxu0 0.0
    %2987 = vmatprep.subr.mxu0 0.0
    %2988 = vmatpush1.msra.mxu0 0.0
    %2989 = vmatprep.subr.mxu0 0.0
    %2990 = vmatpush1.msra.mxu0 %v879
    %2991 = vmatprep.subr.mxu0 0.0
    %2992 = vmatpush1.msra.mxu0 %v878
    %2993 = vmatprep.subr.mxu0 0.0
    %2994 = vmatpush1.msra.mxu0 %v877
    %2995 = vmatprep.subr.mxu0 0.0
    %2996 = vmatpush1.msra.mxu0 %v876
    %2997 = vmatprep.subr.mxu0 0.0
    %2998 = vmatpush2.msra.mxu0 0.0
    %2999 = vmatprep.subr.mxu0 0.0
    %3000 = vmatpush2.msra.mxu0 0.0
    %3001 = vmatprep.subr.mxu0 0.0
    %3002 = vmatpush2.msra.mxu0 0.0
    %3003 = vmatprep.subr.mxu0 0.0
    %3004 = vmatpush2.msra.mxu0 0.0
    %3005 = vmatprep.subr.mxu0 0.0
    %3006 = vmatpush2.msra.mxu0 0.0
    %3007 = vmatprep.subr.mxu0 0.0
    %3008 = vmatpush2.msra.mxu0 0.0
    %3009 = vmatprep.subr.mxu0 0.0
    %3010 = vmatpush2.msra.mxu0 0.0
    %3011 = vmatprep.subr.mxu0 0.0
    %3012 = vmatpush2.msra.mxu0 0.0
    %3013 = vmatprep.subr.mxu0 0.0
    %3014 = vmatpush2.msra.mxu0 0.0
    %3015 = vmatprep.subr.mxu0 0.0
    %3016 = vmatpush2.msra.mxu0 0.0
    %3017 = vmatprep.subr.mxu0 0.0
    %3018 = vmatpush2.msra.mxu0 0.0
    %3019 = vmatprep.subr.mxu0 0.0
    %3020 = vmatpush2.msra.mxu0 0.0
    %3021 = vmatprep.subr.mxu0 0.0
    %3022 = vmatpush2.msra.mxu0 0.0
    %3023 = vmatprep.subr.mxu0 0.0
    %3024 = vmatpush2.msra.mxu0 0.0
    %3025 = vmatprep.subr.mxu0 0.0
    %3026 = vmatpush2.msra.mxu0 0.0
    %3027 = vmatprep.subr.mxu0 0.0
    %3028 = vmatpush2.msra.mxu0 0.0
    %3029 = vmatprep.mubr.f32.mxu0 0.0
    %3030 = vmatmul.mubr.f32.gmra.mxu0 %v2482
    %v3031 = vpop.f32.mrf.mxu0
    %v3032 = vadd.f32 0.0, %v3031
    %v3033 = vpop.f32.mrf.mxu0
    %3034 = vdwg.mxu0
    %v3043 = vsel %vm766, %v2922, %v2915
    %v3044 = vsel %vm768, %v2929, %v3043
    %v3045 = vsel %vm770, %v2936, %v3044
    %v3046 = vsel %vm772, %v2943, %v3045
    %v3047 = vsel %vm774, %v2950, %v3046
    %v3048 = vsel %vm776, %v2957, %v3047
    %v3049 = vsel %vm778, %v2964, %v3048
    %v3050 = vsel %vm190, %v3049, 0
    %3052 = vmatprep.subr.mxu0 0.0
    %3053 = vmatpush1.msra.mxu0 0.0
    %3054 = vmatprep.subr.mxu0 0.0
    %3055 = vmatpush1.msra.mxu0 0.0
    %3056 = vmatprep.subr.mxu0 0.0
    %3057 = vmatpush1.msra.mxu0 0.0
    %3058 = vmatprep.subr.mxu0 0.0
    %3059 = vmatpush1.msra.mxu0 0.0
    %3060 = vmatprep.subr.mxu0 0.0
    %3061 = vmatpush1.msra.mxu0 0.0
    %3062 = vmatprep.subr.mxu0 0.0
    %3063 = vmatpush1.msra.mxu0 0.0
    %3064 = vmatprep.subr.mxu0 0.0
    %3065 = vmatpush1.msra.mxu0 0.0
    %3066 = vmatprep.subr.mxu0 0.0
    %3067 = vmatpush1.msra.mxu0 0.0
    %3068 = vmatprep.subr.mxu0 0.0
    %3069 = vmatpush1.msra.mxu0 0.0
    %3070 = vmatprep.subr.mxu0 0.0
    %3071 = vmatpush1.msra.mxu0 0.0
    %3072 = vmatprep.subr.mxu0 0.0
    %3073 = vmatpush1.msra.mxu0 0.0
    %3074 = vmatprep.subr.mxu0 0.0
    %3075 = vmatpush1.msra.mxu0 0.0
    %3076 = vmatprep.subr.mxu0 0.0
    %3077 = vmatpush1.msra.mxu0 %v875
    %3078 = vmatprep.subr.mxu0 0.0
    %3079 = vmatpush1.msra.mxu0 %v874
    %3080 = vmatprep.subr.mxu0 0.0
    %3081 = vmatpush1.msra.mxu0 %v873
    %3082 = vmatprep.subr.mxu0 0.0
    %3083 = vmatpush1.msra.mxu0 %v872
    %3084 = vmatprep.subr.mxu0 0.0
    %3085 = vmatpush2.msra.mxu0 0.0
    %3086 = vmatprep.subr.mxu0 0.0
    %3087 = vmatpush2.msra.mxu0 0.0
    %3088 = vmatprep.subr.mxu0 0.0
    %3089 = vmatpush2.msra.mxu0 0.0
    %3090 = vmatprep.subr.mxu0 0.0
    %3091 = vmatpush2.msra.mxu0 0.0
    %3092 = vmatprep.subr.mxu0 0.0
    %3093 = vmatpush2.msra.mxu0 0.0
    %3094 = vmatprep.subr.mxu0 0.0
    %3095 = vmatpush2.msra.mxu0 0.0
    %3096 = vmatprep.subr.mxu0 0.0
    %3097 = vmatpush2.msra.mxu0 0.0
    %3098 = vmatprep.subr.mxu0 0.0
    %3099 = vmatpush2.msra.mxu0 0.0
    %3100 = vmatprep.subr.mxu0 0.0
    %3101 = vmatpush2.msra.mxu0 0.0
    %3102 = vmatprep.subr.mxu0 0.0
    %3103 = vmatpush2.msra.mxu0 0.0
    %3104 = vmatprep.subr.mxu0 0.0
    %3105 = vmatpush2.msra.mxu0 0.0
    %3106 = vmatprep.subr.mxu0 0.0
    %3107 = vmatpush2.msra.mxu0 0.0
    %3108 = vmatprep.subr.mxu0 0.0
    %3109 = vmatpush2.msra.mxu0 0.0
    %3110 = vmatprep.subr.mxu0 0.0
    %3111 = vmatpush2.msra.mxu0 0.0
    %3112 = vmatprep.subr.mxu0 0.0
    %3113 = vmatpush2.msra.mxu0 0.0
    %3114 = vmatprep.subr.mxu0 0.0
    %3115 = vmatpush2.msra.mxu0 0.0
    %3116 = vmatprep.mubr.f32.mxu0 0.0
    %3117 = vmatmul.mubr.f32.gmra.mxu0 %v3050
    %v3118 = vpop.f32.mrf.mxu0
    %v3119 = vadd.f32 %v3032, %v3118
    %v3120 = vpop.f32.mrf.mxu0
    %3121 = vdwg.mxu0
    %v3122 = vadd.f32 %v3119, %v1538
    %vm3123 = vcmp.ge.f32.partialorder %v3122, 0.0
    %v3124 = vmul.f32 %v3122, 0.1
    %v3125 = vsel %vm3123, %v3122, %v3124
    %v3126 = vlaneseq
    %v3127 = vshrl.u32 %v3126, 7
    %v3128 = vsub.s32 0, %v3127
    %v3129 = vrot.slane %v3125, %v3128
    %3131 = vbcast.lane.b32.xlu0 %v3129, 256
    %v3132 = vpop.permute.xlu0 %3131
    %s3134 = sor.u32 256, 8
    %3135 = vbcast.lane.b32.xlu0 %v3129, %s3134
    %v3136 = vpop.permute.xlu0 %3135
    %s3138 = sor.u32 256, 16
    %3139 = vbcast.lane.b32.xlu0 %v3129, %s3138
    %v3140 = vpop.permute.xlu0 %3139
    %s3142 = sor.u32 256, 24
    %3143 = vbcast.lane.b32.xlu0 %v3129, %s3142
    %v3144 = vpop.permute.xlu0 %3143
    %v3145 = vlaneseq
    %v3146 = vshrl.u32 %v3145, 7
    %v3147 = vsub.s32 1, %v3146
    %v3148 = vrot.slane %v3125, %v3147
    %3150 = vbcast.lane.b32.xlu0 %v3148, 256
    %v3151 = vpop.permute.xlu0 %3150
    %s3153 = sor.u32 256, 8
    %3154 = vbcast.lane.b32.xlu0 %v3148, %s3153
    %v3155 = vpop.permute.xlu0 %3154
    %s3157 = sor.u32 256, 16
    %3158 = vbcast.lane.b32.xlu0 %v3148, %s3157
    %v3159 = vpop.permute.xlu0 %3158
    %s3161 = sor.u32 256, 24
    %3162 = vbcast.lane.b32.xlu0 %v3148, %s3161
    %v3163 = vpop.permute.xlu0 %3162
    %v3164 = vlaneseq
    %v3165 = vshrl.u32 %v3164, 7
    %v3166 = vsub.s32 2, %v3165
    %v3167 = vrot.slane %v3125, %v3166
    %3169 = vbcast.lane.b32.xlu0 %v3167, 256
    %v3170 = vpop.permute.xlu0 %3169
    %s3172 = sor.u32 256, 8
    %3173 = vbcast.lane.b32.xlu0 %v3167, %s3172
    %v3174 = vpop.permute.xlu0 %3173
    %s3176 = sor.u32 256, 16
    %3177 = vbcast.lane.b32.xlu0 %v3167, %s3176
    %v3178 = vpop.permute.xlu0 %3177
    %s3180 = sor.u32 256, 24
    %3181 = vbcast.lane.b32.xlu0 %v3167, %s3180
    %v3182 = vpop.permute.xlu0 %3181
    %v3183 = vlaneseq
    %v3184 = vshrl.u32 %v3183, 7
    %v3185 = vsub.s32 3, %v3184
    %v3186 = vrot.slane %v3125, %v3185
    %3188 = vbcast.lane.b32.xlu0 %v3186, 256
    %v3189 = vpop.permute.xlu0 %3188
    %s3191 = sor.u32 256, 8
    %3192 = vbcast.lane.b32.xlu0 %v3186, %s3191
    %v3193 = vpop.permute.xlu0 %3192
    %s3195 = sor.u32 256, 16
    %3196 = vbcast.lane.b32.xlu0 %v3186, %s3195
    %v3197 = vpop.permute.xlu0 %3196
    %s3199 = sor.u32 256, 24
    %3200 = vbcast.lane.b32.xlu0 %v3186, %s3199
    %v3201 = vpop.permute.xlu0 %3200
    %v3202 = vlaneseq
    %v3203 = vshrl.u32 %v3202, 7
    %v3204 = vsub.s32 4, %v3203
    %v3205 = vrot.slane %v3125, %v3204
    %3207 = vbcast.lane.b32.xlu0 %v3205, 256
    %v3208 = vpop.permute.xlu0 %3207
    %s3210 = sor.u32 256, 8
    %3211 = vbcast.lane.b32.xlu0 %v3205, %s3210
    %v3212 = vpop.permute.xlu0 %3211
    %s3214 = sor.u32 256, 16
    %3215 = vbcast.lane.b32.xlu0 %v3205, %s3214
    %v3216 = vpop.permute.xlu0 %3215
    %s3218 = sor.u32 256, 24
    %3219 = vbcast.lane.b32.xlu0 %v3205, %s3218
    %v3220 = vpop.permute.xlu0 %3219
    %v3221 = vlaneseq
    %v3222 = vshrl.u32 %v3221, 7
    %v3223 = vsub.s32 5, %v3222
    %v3224 = vrot.slane %v3125, %v3223
    %3226 = vbcast.lane.b32.xlu0 %v3224, 256
    %v3227 = vpop.permute.xlu0 %3226
    %s3229 = sor.u32 256, 8
    %3230 = vbcast.lane.b32.xlu0 %v3224, %s3229
    %v3231 = vpop.permute.xlu0 %3230
    %s3233 = sor.u32 256, 16
    %3234 = vbcast.lane.b32.xlu0 %v3224, %s3233
    %v3235 = vpop.permute.xlu0 %3234
    %s3237 = sor.u32 256, 24
    %3238 = vbcast.lane.b32.xlu0 %v3224, %s3237
    %v3239 = vpop.permute.xlu0 %3238
    %v3240 = vlaneseq
    %v3241 = vshrl.u32 %v3240, 7
    %v3242 = vsub.s32 6, %v3241
    %v3243 = vrot.slane %v3125, %v3242
    %3245 = vbcast.lane.b32.xlu0 %v3243, 256
    %v3246 = vpop.permute.xlu0 %3245
    %s3248 = sor.u32 256, 8
    %3249 = vbcast.lane.b32.xlu0 %v3243, %s3248
    %v3250 = vpop.permute.xlu0 %3249
    %s3252 = sor.u32 256, 16
    %3253 = vbcast.lane.b32.xlu0 %v3243, %s3252
    %v3254 = vpop.permute.xlu0 %3253
    %s3256 = sor.u32 256, 24
    %3257 = vbcast.lane.b32.xlu0 %v3243, %s3256
    %v3258 = vpop.permute.xlu0 %3257
    %v3259 = vlaneseq
    %v3260 = vshrl.u32 %v3259, 7
    %v3261 = vsub.s32 7, %v3260
    %v3262 = vrot.slane %v3125, %v3261
    %3264 = vbcast.lane.b32.xlu0 %v3262, 256
    %v3265 = vpop.permute.xlu0 %3264
    %s3267 = sor.u32 256, 8
    %3268 = vbcast.lane.b32.xlu0 %v3262, %s3267
    %v3269 = vpop.permute.xlu0 %3268
    %s3271 = sor.u32 256, 16
    %3272 = vbcast.lane.b32.xlu0 %v3262, %s3271
    %v3273 = vpop.permute.xlu0 %3272
    %s3275 = sor.u32 256, 24
    %3276 = vbcast.lane.b32.xlu0 %v3262, %s3275
    %v3277 = vpop.permute.xlu0 %3276
    %v3278 = vmul.f32 %v3132, %v1696
    %v3279 = vmul.f32 %v3136, %v1697
    %v3280 = vmul.f32 %v3140, %v1698
    %v3281 = vmul.f32 %v3144, %v1699
    %v3282 = vmul.f32 %v3151, %v1700
    %v3283 = vmul.f32 %v3155, %v1701
    %v3284 = vmul.f32 %v3159, %v1702
    %v3285 = vmul.f32 %v3163, %v1703
    %v3286 = vmul.f32 %v3170, %v1704
    %v3287 = vmul.f32 %v3174, %v1705
    %v3288 = vmul.f32 %v3178, %v1706
    %v3289 = vmul.f32 %v3182, %v1707
    %v3290 = vmul.f32 %v3189, %v1708
    %v3291 = vmul.f32 %v3193, %v1709
    %v3292 = vmul.f32 %v3197, %v1710
    %v3293 = vmul.f32 %v3201, %v1711
    %v3294 = vmul.f32 %v3208, %v1712
    %v3295 = vmul.f32 %v3212, %v1713
    %v3296 = vmul.f32 %v3216, %v1714
    %v3297 = vmul.f32 %v3220, %v1715
    %v3298 = vmul.f32 %v3227, %v1716
    %v3299 = vmul.f32 %v3231, %v1717
    %v3300 = vmul.f32 %v3235, %v1718
    %v3301 = vmul.f32 %v3239, %v1719
    %v3302 = vmul.f32 %v3246, %v1720
    %v3303 = vmul.f32 %v3250, %v1721
    %v3304 = vmul.f32 %v3254, %v1722
    %v3305 = vmul.f32 %v3258, %v1723
    %v3306 = vmul.f32 %v3265, %v1724
    %v3307 = vmul.f32 %v3269, %v1725
    %v3308 = vmul.f32 %v3273, %v1726
    %v3309 = vmul.f32 %v3277, %v1727
    %v3310 = vsel %vm1760, %v3278, 0.0
    %v3311 = vsel %vm1760, %v3282, 0.0
    %v3312 = vadd.f32 %v3310, %v3311
    %v3313 = vsel %vm1760, %v3286, 0.0
    %v3314 = vadd.f32 %v3312, %v3313
    %v3315 = vsel %vm1760, %v3290, 0.0
    %v3316 = vadd.f32 %v3314, %v3315
    %v3317 = vsel %vm1760, %v3294, 0.0
    %v3318 = vadd.f32 %v3316, %v3317
    %v3319 = vsel %vm1760, %v3298, 0.0
    %v3320 = vadd.f32 %v3318, %v3319
    %v3321 = vsel %vm1760, %v3302, 0.0
    %v3322 = vadd.f32 %v3320, %v3321
    %v3323 = vsel %vm1760, %v3306, 0.0
    %v3324 = vadd.f32 %v3322, %v3323
    %v3325 = vsel %vm1760, %v3279, 0.0
    %v3326 = vsel %vm1760, %v3283, 0.0
    %v3327 = vadd.f32 %v3325, %v3326
    %v3328 = vsel %vm1760, %v3287, 0.0
    %v3329 = vadd.f32 %v3327, %v3328
    %v3330 = vsel %vm1760, %v3291, 0.0
    %v3331 = vadd.f32 %v3329, %v3330
    %v3332 = vsel %vm1760, %v3295, 0.0
    %v3333 = vadd.f32 %v3331, %v3332
    %v3334 = vsel %vm1760, %v3299, 0.0
    %v3335 = vadd.f32 %v3333, %v3334
    %v3336 = vsel %vm1760, %v3303, 0.0
    %v3337 = vadd.f32 %v3335, %v3336
    %v3338 = vsel %vm1760, %v3307, 0.0
    %v3339 = vadd.f32 %v3337, %v3338
    %v3340 = vsel %vm1760, %v3280, 0.0
    %v3341 = vsel %vm1760, %v3284, 0.0
    %v3342 = vadd.f32 %v3340, %v3341
    %v3343 = vsel %vm1760, %v3288, 0.0
    %v3344 = vadd.f32 %v3342, %v3343
    %v3345 = vsel %vm1760, %v3292, 0.0
    %v3346 = vadd.f32 %v3344, %v3345
    %v3347 = vsel %vm1760, %v3296, 0.0
    %v3348 = vadd.f32 %v3346, %v3347
    %v3349 = vsel %vm1760, %v3300, 0.0
    %v3350 = vadd.f32 %v3348, %v3349
    %v3351 = vsel %vm1760, %v3304, 0.0
    %v3352 = vadd.f32 %v3350, %v3351
    %v3353 = vsel %vm1760, %v3308, 0.0
    %v3354 = vadd.f32 %v3352, %v3353
    %v3355 = vsel %vm1760, %v3281, 0.0
    %v3356 = vsel %vm1760, %v3285, 0.0
    %v3357 = vadd.f32 %v3355, %v3356
    %v3358 = vsel %vm1760, %v3289, 0.0
    %v3359 = vadd.f32 %v3357, %v3358
    %v3360 = vsel %vm1760, %v3293, 0.0
    %v3361 = vadd.f32 %v3359, %v3360
    %v3362 = vsel %vm1760, %v3297, 0.0
    %v3363 = vadd.f32 %v3361, %v3362
    %v3364 = vsel %vm1760, %v3301, 0.0
    %v3365 = vadd.f32 %v3363, %v3364
    %v3366 = vsel %vm1760, %v3305, 0.0
    %v3367 = vadd.f32 %v3365, %v3366
    %v3368 = vsel %vm1760, %v3309, 0.0
    %v3369 = vadd.f32 %v3367, %v3368
    %v3370 = vsel %vm1760, %v3324, 0.0
    %v3371 = vsel %vm1760, %v3339, 0.0
    %v3372 = vadd.f32 %v3370, %v3371
    %v3373 = vsel %vm1760, %v3354, 0.0
    %v3374 = vadd.f32 %v3372, %v3373
    %v3375 = vsel %vm1760, %v3369, 0.0
    %v3376 = vadd.f32 %v3374, %v3375
    %v3377 = vrot.slane %v3376, 4
    %v3378 = vadd.f32 %v3376, %v3377
    %v3379 = vrot.slane %v3378, 2
    %v3380 = vadd.f32 %v3378, %v3379
    %v3381 = vrot.slane %v3380, 1
    %v3382 = vadd.f32 %v3380, %v3381
    %v3383 = vadd.f32 %v3382, %v1834
    %v3385 = vrot.slane %v3383, 7
    %vm3387 = vcmask 1040384
    %v3388 = vsel %vm3387, %v1835, %v3385
    %vm3389 = vcmask 123904
    %3390 = vst.msk [vmem:[#allocation2] sm:$0x3] %vm3389, %v3388
    // Predicated region
    $region78: #{tpu_custom_call.1} parent=1 // pred_check
      _
    $region79: #{tpu_custom_call.1} parent=1 // pred_check_branch
      %3392 = sbr.rel (0) target = $region81
    $region80: #{tpu_custom_call.1} parent=1 // pred_region
      %s3394 = ssub.s32 32, 32
      %3395 = vsyncadd [#allocation3], %s3394
      %s3397 = sshll.u32 [#allocation2], 4
      %s3398 = int_to_ptr.vmem [resolvable:$true] %s3397
      %3400 = dma.vmem_to_hbm [thread:$0]  %s3398, 32, %s19, [#allocation3]
    $region81: #{tpu_custom_call.1} parent=1 // pred_fallthru
      _
    // Predicated region
    $region82: #{tpu_custom_call.1} parent=1 // pred_check
      _
    $region83: #{tpu_custom_call.1} parent=1 // pred_check_branch
      %3402 = sbr.rel (0) target = $region85
    $region84: #{tpu_custom_call.1} parent=1 // pred_region
      %3403 = dma.done [#allocation3], 32
    $region85: #{tpu_custom_call.1} parent=1 // pred_fallthru
      _
    %3404 = vsyncpa [#allocation3], 1

</llo_original>
